<compile_context>
chip_gen: v7x
topology: tpu7x:2x2x1
jax: 0.10.0
libtpu: 0.0.40
codegen_flags: <defaults>
</compile_context>

<pallas_src>
import functools

import jax
import jax.numpy as jnp
from jax import lax
from jax.experimental import pallas as pl
from jax.experimental.pallas import tpu as pltpu

LN_EPS = 1e-5


def _round_up(x, m):
    return ((x + m - 1) // m) * m


def _vmem_limit_bytes():
    """Generation-aware scoped-VMEM cap: leave ~25% headroom for compiler scratch."""
    try:
        cap = int(pltpu.get_tpu_info().vmem_capacity_bytes)
    except Exception:
        cap = 128 * 1024 * 1024
    return int(min(cap * 3 // 4, 100 * 1024 * 1024))


def _bf16_vpu_available():
    """bf16 VPU/EUP present (v6e and later). Keep f32 activations on v5e and older."""
    try:
        kind = jax.devices()[0].device_kind.lower()
    except Exception:
        return False
    return not any(tag in kind for tag in ("v2", "v3", "v4", "v5"))


_VMEM_LIMIT = _vmem_limit_bytes()
_BF16_ACT = _bf16_vpu_available()


def _invariant_spec(shape):
    """Grid-invariant (weight) block: full array, constant index map, single buffer."""
    index_map = lambda *_: (0,) * len(shape)
    try:
        return pl.BlockSpec(shape, index_map, pipeline_mode=pl.Buffered(1))
    except TypeError:  # older jax without pipeline_mode: fall back to default buffering
        return pl.BlockSpec(shape, index_map)


# ----------------------------- in-kernel helpers -----------------------------
def _layernorm(x, g, b):
    """LayerNorm in float32 (matches the fp32-cast LayerNorm subclass)."""
    xf = x.astype(jnp.float32)
    mu = jnp.mean(xf, axis=-1, keepdims=True)
    var = jnp.mean((xf - mu) ** 2, axis=-1, keepdims=True)
    return (xf - mu) * lax.rsqrt(var + LN_EPS) * g + b


def _linear(x, w, b):
    """x:(S,in) @ w:(out,in).T + b:(1,out) — bf16 MXU operands, f32 accumulation."""
    y = lax.dot_general(x.astype(jnp.bfloat16), w.astype(jnp.bfloat16),
                        (((1,), (1,)), ((), ())),
                        preferred_element_type=jnp.float32)
    return y + b


# ------------------------ patch embedding (conv -> GEMM) ---------------------
def patch_embed_kernel(p_ref, w_ref, o_ref):
    o_ref[...] = jnp.dot(p_ref[...], w_ref[...],
                         preferred_element_type=jnp.float32).astype(o_ref.dtype)


def patch_embed(patches, w_flat, tile_m):
    M, K = patches.shape
    N = w_flat.shape[1]
    return pl.pallas_call(
        patch_embed_kernel,
        grid=(M // tile_m,),
        in_specs=[pl.BlockSpec((tile_m, K), lambda i: (i, 0)),
                  _invariant_spec((K, N))],
        out_specs=pl.BlockSpec((tile_m, N), lambda i: (i, 0)),
        out_shape=jax.ShapeDtypeStruct((M, N), jnp.bfloat16),
        compiler_params=pltpu.CompilerParams(
            dimension_semantics=("parallel",),
            vmem_limit_bytes=_VMEM_LIMIT),
    )(patches, w_flat)


# ------------------------ positional add + ln_pre ----------------------------
def pre_kernel(x_ref, pos_ref, g_ref, b_ref, o_ref):
    x = x_ref[0].astype(jnp.float32) + pos_ref[...]
    o_ref[0] = _layernorm(x, g_ref[...], b_ref[...])


def pre_ln(x_tok, pos, g, b):
    B, S, D = x_tok.shape
    return pl.pallas_call(
        pre_kernel,
        grid=(B,),
        in_specs=[
            pl.BlockSpec((1, S, D), lambda i: (i, 0, 0)),
            _invariant_spec((S, D)),
            _invariant_spec((1, D)),
            _invariant_spec((1, D)),
        ],
        out_specs=pl.BlockSpec((1, S, D), lambda i: (i, 0, 0)),
        out_shape=jax.ShapeDtypeStruct((B, S, D), jnp.float32),
        compiler_params=pltpu.CompilerParams(
            dimension_semantics=("parallel",),
            vmem_limit_bytes=_VMEM_LIMIT),
    )(x_tok, pos, g, b)


# ------------------------ residual attention block ---------------------------
def block_kernel(n_head, valid_len, bf16_act,
                 x_ref,
                 ln1g_ref, ln1b_ref,
                 wqkv_ref, bqkv_ref,
                 wo_ref, bo_ref,
                 ln2g_ref, ln2b_ref,
                 wfc_ref, bfc_ref, wpr_ref, bpr_ref,
                 o_ref):
    x = x_ref[0]                                       # (S, D) f32 residual stream
    S, D = x.shape
    hd = D // n_head

    # ---- multi-head self-attention on ln_1(x) (1/sqrt(hd) pre-folded into wq/bq) ----
    xn = _layernorm(x, ln1g_ref[...], ln1b_ref[...])
    qkv = _linear(xn, wqkv_ref[...], bqkv_ref[...])    # one fused (S,D)x(D,3D) GEMM
    q = jnp.transpose(qkv[:, :D].reshape(S, n_head, hd), (1, 0, 2)).astype(jnp.bfloat16)
    k = jnp.transpose(qkv[:, D:2 * D].reshape(S, n_head, hd), (1, 0, 2)).astype(jnp.bfloat16)
    v = jnp.transpose(qkv[:, 2 * D:].reshape(S, n_head, hd), (1, 0, 2)).astype(jnp.bfloat16)

    # all heads in one batched matmul pair (contiguous back-to-back MXU issues)
    s = jnp.einsum('hqd,hkd->hqk', q, k, preferred_element_type=jnp.float32)  # (H,S,S)
    if valid_len < S:        # single additive bias row masks padded key columns
        col = lax.broadcasted_iota(jnp.int32, (1, S), 1)
        s = s + jnp.where(col < valid_len, 0.0, -1e30)[None]
    s = s - jnp.max(s, axis=-1, keepdims=True)
    p = jnp.exp(s)
    p = p * pl.reciprocal(jnp.sum(p, axis=-1, keepdims=True), approx=True)
    ctx = jnp.einsum('hqk,hkd->hqd', p.astype(jnp.bfloat16), v,
                     preferred_element_type=jnp.float32)                      # (H,S,hd)
    ctx = jnp.transpose(ctx, (1, 0, 2)).reshape(S, D)
    x = x + _linear(ctx, wo_ref[...], bo_ref[...])     # single fused out-proj GEMM

    # ---- MLP on ln_2(x) with QuickGELU ----
    # TODO(synk): for ViT-L on v7x (64 MiB VMEM), stream wfc/wpr over an extra
    # 'arbitrary' grid axis in ~1024-column hidden-dim chunks (accumulate the
    # down-projection) instead of keeping both FFN weights fully resident.
    xn2 = _layernorm(x, ln2g_ref[...], ln2b_ref[...])
    h1 = _linear(xn2, wfc_ref[...], bfc_ref[...])
    if bf16_act:                                       # bf16 VPU/EUP (v6e/v7x): halve h1
        h1 = h1.astype(jnp.bfloat16)
    h1 = h1 * jax.nn.sigmoid(1.702 * h1)               # QuickGELU
    x = x + _linear(h1, wpr_ref[...], bpr_ref[...])

    o_ref[0] = x


_BLOCK_PARAM_ORDER = ('ln1_g', 'ln1_b', 'wqkv', 'bqkv', 'wo', 'bo',
                      'ln2_g', 'ln2_b', 'wfc', 'bfc', 'wpr', 'bpr')


def resblock(x, blk, n_head, valid_len):
    # TODO(synk): add a query-tile grid axis (128-256 rows of S) for large S / B=1 so
    # both v7x TensorCores get work and the (S,S) score slab shrinks.
    B, S, D = x.shape
    args = [blk[name] for name in _BLOCK_PARAM_ORDER]
    in_specs = [pl.BlockSpec((1, S, D), lambda i: (i, 0, 0))]
    in_specs += [_invariant_spec(a.shape) for a in args]   # single-buffered weights
    return pl.pallas_call(
        functools.partial(block_kernel, n_head, valid_len, _BF16_ACT),
        grid=(B,),
        in_specs=in_specs,
        out_specs=pl.BlockSpec((1, S, D), lambda i: (i, 0, 0)),
        out_shape=jax.ShapeDtypeStruct((B, S, D), jnp.float32),
        input_output_aliases={0: 0},                   # residual stream updated in place
        compiler_params=pltpu.CompilerParams(
            dimension_semantics=("parallel",),
            vmem_limit_bytes=_VMEM_LIMIT),
    )(x, *args)


# ------------------------ ln_post + final projection -------------------------
def head_kernel(x_ref, g_ref, b_ref, proj_ref, o_ref):
    xn = _layernorm(x_ref[...], g_ref[...], b_ref[...])
    o_ref[...] = jnp.dot(xn.astype(jnp.bfloat16), proj_ref[...],
                         preferred_element_type=jnp.float32)


def head(x_cls, g, b, proj):
    B = x_cls.shape[0]
    O = proj.shape[1]
    return pl.pallas_call(
        head_kernel,
        out_shape=jax.ShapeDtypeStruct((B, O), jnp.float32),
        compiler_params=pltpu.CompilerParams(vmem_limit_bytes=_VMEM_LIMIT),
    )(x_cls, g, b, proj)


# ----------------------------- parameter init --------------------------------
def init_params(key, input_resolution, patch_size, width, layers, heads, output_dim):
    del heads
    scale = width ** (-0.5)
    num_patches = (input_resolution // patch_size) ** 2
    keys = jax.random.split(key, 4 + layers)
    p = {
        'conv_w': scale * jax.random.normal(
            keys[0], (width, 3, patch_size, patch_size), jnp.float32),
        'class_embedding': scale * jax.random.normal(keys[1], (1, width), jnp.float32),
        'positional_embedding': scale * jax.random.normal(
            keys[2], (num_patches + 1, width), jnp.float32),
        'ln_pre_g': jnp.ones((1, width), jnp.float32),
        'ln_pre_b': jnp.zeros((1, width), jnp.float32),
        'ln_post_g': jnp.ones((1, width), jnp.float32),
        'ln_post_b': jnp.zeros((1, width), jnp.float32),
        'proj': scale * jax.random.normal(keys[3], (width, output_dim), jnp.float32),
    }
    blocks = []
    d = width
    for l in range(layers):
        k = jax.random.split(keys[4 + l], 6)
        blocks.append({
            'ln1_g': jnp.ones((1, d), jnp.float32), 'ln1_b': jnp.zeros((1, d), jnp.float32),
            'wq': scale * jax.random.normal(k[0], (d, d), jnp.float32),
            'wk': scale * jax.random.normal(k[1], (d, d), jnp.float32),
            'wv': scale * jax.random.normal(k[2], (d, d), jnp.float32),
            'bq': jnp.zeros((1, d), jnp.float32),
            'bk': jnp.zeros((1, d), jnp.float32),
            'bv': jnp.zeros((1, d), jnp.float32),
            'wo': scale * jax.random.normal(k[3], (d, d), jnp.float32),
            'bo': jnp.zeros((1, d), jnp.float32),
            'ln2_g': jnp.ones((1, d), jnp.float32), 'ln2_b': jnp.zeros((1, d), jnp.float32),
            'wfc': scale * jax.random.normal(k[4], (4 * d, d), jnp.float32),
            'bfc': jnp.zeros((1, 4 * d), jnp.float32),
            'wpr': scale * jax.random.normal(k[5], (d, 4 * d), jnp.float32),
            'bpr': jnp.zeros((1, d), jnp.float32),
        })
    p['blocks'] = blocks
    return p


def prepare_params(params, heads):
    """One-time (OUTSIDE jit) weight packing: fused qkv with 1/sqrt(hd) folded into the
    q rows/bias, bf16 casts of every MXU operand, lane-padded flattened patch weights,
    sublane-padded positional embedding."""
    width = params['conv_w'].shape[0]
    hd = width // heads
    scale = 1.0 / float(hd) ** 0.5

    K = int(params['conv_w'].shape[1] * params['conv_w'].shape[2] * params['conv_w'].shape[3])
    K_pad = _round_up(K, 128)
    w_patch = params['conv_w'].reshape(width, -1).T                       # (K, width)
    w_patch = jnp.pad(w_patch, ((0, K_pad - K), (0, 0))).astype(jnp.bfloat16)

    S = params['positional_embedding'].shape[0]
    S_pad = _round_up(S, 8)
    pos = jnp.pad(params['positional_embedding'], ((0, S_pad - S), (0, 0)))

    packed = {
        'w_patch': w_patch,
        'class_embedding': params['class_embedding'].astype(jnp.bfloat16),
        'positional_embedding': pos,
        'ln_pre_g': params['ln_pre_g'], 'ln_pre_b': params['ln_pre_b'],
        'ln_post_g': params['ln_post_g'], 'ln_post_b': params['ln_post_b'],
        'proj': params['proj'].astype(jnp.bfloat16),
        'blocks': [],
    }
    for blk in params['blocks']:
        wqkv = jnp.concatenate([blk['wq'] * scale, blk['wk'], blk['wv']],
                               axis=0).astype(jnp.bfloat16)
        bqkv = jnp.concatenate([blk['bq'] * scale, blk['bk'], blk['bv']], axis=1)
        packed['blocks'].append({
            'ln1_g': blk['ln1_g'], 'ln1_b': blk['ln1_b'],
            'wqkv': wqkv, 'bqkv': bqkv,
            'wo': blk['wo'].astype(jnp.bfloat16), 'bo': blk['bo'],
            'ln2_g': blk['ln2_g'], 'ln2_b': blk['ln2_b'],
            'wfc': blk['wfc'].astype(jnp.bfloat16), 'bfc': blk['bfc'],
            'wpr': blk['wpr'].astype(jnp.bfloat16), 'bpr': blk['bpr'],
        })
    return packed


# ------------------------------- forward pass --------------------------------
def vision_transformer(x, packed, patch_size, heads):
    B, C, H, W = x.shape
    gh, gw = H // patch_size, W // patch_size
    width = packed['w_patch'].shape[1]

    # conv1 (stride == kernel, no bias) as patch extraction + tiled GEMM (glue reshape).
    patches = x.reshape(B, C, gh, patch_size, gw, patch_size)
    patches = patches.transpose(0, 2, 4, 1, 3, 5)
    patches = patches.reshape(B * gh * gw, C * patch_size * patch_size)

    M, K = patches.shape
    K_pad = packed['w_patch'].shape[0]
    tile_m = 512
    M_pad = _round_up(M, 8)
    if M_pad <= tile_m:
        tile_m = M_pad
    else:
        M_pad = _round_up(M, tile_m)
    patches = jnp.pad(patches, ((0, M_pad - M), (0, K_pad - K))).astype(jnp.bfloat16)

    emb = patch_embed(patches, packed['w_patch'], tile_m)[:M].reshape(B, gh * gw, width)

    # prepend class token; positional embedding is already padded to a sublane multiple.
    S = gh * gw + 1
    S_pad = packed['positional_embedding'].shape[0]
    cls = jnp.broadcast_to(packed['class_embedding'][None], (B, 1, width))
    tok = jnp.concatenate([cls, emb], axis=1)                 # (B, S, D) bf16
    tok = jnp.pad(tok, ((0, 0), (0, S_pad - S), (0, 0)))
    # TODO(synk): fuse the pos-add + ln_pre into the first resblock (saves one
    # (B,S,D) HBM round trip and a kernel launch).
    tok = pre_ln(tok, packed['positional_embedding'],
                 packed['ln_pre_g'], packed['ln_pre_b'])

    # TODO(synk): (v5e) fuse all layers into one pallas_call keeping the residual
    # stream resident in VMEM and streaming per-layer weights via manual DMA.
    for blk in packed['blocks']:
        tok = resblock(tok, blk, heads, S)

    x_cls = tok[:, 0, :]                                      # (B, D) — CLS token only
    return head(x_cls, packed['ln_post_g'], packed['ln_post_b'], packed['proj'])


if __name__ == "__main__":
    # small but consistent configuration:
    input_resolution, patch_size = 16, 8          # -> 2x2 = 4 patches + 1 CLS = 5 tokens
    width, layers, heads, output_dim = 32, 2, 4, 16
    B = 2

    key = jax.random.PRNGKey(0)
    kx, kp = jax.random.split(key)
    x = jax.random.normal(kx, (B, 3, input_resolution, input_resolution), jnp.float32)
    raw = init_params(kp, input_resolution, patch_size, width, layers, heads, output_dim)
    packed = jax.tree_util.tree_map(lambda a: a, prepare_params(raw, heads))  # packed once

    fwd = jax.jit(functools.partial(vision_transformer,
                                    patch_size=patch_size, heads=heads))
    out = jax.block_until_ready(fwd(x, packed))
    assert out.shape == (B, output_dim), out.shape
    assert bool(jnp.all(jnp.isfinite(out)))
    print("KERNEL_OK")
</pallas_src>

<mosaic_0001>
module attributes {stable_mosaic.version = 11 : i64} {
  func.func @patch_embed_kernel(%arg0: i32, %arg1: memref<8x256xbf16, #tpu.memory_space<vmem>>, %arg2: memref<256x32xbf16, #tpu.memory_space<vmem>>, %arg3: memref<8x32xbf16, #tpu.memory_space<vmem>>) attributes {dimension_semantics = [#tpu.dimension_semantics<parallel>], iteration_bounds = array<i64: 1>, scalar_prefetch = 0 : i64, scratch_operands = 0 : i64, tpu.core_type = #tpu.core_type<tc>, window_params = [{transform_indices = @transform_0, window_bounds = array<i64: 8, 256>}, {pipeline_mode = #tpu.pipeline_mode<synchronous>, transform_indices = @transform_1, window_bounds = array<i64: 256, 32>}, {transform_indices = @transform_2, window_bounds = array<i64: 8, 32>}]} {
    %c0 = arith.constant 0 : index
    %c0_0 = arith.constant 0 : index
    %0 = vector.load %arg1[%c0, %c0_0] : memref<8x256xbf16, #tpu.memory_space<vmem>>, vector<8x256xbf16>
    %c0_1 = arith.constant 0 : index
    %c0_2 = arith.constant 0 : index
    %1 = vector.load %arg2[%c0_1, %c0_2] : memref<256x32xbf16, #tpu.memory_space<vmem>>, vector<256x32xbf16>
    %cst = arith.constant dense<0.000000e+00> : vector<8x32xf32>
    %2 = tpu.matmul %0, %1, %cst {dimension_numbers = #tpu.dot_dimension_numbers<[1], [0], [0], [1], [0, 0, 1, 1], [], []>} : vector<8x256xbf16>, vector<256x32xbf16>, vector<8x32xf32> -> vector<8x32xf32>
    %3 = arith.truncf %2 : vector<8x32xf32> to vector<8x32xbf16>
    %c0_3 = arith.constant 0 : index
    %c0_4 = arith.constant 0 : index
    %4 = vector.load %arg3[%c0_3, %c0_4] : memref<8x32xbf16, #tpu.memory_space<vmem>>, vector<8x32xbf16>
    tpu.vector_store %arg3[%c0_3, %c0_4], %3 {strides = array<i32>} : memref<8x32xbf16, #tpu.memory_space<vmem>>, vector<8x32xbf16>,
    return
  }
  func.func @transform_0(%arg0: i32) -> (i32, i32) {
    %c0_i32 = arith.constant 0 : i32
    %c0_i32_0 = arith.constant 0 : i32
    return %arg0, %c0_i32 : i32, i32
  }
  func.func @transform_1(%arg0: i32) -> (i32, i32) {
    %c0_i32 = arith.constant 0 : i32
    %c0_i32_0 = arith.constant 0 : i32
    %c0_i32_1 = arith.constant 0 : i32
    return %c0_i32, %c0_i32_0 : i32, i32
  }
  func.func @transform_2(%arg0: i32) -> (i32, i32) {
    %c0_i32 = arith.constant 0 : i32
    %c0_i32_0 = arith.constant 0 : i32
    return %arg0, %c0_i32 : i32, i32
  }
}

module attributes {stable_mosaic.version = 11 : i64} {
  func.func @pre_kernel(%arg0: i32, %arg1: memref<1x8x32xbf16, #tpu.memory_space<vmem>>, %arg2: memref<8x32xf32, #tpu.memory_space<vmem>>, %arg3: memref<1x32xf32, #tpu.memory_space<vmem>>, %arg4: memref<1x32xf32, #tpu.memory_space<vmem>>, %arg5: memref<1x8x32xf32, #tpu.memory_space<vmem>>) attributes {dimension_semantics = [#tpu.dimension_semantics<parallel>], iteration_bounds = array<i64: 2>, scalar_prefetch = 0 : i64, scratch_operands = 0 : i64, tpu.core_type = #tpu.core_type<tc>, window_params = [{transform_indices = @transform_0, window_bounds = array<i64: 1, 8, 32>}, {pipeline_mode = #tpu.pipeline_mode<synchronous>, transform_indices = @transform_1, window_bounds = array<i64: 8, 32>}, {pipeline_mode = #tpu.pipeline_mode<synchronous>, transform_indices = @transform_2, window_bounds = array<i64: 1, 32>}, {pipeline_mode = #tpu.pipeline_mode<synchronous>, transform_indices = @transform_3, window_bounds = array<i64: 1, 32>}, {transform_indices = @transform_4, window_bounds = array<i64: 1, 8, 32>}]} {
    %c0 = arith.constant 0 : index
    %c0_0 = arith.constant 0 : index
    %c0_1 = arith.constant 0 : index
    %0 = vector.load %arg1[%c0, %c0_0, %c0_1] : memref<1x8x32xbf16, #tpu.memory_space<vmem>>, vector<1x8x32xbf16>
    %1 = vector.shape_cast %0 : vector<1x8x32xbf16> to vector<8x32xbf16>
    %2 = arith.extf %1 : vector<8x32xbf16> to vector<8x32xf32>
    %c0_2 = arith.constant 0 : index
    %c0_3 = arith.constant 0 : index
    %3 = vector.load %arg2[%c0_2, %c0_3] : memref<8x32xf32, #tpu.memory_space<vmem>>, vector<8x32xf32>
    %4 = arith.addf %2, %3 : vector<8x32xf32>
    %c0_4 = arith.constant 0 : index
    %c0_5 = arith.constant 0 : index
    %5 = vector.load %arg3[%c0_4, %c0_5] : memref<1x32xf32, #tpu.memory_space<vmem>>, vector<1x32xf32>
    %c0_6 = arith.constant 0 : index
    %c0_7 = arith.constant 0 : index
    %6 = vector.load %arg4[%c0_6, %c0_7] : memref<1x32xf32, #tpu.memory_space<vmem>>, vector<1x32xf32>
    %cst = arith.constant dense<0.000000e+00> : vector<8xf32>
    %7 = vector.multi_reduction <add>, %4, %cst [1] : vector<8x32xf32> to vector<8xf32>
    %8 = vector.shape_cast %7 : vector<8xf32> to vector<8x1xf32>
    %cst_8 = arith.constant 3.200000e+01 : f32
    %9 = vector.broadcast %cst_8 : f32 to vector<8x1xf32>
    %10 = arith.divf %8, %9 : vector<8x1xf32>
    %11 = vector.broadcast %10 : vector<8x1xf32> to vector<8x32xf32>
    %12 = arith.subf %4, %11 : vector<8x32xf32>
    %13 = arith.mulf %12, %12 : vector<8x32xf32>
    %cst_9 = arith.constant dense<0.000000e+00> : vector<8xf32>
    %14 = vector.multi_reduction <add>, %13, %cst_9 [1] : vector<8x32xf32> to vector<8xf32>
    %15 = vector.shape_cast %14 : vector<8xf32> to vector<8x1xf32>
    %cst_10 = arith.constant 3.200000e+01 : f32
    %16 = vector.broadcast %cst_10 : f32 to vector<8x1xf32>
    %17 = arith.divf %15, %16 : vector<8x1xf32>
    %18 = vector.broadcast %10 : vector<8x1xf32> to vector<8x32xf32>
    %19 = arith.subf %4, %18 : vector<8x32xf32>
    %cst_11 = arith.constant 9.99999974E-6 : f32
    %20 = vector.broadcast %cst_11 : f32 to vector<8x1xf32>
    %21 = arith.addf %17, %20 : vector<8x1xf32>
    %22 = math.rsqrt %21 : vector<8x1xf32>
    %23 = vector.broadcast %22 : vector<8x1xf32> to vector<8x32xf32>
    %24 = arith.mulf %19, %23 : vector<8x32xf32>
    %25 = vector.broadcast %5 : vector<1x32xf32> to vector<8x32xf32>
    %26 = arith.mulf %24, %25 : vector<8x32xf32>
    %27 = vector.broadcast %6 : vector<1x32xf32> to vector<8x32xf32>
    %28 = arith.addf %26, %27 : vector<8x32xf32>
    %c0_12 = arith.constant 0 : index
    %c0_13 = arith.constant 0 : index
    %c0_14 = arith.constant 0 : index
    %29 = vector.load %arg5[%c0_12, %c0_13, %c0_14] : memref<1x8x32xf32, #tpu.memory_space<vmem>>, vector<1x8x32xf32>
    %30 = vector.shape_cast %29 : vector<1x8x32xf32> to vector<8x32xf32>
    %31 = vector.shape_cast %28 : vector<8x32xf32> to vector<1x8x32xf32>
    tpu.vector_store %arg5[%c0_12, %c0_13, %c0_14], %31 {strides = array<i32>} : memref<1x8x32xf32, #tpu.memory_space<vmem>>, vector<1x8x32xf32>,
    return
  }
  func.func @transform_0(%arg0: i32) -> (i32, i32, i32) {
    %c0_i32 = arith.constant 0 : i32
    %c0_i32_0 = arith.constant 0 : i32
    %c0_i32_1 = arith.constant 0 : i32
    return %arg0, %c0_i32, %c0_i32_0 : i32, i32, i32
  }
  func.func @transform_1(%arg0: i32) -> (i32, i32) {
    %c0_i32 = arith.constant 0 : i32
    %c0_i32_0 = arith.constant 0 : i32
    %c0_i32_1 = arith.constant 0 : i32
    return %c0_i32, %c0_i32_0 : i32, i32
  }
  func.func @transform_2(%arg0: i32) -> (i32, i32) {
    %c0_i32 = arith.constant 0 : i32
    %c0_i32_0 = arith.constant 0 : i32
    %c0_i32_1 = arith.constant 0 : i32
    return %c0_i32, %c0_i32_0 : i32, i32
  }
  func.func @transform_3(%arg0: i32) -> (i32, i32) {
    %c0_i32 = arith.constant 0 : i32
    %c0_i32_0 = arith.constant 0 : i32
    %c0_i32_1 = arith.constant 0 : i32
    return %c0_i32, %c0_i32_0 : i32, i32
  }
  func.func @transform_4(%arg0: i32) -> (i32, i32, i32) {
    %c0_i32 = arith.constant 0 : i32
    %c0_i32_0 = arith.constant 0 : i32
    %c0_i32_1 = arith.constant 0 : i32
    return %arg0, %c0_i32, %c0_i32_0 : i32, i32, i32
  }
}

module attributes {stable_mosaic.version = 11 : i64} {
  func.func @head_kernel(%arg0: memref<2x32xf32, #tpu.memory_space<vmem>>, %arg1: memref<1x32xf32, #tpu.memory_space<vmem>>, %arg2: memref<1x32xf32, #tpu.memory_space<vmem>>, %arg3: memref<32x16xbf16, #tpu.memory_space<vmem>>, %arg4: memref<2x16xf32, #tpu.memory_space<vmem>>) attributes {dimension_semantics = [], scalar_prefetch = 0 : i64, scratch_operands = 0 : i64, tpu.core_type = #tpu.core_type<tc>} {
    %c0 = arith.constant 0 : index
    %c0_0 = arith.constant 0 : index
    %0 = vector.load %arg0[%c0, %c0_0] : memref<2x32xf32, #tpu.memory_space<vmem>>, vector<2x32xf32>
    %c0_1 = arith.constant 0 : index
    %c0_2 = arith.constant 0 : index
    %1 = vector.load %arg1[%c0_1, %c0_2] : memref<1x32xf32, #tpu.memory_space<vmem>>, vector<1x32xf32>
    %c0_3 = arith.constant 0 : index
    %c0_4 = arith.constant 0 : index
    %2 = vector.load %arg2[%c0_3, %c0_4] : memref<1x32xf32, #tpu.memory_space<vmem>>, vector<1x32xf32>
    %cst = arith.constant dense<0.000000e+00> : vector<2xf32>
    %3 = vector.multi_reduction <add>, %0, %cst [1] : vector<2x32xf32> to vector<2xf32>
    %4 = vector.shape_cast %3 : vector<2xf32> to vector<2x1xf32>
    %cst_5 = arith.constant 3.200000e+01 : f32
    %5 = vector.broadcast %cst_5 : f32 to vector<2x1xf32>
    %6 = arith.divf %4, %5 : vector<2x1xf32>
    %7 = vector.broadcast %6 : vector<2x1xf32> to vector<2x32xf32>
    %8 = arith.subf %0, %7 : vector<2x32xf32>
    %9 = arith.mulf %8, %8 : vector<2x32xf32>
    %cst_6 = arith.constant dense<0.000000e+00> : vector<2xf32>
    %10 = vector.multi_reduction <add>, %9, %cst_6 [1] : vector<2x32xf32> to vector<2xf32>
    %11 = vector.shape_cast %10 : vector<2xf32> to vector<2x1xf32>
    %cst_7 = arith.constant 3.200000e+01 : f32
    %12 = vector.broadcast %cst_7 : f32 to vector<2x1xf32>
    %13 = arith.divf %11, %12 : vector<2x1xf32>
    %14 = vector.broadcast %6 : vector<2x1xf32> to vector<2x32xf32>
    %15 = arith.subf %0, %14 : vector<2x32xf32>
    %cst_8 = arith.constant 9.99999974E-6 : f32
    %16 = vector.broadcast %cst_8 : f32 to vector<2x1xf32>
    %17 = arith.addf %13, %16 : vector<2x1xf32>
    %18 = math.rsqrt %17 : vector<2x1xf32>
    %19 = vector.broadcast %18 : vector<2x1xf32> to vector<2x32xf32>
    %20 = arith.mulf %15, %19 : vector<2x32xf32>
    %21 = vector.broadcast %1 : vector<1x32xf32> to vector<2x32xf32>
    %22 = arith.mulf %20, %21 : vector<2x32xf32>
    %23 = vector.broadcast %2 : vector<1x32xf32> to vector<2x32xf32>
    %24 = arith.addf %22, %23 : vector<2x32xf32>
    %25 = arith.truncf %24 : vector<2x32xf32> to vector<2x32xbf16>
    %c0_9 = arith.constant 0 : index
    %c0_10 = arith.constant 0 : index
    %26 = vector.load %arg3[%c0_9, %c0_10] : memref<32x16xbf16, #tpu.memory_space<vmem>>, vector<32x16xbf16>
    %cst_11 = arith.constant dense<0.000000e+00> : vector<2x16xf32>
    %27 = tpu.matmul %25, %26, %cst_11 {dimension_numbers = #tpu.dot_dimension_numbers<[1], [0], [0], [1], [0, 0, 1, 1], [], []>} : vector<2x32xbf16>, vector<32x16xbf16>, vector<2x16xf32> -> vector<2x16xf32>
    %c0_12 = arith.constant 0 : index
    %c0_13 = arith.constant 0 : index
    %28 = vector.load %arg4[%c0_12, %c0_13] : memref<2x16xf32, #tpu.memory_space<vmem>>, vector<2x16xf32>
    tpu.vector_store %arg4[%c0_12, %c0_13], %27 {strides = array<i32>} : memref<2x16xf32, #tpu.memory_space<vmem>>, vector<2x16xf32>,
    return
  }
}

module attributes {stable_mosaic.version = 11 : i64} {
  func.func @block_kernel(%arg0: i32, %arg1: memref<1x8x32xf32, #tpu.memory_space<vmem>>, %arg2: memref<1x32xf32, #tpu.memory_space<vmem>>, %arg3: memref<1x32xf32, #tpu.memory_space<vmem>>, %arg4: memref<96x32xbf16, #tpu.memory_space<vmem>>, %arg5: memref<1x96xf32, #tpu.memory_space<vmem>>, %arg6: memref<32x32xbf16, #tpu.memory_space<vmem>>, %arg7: memref<1x32xf32, #tpu.memory_space<vmem>>, %arg8: memref<1x32xf32, #tpu.memory_space<vmem>>, %arg9: memref<1x32xf32, #tpu.memory_space<vmem>>, %arg10: memref<128x32xbf16, #tpu.memory_space<vmem>>, %arg11: memref<1x128xf32, #tpu.memory_space<vmem>>, %arg12: memref<32x128xbf16, #tpu.memory_space<vmem>>, %arg13: memref<1x32xf32, #tpu.memory_space<vmem>>, %arg14: memref<1x8x32xf32, #tpu.memory_space<vmem>>) attributes {dimension_semantics = [#tpu.dimension_semantics<parallel>], iteration_bounds = array<i64: 2>, scalar_prefetch = 0 : i64, scratch_operands = 0 : i64, tpu.core_type = #tpu.core_type<tc>, window_params = [{transform_indices = @transform_0, window_bounds = array<i64: 1, 8, 32>}, {pipeline_mode = #tpu.pipeline_mode<synchronous>, transform_indices = @transform_1, window_bounds = array<i64: 1, 32>}, {pipeline_mode = #tpu.pipeline_mode<synchronous>, transform_indices = @transform_2, window_bounds = array<i64: 1, 32>}, {pipeline_mode = #tpu.pipeline_mode<synchronous>, transform_indices = @transform_3, window_bounds = array<i64: 96, 32>}, {pipeline_mode = #tpu.pipeline_mode<synchronous>, transform_indices = @transform_4, window_bounds = array<i64: 1, 96>}, {pipeline_mode = #tpu.pipeline_mode<synchronous>, transform_indices = @transform_5, window_bounds = array<i64: 32, 32>}, {pipeline_mode = #tpu.pipeline_mode<synchronous>, transform_indices = @transform_6, window_bounds = array<i64: 1, 32>}, {pipeline_mode = #tpu.pipeline_mode<synchronous>, transform_indices = @transform_7, window_bounds = array<i64: 1, 32>}, {pipeline_mode = #tpu.pipeline_mode<synchronous>, transform_indices = @transform_8, window_bounds = array<i64: 1, 32>}, {pipeline_mode = #tpu.pipeline_mode<synchronous>, transform_indices = @transform_9, window_bounds = array<i64: 128, 32>}, {pipeline_mode = #tpu.pipeline_mode<synchronous>, transform_indices = @transform_10, window_bounds = array<i64: 1, 128>}, {pipeline_mode = #tpu.pipeline_mode<synchronous>, transform_indices = @transform_11, window_bounds = array<i64: 32, 128>}, {pipeline_mode = #tpu.pipeline_mode<synchronous>, transform_indices = @transform_12, window_bounds = array<i64: 1, 32>}, {transform_indices = @transform_13, window_bounds = array<i64: 1, 8, 32>}]} {
    %c0 = arith.constant 0 : index
    %c0_0 = arith.constant 0 : index
    %c0_1 = arith.constant 0 : index
    %0 = vector.load %arg1[%c0, %c0_0, %c0_1] : memref<1x8x32xf32, #tpu.memory_space<vmem>>, vector<1x8x32xf32>
    %1 = vector.shape_cast %0 : vector<1x8x32xf32> to vector<8x32xf32>
    %c0_2 = arith.constant 0 : index
    %c0_3 = arith.constant 0 : index
    %2 = vector.load %arg2[%c0_2, %c0_3] : memref<1x32xf32, #tpu.memory_space<vmem>>, vector<1x32xf32>
    %c0_4 = arith.constant 0 : index
    %c0_5 = arith.constant 0 : index
    %3 = vector.load %arg3[%c0_4, %c0_5] : memref<1x32xf32, #tpu.memory_space<vmem>>, vector<1x32xf32>
    %cst = arith.constant dense<0.000000e+00> : vector<8xf32>
    %4 = vector.multi_reduction <add>, %1, %cst [1] : vector<8x32xf32> to vector<8xf32>
    %5 = vector.shape_cast %4 : vector<8xf32> to vector<8x1xf32>
    %cst_6 = arith.constant 3.200000e+01 : f32
    %6 = vector.broadcast %cst_6 : f32 to vector<8x1xf32>
    %7 = arith.divf %5, %6 : vector<8x1xf32>
    %8 = vector.broadcast %7 : vector<8x1xf32> to vector<8x32xf32>
    %9 = arith.subf %1, %8 : vector<8x32xf32>
    %10 = arith.mulf %9, %9 : vector<8x32xf32>
    %cst_7 = arith.constant dense<0.000000e+00> : vector<8xf32>
    %11 = vector.multi_reduction <add>, %10, %cst_7 [1] : vector<8x32xf32> to vector<8xf32>
    %12 = vector.shape_cast %11 : vector<8xf32> to vector<8x1xf32>
    %cst_8 = arith.constant 3.200000e+01 : f32
    %13 = vector.broadcast %cst_8 : f32 to vector<8x1xf32>
    %14 = arith.divf %12, %13 : vector<8x1xf32>
    %15 = vector.broadcast %7 : vector<8x1xf32> to vector<8x32xf32>
    %16 = arith.subf %1, %15 : vector<8x32xf32>
    %cst_9 = arith.constant 9.99999974E-6 : f32
    %17 = vector.broadcast %cst_9 : f32 to vector<8x1xf32>
    %18 = arith.addf %14, %17 : vector<8x1xf32>
    %19 = math.rsqrt %18 : vector<8x1xf32>
    %20 = vector.broadcast %19 : vector<8x1xf32> to vector<8x32xf32>
    %21 = arith.mulf %16, %20 : vector<8x32xf32>
    %22 = vector.broadcast %2 : vector<1x32xf32> to vector<8x32xf32>
    %23 = arith.mulf %21, %22 : vector<8x32xf32>
    %24 = vector.broadcast %3 : vector<1x32xf32> to vector<8x32xf32>
    %25 = arith.addf %23, %24 : vector<8x32xf32>
    %c0_10 = arith.constant 0 : index
    %c0_11 = arith.constant 0 : index
    %26 = vector.load %arg4[%c0_10, %c0_11] : memref<96x32xbf16, #tpu.memory_space<vmem>>, vector<96x32xbf16>
    %c0_12 = arith.constant 0 : index
    %c0_13 = arith.constant 0 : index
    %27 = vector.load %arg5[%c0_12, %c0_13] : memref<1x96xf32, #tpu.memory_space<vmem>>, vector<1x96xf32>
    %28 = arith.truncf %25 : vector<8x32xf32> to vector<8x32xbf16>
    %cst_14 = arith.constant dense<0.000000e+00> : vector<8x96xf32>
    %29 = tpu.matmul %28, %26, %cst_14 {dimension_numbers = #tpu.dot_dimension_numbers<[1], [1], [0], [0], [0, 0, 1, 0], [], []>} : vector<8x32xbf16>, vector<96x32xbf16>, vector<8x96xf32> -> vector<8x96xf32>
    %30 = vector.broadcast %27 : vector<1x96xf32> to vector<8x96xf32>
    %31 = arith.addf %29, %30 : vector<8x96xf32>
    %32 = vector.extract_strided_slice %31 {offsets = [0, 0], sizes = [8, 32], strides = [1, 1]} : vector<8x96xf32> to vector<8x32xf32>
    %33 = vector.shape_cast %32 : vector<8x32xf32> to vector<8x4x8xf32>
    %34 = tpu.transpose %33, [1, 0, 2] : vector<8x4x8xf32> -> vector<4x8x8xf32>
    %35 = arith.truncf %34 : vector<4x8x8xf32> to vector<4x8x8xbf16>
    %36 = vector.extract_strided_slice %31 {offsets = [0, 32], sizes = [8, 32], strides = [1, 1]} : vector<8x96xf32> to vector<8x32xf32>
    %37 = vector.shape_cast %36 : vector<8x32xf32> to vector<8x4x8xf32>
    %38 = tpu.transpose %37, [1, 0, 2] : vector<8x4x8xf32> -> vector<4x8x8xf32>
    %39 = arith.truncf %38 : vector<4x8x8xf32> to vector<4x8x8xbf16>
    %40 = vector.extract_strided_slice %31 {offsets = [0, 64], sizes = [8, 32], strides = [1, 1]} : vector<8x96xf32> to vector<8x32xf32>
    %41 = vector.shape_cast %40 : vector<8x32xf32> to vector<8x4x8xf32>
    %42 = tpu.transpose %41, [1, 0, 2] : vector<8x4x8xf32> -> vector<4x8x8xf32>
    %43 = arith.truncf %42 : vector<4x8x8xf32> to vector<4x8x8xbf16>
    "tpu.trace_start"() <{level = 10 : i32, message = "hqd,hkd->hqk"}> : () -> ()
    %cst_15 = arith.constant dense<0.000000e+00> : vector<4x8x8xf32>
    %44 = tpu.matmul %35, %39, %cst_15 {dimension_numbers = #tpu.dot_dimension_numbers<[2], [2], [1], [1], [0, 0, 0, 1, 1, 1], [0], [0]>} : vector<4x8x8xbf16>, vector<4x8x8xbf16>, vector<4x8x8xf32> -> vector<4x8x8xf32>
    "tpu.trace_stop"() : () -> ()
    %45 = tpu.iota {dimensions = array<i32: 1>} : vector<1x8xi32>
    %c5_i32 = arith.constant 5 : i32
    %46 = vector.broadcast %c5_i32 : i32 to vector<1x8xi32>
    %47 = arith.cmpi slt, %45, %46 : vector<1x8xi32>
    %cst_16 = arith.constant 0.000000e+00 : f32
    %cst_17 = arith.constant -1.000000e+30 : f32
    %48 = vector.broadcast %cst_16 : f32 to vector<1x8xf32>
    %49 = vector.broadcast %cst_17 : f32 to vector<1x8xf32>
    %50 = arith.select %47, %48, %49 : vector<1x8xi1>, vector<1x8xf32>
    %51 = vector.shape_cast %50 : vector<1x8xf32> to vector<1x1x8xf32>
    %52 = vector.broadcast %51 : vector<1x1x8xf32> to vector<4x8x8xf32>
    %53 = arith.addf %44, %52 : vector<4x8x8xf32>
    %cst_18 = arith.constant dense<0xFF800000> : vector<4x8xf32>
    %54 = vector.multi_reduction <maximumf>, %53, %cst_18 [2] : vector<4x8x8xf32> to vector<4x8xf32>
    %55 = vector.shape_cast %54 : vector<4x8xf32> to vector<4x8x1xf32>
    %56 = vector.broadcast %55 : vector<4x8x1xf32> to vector<4x8x8xf32>
    %57 = arith.subf %53, %56 : vector<4x8x8xf32>
    %58 = math.exp %57 : vector<4x8x8xf32>
    %cst_19 = arith.constant dense<0.000000e+00> : vector<4x8xf32>
    %59 = vector.multi_reduction <add>, %58, %cst_19 [2] : vector<4x8x8xf32> to vector<4x8xf32>
    %60 = vector.shape_cast %59 : vector<4x8xf32> to vector<4x8x1xf32>
    %61 = tpu.reciprocal %60 {approx = true} : vector<4x8x1xf32> -> vector<4x8x1xf32>
    %62 = vector.broadcast %61 : vector<4x8x1xf32> to vector<4x8x8xf32>
    %63 = arith.mulf %58, %62 : vector<4x8x8xf32>
    %64 = arith.truncf %63 : vector<4x8x8xf32> to vector<4x8x8xbf16>
    "tpu.trace_start"() <{level = 10 : i32, message = "hqk,hkd->hqd"}> : () -> ()
    %cst_20 = arith.constant dense<0.000000e+00> : vector<4x8x8xf32>
    %65 = tpu.matmul %64, %43, %cst_20 {dimension_numbers = #tpu.dot_dimension_numbers<[2], [1], [1], [2], [0, 0, 0, 1, 1, 2], [0], [0]>} : vector<4x8x8xbf16>, vector<4x8x8xbf16>, vector<4x8x8xf32> -> vector<4x8x8xf32>
    "tpu.trace_stop"() : () -> ()
    %66 = tpu.transpose %65, [1, 0, 2] : vector<4x8x8xf32> -> vector<8x4x8xf32>
    %67 = vector.shape_cast %66 : vector<8x4x8xf32> to vector<8x32xf32>
    %c0_21 = arith.constant 0 : index
    %c0_22 = arith.constant 0 : index
    %68 = vector.load %arg6[%c0_21, %c0_22] : memref<32x32xbf16, #tpu.memory_space<vmem>>, vector<32x32xbf16>
    %c0_23 = arith.constant 0 : index
    %c0_24 = arith.constant 0 : index
    %69 = vector.load %arg7[%c0_23, %c0_24] : memref<1x32xf32, #tpu.memory_space<vmem>>, vector<1x32xf32>
    %70 = arith.truncf %67 : vector<8x32xf32> to vector<8x32xbf16>
    %cst_25 = arith.constant dense<0.000000e+00> : vector<8x32xf32>
    %71 = tpu.matmul %70, %68, %cst_25 {dimension_numbers = #tpu.dot_dimension_numbers<[1], [1], [0], [0], [0, 0, 1, 0], [], []>} : vector<8x32xbf16>, vector<32x32xbf16>, vector<8x32xf32> -> vector<8x32xf32>
    %72 = vector.broadcast %69 : vector<1x32xf32> to vector<8x32xf32>
    %73 = arith.addf %71, %72 : vector<8x32xf32>
    %74 = arith.addf %1, %73 : vector<8x32xf32>
    %c0_26 = arith.constant 0 : index
    %c0_27 = arith.constant 0 : index
    %75 = vector.load %arg8[%c0_26, %c0_27] : memref<1x32xf32, #tpu.memory_space<vmem>>, vector<1x32xf32>
    %c0_28 = arith.constant 0 : index
    %c0_29 = arith.constant 0 : index
    %76 = vector.load %arg9[%c0_28, %c0_29] : memref<1x32xf32, #tpu.memory_space<vmem>>, vector<1x32xf32>
    %cst_30 = arith.constant dense<0.000000e+00> : vector<8xf32>
    %77 = vector.multi_reduction <add>, %74, %cst_30 [1] : vector<8x32xf32> to vector<8xf32>
    %78 = vector.shape_cast %77 : vector<8xf32> to vector<8x1xf32>
    %cst_31 = arith.constant 3.200000e+01 : f32
    %79 = vector.broadcast %cst_31 : f32 to vector<8x1xf32>
    %80 = arith.divf %78, %79 : vector<8x1xf32>
    %81 = vector.broadcast %80 : vector<8x1xf32> to vector<8x32xf32>
    %82 = arith.subf %74, %81 : vector<8x32xf32>
    %83 = arith.mulf %82, %82 : vector<8x32xf32>
    %cst_32 = arith.constant dense<0.000000e+00> : vector<8xf32>
    %84 = vector.multi_reduction <add>, %83, %cst_32 [1] : vector<8x32xf32> to vector<8xf32>
    %85 = vector.shape_cast %84 : vector<8xf32> to vector<8x1xf32>
    %cst_33 = arith.constant 3.200000e+01 : f32
    %86 = vector.broadcast %cst_33 : f32 to vector<8x1xf32>
    %87 = arith.divf %85, %86 : vector<8x1xf32>
    %88 = vector.broadcast %80 : vector<8x1xf32> to vector<8x32xf32>
    %89 = arith.subf %74, %88 : vector<8x32xf32>
    %cst_34 = arith.constant 9.99999974E-6 : f32
    %90 = vector.broadcast %cst_34 : f32 to vector<8x1xf32>
    %91 = arith.addf %87, %90 : vector<8x1xf32>
    %92 = math.rsqrt %91 : vector<8x1xf32>
    %93 = vector.broadcast %92 : vector<8x1xf32> to vector<8x32xf32>
    %94 = arith.mulf %89, %93 : vector<8x32xf32>
    %95 = vector.broadcast %75 : vector<1x32xf32> to vector<8x32xf32>
    %96 = arith.mulf %94, %95 : vector<8x32xf32>
    %97 = vector.broadcast %76 : vector<1x32xf32> to vector<8x32xf32>
    %98 = arith.addf %96, %97 : vector<8x32xf32>
    %c0_35 = arith.constant 0 : index
    %c0_36 = arith.constant 0 : index
    %99 = vector.load %arg10[%c0_35, %c0_36] : memref<128x32xbf16, #tpu.memory_space<vmem>>, vector<128x32xbf16>
    %c0_37 = arith.constant 0 : index
    %c0_38 = arith.constant 0 : index
    %100 = vector.load %arg11[%c0_37, %c0_38] : memref<1x128xf32, #tpu.memory_space<vmem>>, vector<1x128xf32>
    %101 = arith.truncf %98 : vector<8x32xf32> to vector<8x32xbf16>
    %cst_39 = arith.constant dense<0.000000e+00> : vector<8x128xf32>
    %102 = tpu.matmul %101, %99, %cst_39 {dimension_numbers = #tpu.dot_dimension_numbers<[1], [1], [0], [0], [0, 0, 1, 0], [], []>} : vector<8x32xbf16>, vector<128x32xbf16>, vector<8x128xf32> -> vector<8x128xf32>
    %103 = vector.broadcast %100 : vector<1x128xf32> to vector<8x128xf32>
    %104 = arith.addf %102, %103 : vector<8x128xf32>
    %105 = arith.truncf %104 : vector<8x128xf32> to vector<8x128xbf16>
    %cst_40 = arith.constant 1.703130e+00 : bf16
    %106 = vector.broadcast %cst_40 : bf16 to vector<8x128xbf16>
    %107 = arith.mulf %106, %105 : vector<8x128xbf16>
    %108 = arith.negf %107 : vector<8x128xbf16>
    %109 = math.exp %108 : vector<8x128xbf16>
    %cst_41 = arith.constant 1.000000e+00 : bf16
    %110 = vector.broadcast %cst_41 : bf16 to vector<8x128xbf16>
    %111 = arith.addf %110, %109 : vector<8x128xbf16>
    %112 = arith.divf %110, %111 : vector<8x128xbf16>
    %113 = arith.mulf %105, %112 : vector<8x128xbf16>
    %c0_42 = arith.constant 0 : index
    %c0_43 = arith.constant 0 : index
    %114 = vector.load %arg12[%c0_42, %c0_43] : memref<32x128xbf16, #tpu.memory_space<vmem>>, vector<32x128xbf16>
    %c0_44 = arith.constant 0 : index
    %c0_45 = arith.constant 0 : index
    %115 = vector.load %arg13[%c0_44, %c0_45] : memref<1x32xf32, #tpu.memory_space<vmem>>, vector<1x32xf32>
    %cst_46 = arith.constant dense<0.000000e+00> : vector<8x32xf32>
    %116 = tpu.matmul %113, %114, %cst_46 {dimension_numbers = #tpu.dot_dimension_numbers<[1], [1], [0], [0], [0, 0, 1, 0], [], []>} : vector<8x128xbf16>, vector<32x128xbf16>, vector<8x32xf32> -> vector<8x32xf32>
    %117 = vector.broadcast %115 : vector<1x32xf32> to vector<8x32xf32>
    %118 = arith.addf %116, %117 : vector<8x32xf32>
    %119 = arith.addf %74, %118 : vector<8x32xf32>
    %c0_47 = arith.constant 0 : index
    %c0_48 = arith.constant 0 : index
    %c0_49 = arith.constant 0 : index
    %120 = vector.load %arg14[%c0_47, %c0_48, %c0_49] : memref<1x8x32xf32, #tpu.memory_space<vmem>>, vector<1x8x32xf32>
    %121 = vector.shape_cast %120 : vector<1x8x32xf32> to vector<8x32xf32>
    %122 = vector.shape_cast %119 : vector<8x32xf32> to vector<1x8x32xf32>
    tpu.vector_store %arg14[%c0_47, %c0_48, %c0_49], %122 {strides = array<i32>} : memref<1x8x32xf32, #tpu.memory_space<vmem>>, vector<1x8x32xf32>,
    return
  }
  func.func @transform_0(%arg0: i32) -> (i32, i32, i32) {
    %c0_i32 = arith.constant 0 : i32
    %c0_i32_0 = arith.constant 0 : i32
    %c0_i32_1 = arith.constant 0 : i32
    return %arg0, %c0_i32, %c0_i32_0 : i32, i32, i32
  }
  func.func @transform_1(%arg0: i32) -> (i32, i32) {
    %c0_i32 = arith.constant 0 : i32
    %c0_i32_0 = arith.constant 0 : i32
    %c0_i32_1 = arith.constant 0 : i32
    return %c0_i32, %c0_i32_0 : i32, i32
  }
  func.func @transform_2(%arg0: i32) -> (i32, i32) {
    %c0_i32 = arith.constant 0 : i32
    %c0_i32_0 = arith.constant 0 : i32
    %c0_i32_1 = arith.constant 0 : i32
    return %c0_i32, %c0_i32_0 : i32, i32
  }
  func.func @transform_3(%arg0: i32) -> (i32, i32) {
    %c0_i32 = arith.constant 0 : i32
    %c0_i32_0 = arith.constant 0 : i32
    %c0_i32_1 = arith.constant 0 : i32
    return %c0_i32, %c0_i32_0 : i32, i32
  }
  func.func @transform_4(%arg0: i32) -> (i32, i32) {
    %c0_i32 = arith.constant 0 : i32
    %c0_i32_0 = arith.constant 0 : i32
    %c0_i32_1 = arith.constant 0 : i32
    return %c0_i32, %c0_i32_0 : i32, i32
  }
  func.func @transform_5(%arg0: i32) -> (i32, i32) {
    %c0_i32 = arith.constant 0 : i32
    %c0_i32_0 = arith.constant 0 : i32
    %c0_i32_1 = arith.constant 0 : i32
    return %c0_i32, %c0_i32_0 : i32, i32
  }
  func.func @transform_6(%arg0: i32) -> (i32, i32) {
    %c0_i32 = arith.constant 0 : i32
    %c0_i32_0 = arith.constant 0 : i32
    %c0_i32_1 = arith.constant 0 : i32
    return %c0_i32, %c0_i32_0 : i32, i32
  }
  func.func @transform_7(%arg0: i32) -> (i32, i32) {
    %c0_i32 = arith.constant 0 : i32
    %c0_i32_0 = arith.constant 0 : i32
    %c0_i32_1 = arith.constant 0 : i32
    return %c0_i32, %c0_i32_0 : i32, i32
  }
  func.func @transform_8(%arg0: i32) -> (i32, i32) {
    %c0_i32 = arith.constant 0 : i32
    %c0_i32_0 = arith.constant 0 : i32
    %c0_i32_1 = arith.constant 0 : i32
    return %c0_i32, %c0_i32_0 : i32, i32
  }
  func.func @transform_9(%arg0: i32) -> (i32, i32) {
    %c0_i32 = arith.constant 0 : i32
    %c0_i32_0 = arith.constant 0 : i32
    %c0_i32_1 = arith.constant 0 : i32
    return %c0_i32, %c0_i32_0 : i32, i32
  }
  func.func @transform_10(%arg0: i32) -> (i32, i32) {
    %c0_i32 = arith.constant 0 : i32
    %c0_i32_0 = arith.constant 0 : i32
    %c0_i32_1 = arith.constant 0 : i32
    return %c0_i32, %c0_i32_0 : i32, i32
  }
  func.func @transform_11(%arg0: i32) -> (i32, i32) {
    %c0_i32 = arith.constant 0 : i32
    %c0_i32_0 = arith.constant 0 : i32
    %c0_i32_1 = arith.constant 0 : i32
    return %c0_i32, %c0_i32_0 : i32, i32
  }
  func.func @transform_12(%arg0: i32) -> (i32, i32) {
    %c0_i32 = arith.constant 0 : i32
    %c0_i32_0 = arith.constant 0 : i32
    %c0_i32_1 = arith.constant 0 : i32
    return %c0_i32, %c0_i32_0 : i32, i32
  }
  func.func @transform_13(%arg0: i32) -> (i32, i32, i32) {
    %c0_i32 = arith.constant 0 : i32
    %c0_i32_0 = arith.constant 0 : i32
    %c0_i32_1 = arith.constant 0 : i32
    return %arg0, %c0_i32, %c0_i32_0 : i32, i32, i32
  }
}

</mosaic_0001>

<llo_original>
// kernel: vision_transformer.6
$region0: #{vision_transformer.6}
  #allocation0 [shape = 'u32[]', space=smem, size = 0x4, offset = 0x4, fixed_abs, tag = 'smem constant byte address 0x4 - core index']
  #allocation1 [shape = 'u32[144,128]{1,0:T(1,128)}', space=vmem, size = 0x12000, scoped, tag = 'internal scratch']
  %s0 = inlined_call_operand.hbm [shape: bf16[2,8,32], index: 0, kind: input, shape index: {}]
  %s1 = inlined_call_operand.hbm [shape: f32[8,32], index: 1, kind: input, shape index: {}]
  %s2 = inlined_call_operand.hbm [shape: f32[1,32], index: 2, kind: input, shape index: {}]
  %s3 = inlined_call_operand.hbm [shape: f32[1,32], index: 3, kind: input, shape index: {}]
  %s4 = inlined_call_operand.hbm [shape: f32[2,8,32], index: 4, kind: output, shape index: {}]
  %s5 = sld [smem:[#allocation0]]
  $region65: #{vision_transformer.6} parent=0
    _
  %s7 = ssub.s32 1, %s5
  %s8 = scalar_select 0, %s7, %s5
  $region1: #{vision_transformer.6} parent=0
    #allocation2 [shape = 'u8[4096]{0}', space=vmem, size = 0x1000, scoped, tag = 'input window, operand 0']
    #allocation3 [shape = 's32[2]{0}', space=sflag, size = 0x8, scoped, tag = 'scoped memory for vision_transformer.6']
    #allocation4 [shape = 's32[2]{0}', space=sflag, size = 0x8, scoped, tag = 'scoped memory for vision_transformer.6']
    #allocation5 [shape = 'u8[4096]{0}', space=vmem, size = 0x1000, scoped, tag = 'input window, operand 1, single buffered']
    #allocation6 [shape = 's32[1]{0}', space=sflag, size = 0x4, scoped, tag = 'scoped memory for vision_transformer.6']
    #allocation7 [shape = 'u8[512]{0}', space=vmem, size = 0x400, scoped, tag = 'input window, operand 2, single buffered']
    #allocation8 [shape = 'u8[512]{0}', space=vmem, size = 0x400, scoped, tag = 'input window, operand 3, single buffered']
    #allocation9 [shape = 's32[1]{0}', space=sflag, size = 0x4, scoped, tag = 'scoped memory for vision_transformer.6']
    #allocation10 [shape = 'u8[8192]{0}', space=vmem, size = 0x2000, scoped, tag = 'output window, operand 0']
    %9 = vsyncpa [#allocation3], 0
    %s10 = scalar_lea.sflag [#allocation3], 1
    %11 = vsyncpa %s10, 0
    %12 = vsyncpa [#allocation6], 0
    %13 = vsyncpa [#allocation9], 0
    %14 = vsyncpa [#allocation4], 0
    %s15 = scalar_lea.sflag [#allocation4], 1
    %16 = vsyncpa %s15, 0
    loop: start=0, step=1, limit=4
    $region2: #{vision_transformer.6} parent=1 // loop_pre_header
      _
    $region3: #{vision_transformer.6} parent=1 // loop_header
      %s18 = sphi 0, %s22
      %p19 = scmp.ge.s32.totalorder %s18, 4
      %s28 = sphi 0, %s30
      %s31 = sphi 0, %s28
      %s32 = sphi 0, %s31
      %s48 = sphi 0, %s32
      %s52 = sphi 0, %s52
      %s54 = sphi 0, %s52
      %s55 = sphi 0, %s54
      %s69 = sphi 0, %s55
      %s73 = sphi 0, %s73
      %s75 = sphi 0, %s73
      %s76 = sphi 0, %s75
      %s90 = sphi 0, %s76
      %s94 = sphi 0, %s94
      %s96 = sphi 0, %s94
      %s97 = sphi 0, %s96
      %s111 = sphi 0, %s97
      %s117 = sphi 0, %s119
      %s120 = sphi 0, %s117
      %s121 = sphi 0, %s120
      %s137 = sphi 0, %s121
    $region4: #{vision_transformer.6} parent=1 // loop_header_branch
      %21 = sbr.rel (%p19) target = $region8
    $region5: #{vision_transformer.6} parent=1 // loop_body
      %s23 = ssub.s32 %s18, 1
      %s24 = ssub.s32 %s18, 2
      %s25 = sadd.s32 %s18, 1
      %s26 = ssub.s32 %s18, %s25
      %p27 = scmp.eq.s32.totalorder %s26, 0
      %s29 = sadd.s32 %s28, 1
      %s30 = scalar_select %p27, %s28, %s29
      %p33 = pneg %p27
      %p34 = scmp.eq.s32.totalorder %s18, 1
      %p35 = por %p33, %p34
      %p36 = scmp.ne.s32.totalorder %s28, %s31
      %p37 = scmp.eq.s32.totalorder %s18, 0
      %p38 = por %p36, %p37
      %p39 = scmp.ne.s32.totalorder %s28, %s31
      %p40 = scmp.eq.s32.totalorder %s23, 1
      %p41 = por %p39, %p40
      %p42 = scmp.ne.s32.totalorder %s31, %s32
      %p43 = scmp.eq.s32.totalorder %s23, 0
      %p44 = por %p42, %p43
      %p45 = scmp.ne.s32.totalorder %s31, %s32
      %p46 = scmp.eq.s32.totalorder %s24, 1
      %p47 = por %p45, %p46
      %p49 = scmp.ne.s32.totalorder %s32, %s48
      %p50 = scmp.eq.s32.totalorder %s24, 0
      %p51 = por %p49, %p50
      %s53 = sadd.s32 %s52, 1
      %p56 = scmp.eq.s32.totalorder %s18, 1
      %p57 = scmp.ne.s32.totalorder %s52, %s54
      %p58 = scmp.eq.s32.totalorder %s18, 0
      %p59 = por %p57, %p58
      %p60 = scmp.ne.s32.totalorder %s52, %s54
      %p61 = scmp.eq.s32.totalorder %s23, 1
      %p62 = por %p60, %p61
      %p63 = scmp.ne.s32.totalorder %s54, %s55
      %p64 = scmp.eq.s32.totalorder %s23, 0
      %p65 = por %p63, %p64
      %p66 = scmp.ne.s32.totalorder %s54, %s55
      %p67 = scmp.eq.s32.totalorder %s24, 1
      %p68 = por %p66, %p67
      %p70 = scmp.ne.s32.totalorder %s55, %s69
      %p71 = scmp.eq.s32.totalorder %s24, 0
      %p72 = por %p70, %p71
      %s74 = sadd.s32 %s73, 1
      %p77 = scmp.eq.s32.totalorder %s18, 1
      %p78 = scmp.ne.s32.totalorder %s73, %s75
      %p79 = scmp.eq.s32.totalorder %s18, 0
      %p80 = por %p78, %p79
      %p81 = scmp.ne.s32.totalorder %s73, %s75
      %p82 = scmp.eq.s32.totalorder %s23, 1
      %p83 = por %p81, %p82
      %p84 = scmp.ne.s32.totalorder %s75, %s76
      %p85 = scmp.eq.s32.totalorder %s23, 0
      %p86 = por %p84, %p85
      %p87 = scmp.ne.s32.totalorder %s75, %s76
      %p88 = scmp.eq.s32.totalorder %s24, 1
      %p89 = por %p87, %p88
      %p91 = scmp.ne.s32.totalorder %s76, %s90
      %p92 = scmp.eq.s32.totalorder %s24, 0
      %p93 = por %p91, %p92
      %s95 = sadd.s32 %s94, 1
      %p98 = scmp.eq.s32.totalorder %s18, 1
      %p99 = scmp.ne.s32.totalorder %s94, %s96
      %p100 = scmp.eq.s32.totalorder %s18, 0
      %p101 = por %p99, %p100
      %p102 = scmp.ne.s32.totalorder %s94, %s96
      %p103 = scmp.eq.s32.totalorder %s23, 1
      %p104 = por %p102, %p103
      %p105 = scmp.ne.s32.totalorder %s96, %s97
      %p106 = scmp.eq.s32.totalorder %s23, 0
      %p107 = por %p105, %p106
      %p108 = scmp.ne.s32.totalorder %s96, %s97
      %p109 = scmp.eq.s32.totalorder %s24, 1
      %p110 = por %p108, %p109
      %p112 = scmp.ne.s32.totalorder %s97, %s111
      %p113 = scmp.eq.s32.totalorder %s24, 0
      %p114 = por %p112, %p113
      %s115 = ssub.s32 %s18, %s25
      %p116 = scmp.eq.s32.totalorder %s115, 0
      %s118 = sadd.s32 %s117, 1
      %s119 = scalar_select %p116, %s117, %s118
      %p122 = pneg %p116
      %p123 = scmp.eq.s32.totalorder %s18, 1
      %p124 = por %p122, %p123
      %p125 = scmp.ne.s32.totalorder %s117, %s120
      %p126 = scmp.eq.s32.totalorder %s18, 0
      %p127 = por %p125, %p126
      %p128 = scmp.ne.s32.totalorder %s117, %s120
      %p129 = scmp.eq.s32.totalorder %s23, 1
      %p130 = por %p128, %p129
      %p131 = scmp.ne.s32.totalorder %s120, %s121
      %p132 = scmp.eq.s32.totalorder %s23, 0
      %p133 = por %p131, %p132
      %p134 = scmp.ne.s32.totalorder %s120, %s121
      %p135 = scmp.eq.s32.totalorder %s24, 1
      %p136 = por %p134, %p135
      %p138 = scmp.ne.s32.totalorder %s121, %s137
      %p139 = scmp.eq.s32.totalorder %s24, 0
      %p140 = por %p138, %p139
      %p141 = scmp.le.s32.totalorder 1, %s18
      %p142 = scmp.lt.s32.totalorder %s18, 3
      %p143 = pnand %p141, %p142
      %p144 = pneg %p143
      // Predicated region
      $region9: #{vision_transformer.6} parent=5 // pred_check
        _
      $region10: #{vision_transformer.6} parent=5 // pred_check_branch
        %146 = sbr.rel (%p143) target = $region12
      $region11: #{vision_transformer.6} parent=5 // pred_region
        %s147 = ssub.s32 %s18, 1
        // Predicated region
        $region13: #{vision_transformer.6} parent=11 // pred_check
          %p148 = pneg %p65
        $region14: #{vision_transformer.6} parent=11 // pred_check_branch
          %150 = sbr.rel (%p148) target = $region16
        $region15: #{vision_transformer.6} parent=11 // pred_region
          %s152 = ssub.s32 128, 128
          %153 = vsyncadd [#allocation6], %s152
          %s155 = sshll.u32 [#allocation5], 4
          %s156 = int_to_ptr.vmem [resolvable:$true] %s155
          %158 = dma.hbm_to_vmem [thread:$0]  %s1, 128, %s156, [#allocation6]
        $region16: #{vision_transformer.6} parent=11 // pred_fallthru
          _
        // Predicated region
        $region17: #{vision_transformer.6} parent=11 // pred_check
          %p159 = pneg %p86
        $region18: #{vision_transformer.6} parent=11 // pred_check_branch
          %161 = sbr.rel (%p159) target = $region20
        $region19: #{vision_transformer.6} parent=11 // pred_region
          %s163 = ssub.s32 16, 16
          %164 = vsyncadd [#allocation6], %s163
          %s166 = sshll.u32 [#allocation7], 4
          %s167 = int_to_ptr.vmem [resolvable:$true] %s166
          %169 = dma.hbm_to_vmem [thread:$0]  %s2, 16, %s167, [#allocation6]
        $region20: #{vision_transformer.6} parent=11 // pred_fallthru
          _
        // Predicated region
        $region21: #{vision_transformer.6} parent=11 // pred_check
          %p170 = pneg %p107
        $region22: #{vision_transformer.6} parent=11 // pred_check_branch
          %172 = sbr.rel (%p170) target = $region24
        $region23: #{vision_transformer.6} parent=11 // pred_region
          %s174 = ssub.s32 16, 16
          %175 = vsyncadd [#allocation9], %s174
          %s177 = sshll.u32 [#allocation8], 4
          %s178 = int_to_ptr.vmem [resolvable:$true] %s177
          %180 = dma.hbm_to_vmem [thread:$0]  %s3, 16, %s178, [#allocation9]
        $region24: #{vision_transformer.6} parent=11 // pred_fallthru
          _
      $region12: #{vision_transformer.6} parent=5 // pred_fallthru
        _
      %p181 = scmp.lt.s32.totalorder %s18, 2
      // Predicated region
      $region25: #{vision_transformer.6} parent=5 // pred_check
        %p182 = pneg %p181
      $region26: #{vision_transformer.6} parent=5 // pred_check_branch
        %184 = sbr.rel (%p182) target = $region28
      $region27: #{vision_transformer.6} parent=5 // pred_region
        // Predicated region
        $region29: #{vision_transformer.6} parent=27 // pred_check
          %p185 = pneg %p38
        $region30: #{vision_transformer.6} parent=27 // pred_check_branch
          %187 = sbr.rel (%p185) target = $region32
        $region31: #{vision_transformer.6} parent=27 // pred_region
          %s188 = sand.u32 %s28, 1
          %s189 = scalar_lea.sflag [#allocation3], %s188
          %s190 = sand.u32 %s28, 1
          %s191 = smul.addr %s190, 4
          %s192 = scalar_lea.vmem [#allocation2], %s191
          %s194 = ssub.s32 64, 64
          %195 = vsyncadd %s189, %s194
          %s196 = smul.addr %s18, 64
          %s197 = scalar_lea.hbm %s0, %s196
          %s199 = sshll.u32 %s192, 4
          %s200 = int_to_ptr.vmem [resolvable:$true] %s199
          %202 = dma.hbm_to_vmem [thread:$0]  %s197, 64, %s200, %s189
        $region32: #{vision_transformer.6} parent=27 // pred_fallthru
          _
      $region28: #{vision_transformer.6} parent=5 // pred_fallthru
        _
      %p203 = scmp.le.s32.totalorder 1, %s18
      %p204 = scmp.lt.s32.totalorder %s18, 3
      %p205 = pnand %p203, %p204
      %p206 = pneg %p205
      // Predicated region
      $region33: #{vision_transformer.6} parent=5 // pred_check
        _
      $region34: #{vision_transformer.6} parent=5 // pred_check_branch
        %208 = sbr.rel (%p205) target = $region36
      $region35: #{vision_transformer.6} parent=5 // pred_region
        %s209 = ssub.s32 %s18, 1
        %s210 = sand.u32 %s31, 1
        %s211 = scalar_lea.sflag [#allocation3], %s210
        %s212 = sand.u32 %s31, 1
        %s213 = smul.addr %s212, 4
        %s214 = scalar_lea.vmem [#allocation2], %s213
        // Predicated region
        $region37: #{vision_transformer.6} parent=35 // pred_check
          %p215 = pneg %p44
        $region38: #{vision_transformer.6} parent=35 // pred_check_branch
          %217 = sbr.rel (%p215) target = $region40
        $region39: #{vision_transformer.6} parent=35 // pred_region
          %218 = dma.done %s211, 64
        $region40: #{vision_transformer.6} parent=35 // pred_fallthru
          _
        // Predicated region
        $region41: #{vision_transformer.6} parent=35 // pred_check
          %p219 = pneg %p65
        $region42: #{vision_transformer.6} parent=35 // pred_check_branch
          %221 = sbr.rel (%p219) target = $region44
        $region43: #{vision_transformer.6} parent=35 // pred_region
          %222 = dma.done [#allocation6], 128
        $region44: #{vision_transformer.6} parent=35 // pred_fallthru
          _
        // Predicated region
        $region45: #{vision_transformer.6} parent=35 // pred_check
          %p223 = pneg %p86
        $region46: #{vision_transformer.6} parent=35 // pred_check_branch
          %225 = sbr.rel (%p223) target = $region48
        $region47: #{vision_transformer.6} parent=35 // pred_region
          %226 = dma.done [#allocation6], 16
        $region48: #{vision_transformer.6} parent=35 // pred_fallthru
          _
        // Predicated region
        $region49: #{vision_transformer.6} parent=35 // pred_check
          %p227 = pneg %p107
        $region50: #{vision_transformer.6} parent=35 // pred_check_branch
          %229 = sbr.rel (%p227) target = $region52
        $region51: #{vision_transformer.6} parent=35 // pred_region
          %230 = dma.done [#allocation9], 16
        $region52: #{vision_transformer.6} parent=35 // pred_fallthru
          _
        %s231 = sand.u32 %s31, 1
        %s232 = scalar_lea.sflag [#allocation3], %s231
        %s233 = sand.u32 %s31, 1
        %s234 = smul.addr %s233, 4
        %s235 = scalar_lea.vmem [#allocation2], %s234
        %p236 = pneg %p44
        %p237 = pneg %p41
        %p238 = pneg %p65
        %p239 = pneg %p62
        %p240 = pneg %p86
        %p241 = pneg %p83
        %p242 = pneg %p107
        %p243 = pneg %p104
        %p244 = pneg %p133
        %p245 = pneg %p130
        %s246 = sand.u32 %s120, 1
        %s247 = scalar_lea.sflag [#allocation4], %s246
        %s248 = sand.u32 %s120, 1
        %s249 = smul.addr %s248, 8
        %s250 = scalar_lea.vmem [#allocation10], %s249
        %v251 = vld [vmem:[%s214] sm:$0xf]
        %v252 = vunpack.c.l.bf16 %v251
        %v253 = vld [vmem:[#allocation5] sm:$0xff]
        %v254 = vadd.f32 %v252, %v253
        %v255 = vld [vmem:[#allocation7] sm:$0x1]
        %v256 = vld [vmem:[#allocation8] sm:$0x1]
        %vm257 = vcmask 261120
        %v258 = vsel %vm257, %v254, 0.0
        %259 = vadd.xlane.f32.xlu0 %v258
        %v260 = vpop.xlane.xlu0 %259
        %v261 = vrcp.pop 32.0
        %v262 = vmul.f32 %v260, %v261
        %v263 = vsub.f32 %v254, %v262
        %v264 = vmul.f32 %v263, %v263
        %v265 = vsel %vm257, %v264, 0.0
        %266 = vadd.xlane.f32.xlu0 %v265
        %v267 = vpop.xlane.xlu0 %266
        %v268 = vmul.f32 %v267, %v261
        %v269 = vadd.f32 %v268, 1e-05
        %v270 = vrsqrt.pop %v269
        %v271 = vmul.f32 %v263, %v270
        %v273 = vlaneseq
        %v274 = vshrl.u32 %v273, 7
        %v275 = vsub.s32 0, %v274
        %v276 = vrot.slane %v255, %v275
        %v278 = vmul.f32 %v271, %v276
        %v280 = vlaneseq
        %v281 = vshrl.u32 %v280, 7
        %v282 = vsub.s32 0, %v281
        %v283 = vrot.slane %v256, %v282
        %v285 = vadd.f32 %v278, %v283
        %286 = vst.msk [vmem:[%s250] sm:$0xff] %vm257, %v285
        %s287 = sand.u32 %s120, 1
        %s288 = scalar_lea.sflag [#allocation4], %s287
        %s289 = sand.u32 %s120, 1
        %s290 = smul.addr %s289, 8
        %s291 = scalar_lea.vmem [#allocation10], %s290
        // Predicated region
        $region53: #{vision_transformer.6} parent=35 // pred_check
          %p292 = pneg %p130
        $region54: #{vision_transformer.6} parent=35 // pred_check_branch
          %294 = sbr.rel (%p292) target = $region56
        $region55: #{vision_transformer.6} parent=35 // pred_region
          %s296 = ssub.s32 128, 128
          %297 = vsyncadd %s288, %s296
          %s298 = smul.addr %s23, 128
          %s299 = scalar_lea.hbm %s4, %s298
          %s301 = sshll.u32 %s291, 4
          %s302 = int_to_ptr.vmem [resolvable:$true] %s301
          %304 = dma.vmem_to_hbm [thread:$0]  %s302, 128, %s299, %s288
        $region56: #{vision_transformer.6} parent=35 // pred_fallthru
          _
      $region36: #{vision_transformer.6} parent=5 // pred_fallthru
        _
      %p305 = scmp.le.s32.totalorder 2, %s18
      // Predicated region
      $region57: #{vision_transformer.6} parent=5 // pred_check
        %p306 = pneg %p305
      $region58: #{vision_transformer.6} parent=5 // pred_check_branch
        %308 = sbr.rel (%p306) target = $region60
      $region59: #{vision_transformer.6} parent=5 // pred_region
        %s309 = ssub.s32 %s18, 2
        // Predicated region
        $region61: #{vision_transformer.6} parent=59 // pred_check
          %p310 = pneg %p136
        $region62: #{vision_transformer.6} parent=59 // pred_check_branch
          %312 = sbr.rel (%p310) target = $region64
        $region63: #{vision_transformer.6} parent=59 // pred_region
          %s313 = sand.u32 %s121, 1
          %s314 = scalar_lea.sflag [#allocation4], %s313
          %s315 = sand.u32 %s121, 1
          %s316 = smul.addr %s315, 8
          %s317 = scalar_lea.vmem [#allocation10], %s316
          %318 = dma.done %s314, 128
        $region64: #{vision_transformer.6} parent=59 // pred_fallthru
          _
      $region60: #{vision_transformer.6} parent=5 // pred_fallthru
        _
    $region6: #{vision_transformer.6} parent=1 // loop_footer
      %s22 = sadd.s32 1, %s18
    $region7: #{vision_transformer.6} parent=1 // loop_footer_branch
      %17 = sbr.rel target = $region3
    $region8: #{vision_transformer.6} parent=1 // loop_exit
      _
    %319 = vsyncpa [#allocation3], 1
    %s320 = scalar_lea.sflag [#allocation3], 1
    %321 = vsyncpa %s320, 1
    %322 = vsyncpa [#allocation6], 1
    %323 = vsyncpa [#allocation9], 1
    %324 = vsyncpa [#allocation4], 1
    %s325 = scalar_lea.sflag [#allocation4], 1
    %326 = vsyncpa %s325, 1

// kernel: vision_transformer.9
$region0: #{vision_transformer.9}
  #allocation0 [shape = 'u32[]', space=smem, size = 0x4, offset = 0x4, fixed_abs, tag = 'smem constant byte address 0x4 - core index']
  #allocation1 [shape = 'u32[144,128]{1,0:T(1,128)}', space=vmem, size = 0x12000, scoped, tag = 'internal scratch']
  %s0 = inlined_call_operand.hbm [shape: f32[2,32], index: 0, kind: input, shape index: {}]
  %s1 = inlined_call_operand.hbm [shape: f32[1,32], index: 1, kind: input, shape index: {}]
  %s2 = inlined_call_operand.hbm [shape: f32[1,32], index: 2, kind: input, shape index: {}]
  %s3 = inlined_call_operand.hbm [shape: bf16[32,16], index: 3, kind: input, shape index: {}]
  %s4 = inlined_call_operand.hbm [shape: f32[2,16], index: 4, kind: output, shape index: {}]
  %s5 = sld [smem:[#allocation0]]
  $region42: #{vision_transformer.9} parent=0
    _
  %s7 = ssub.s32 1, %s5
  %s8 = scalar_select 0, %s7, %s5
  $region1: #{vision_transformer.9} parent=0
    #allocation2 [shape = 'u8[1024]{0}', space=vmem, size = 0x400, scoped, tag = 'input window, operand 0, single buffered']
    #allocation3 [shape = 's32[1]{0}', space=sflag, size = 0x4, scoped, tag = 'scoped memory for vision_transformer.9']
    #allocation4 [shape = 's32[1]{0}', space=sflag, size = 0x4, scoped, tag = 'scoped memory for vision_transformer.9']
    #allocation5 [shape = 'u8[512]{0}', space=vmem, size = 0x400, scoped, tag = 'input window, operand 1, single buffered']
    #allocation6 [shape = 's32[1]{0}', space=sflag, size = 0x4, scoped, tag = 'scoped memory for vision_transformer.9']
    #allocation7 [shape = 'u8[512]{0}', space=vmem, size = 0x400, scoped, tag = 'input window, operand 2, single buffered']
    #allocation8 [shape = 'u8[8192]{0}', space=vmem, size = 0x2000, scoped, tag = 'input window, operand 3, single buffered']
    #allocation9 [shape = 's32[1]{0}', space=sflag, size = 0x4, scoped, tag = 'scoped memory for vision_transformer.9']
    #allocation10 [shape = 'u8[1024]{0}', space=vmem, size = 0x400, scoped, tag = 'output window, operand 0, single buffered']
    %9 = vsyncpa [#allocation3], 0
    %10 = vsyncpa [#allocation6], 0
    %11 = vsyncpa [#allocation9], 0
    %12 = vsyncpa [#allocation4], 0
    // Predicated region
    $region2: #{vision_transformer.9} parent=1 // pred_check
      _
    $region3: #{vision_transformer.9} parent=1 // pred_check_branch
      %14 = sbr.rel (0) target = $region5
    $region4: #{vision_transformer.9} parent=1 // pred_region
      %s16 = ssub.s32 32, 32
      %17 = vsyncadd [#allocation3], %s16
      %s19 = sshll.u32 [#allocation2], 4
      %s20 = int_to_ptr.vmem [resolvable:$true] %s19
      %22 = dma.hbm_to_vmem [thread:$0]  %s0, 32, %s20, [#allocation3]
    $region5: #{vision_transformer.9} parent=1 // pred_fallthru
      _
    // Predicated region
    $region6: #{vision_transformer.9} parent=1 // pred_check
      _
    $region7: #{vision_transformer.9} parent=1 // pred_check_branch
      %24 = sbr.rel (0) target = $region9
    $region8: #{vision_transformer.9} parent=1 // pred_region
      %s26 = ssub.s32 16, 16
      %27 = vsyncadd [#allocation6], %s26
      %s29 = sshll.u32 [#allocation5], 4
      %s30 = int_to_ptr.vmem [resolvable:$true] %s29
      %32 = dma.hbm_to_vmem [thread:$0]  %s1, 16, %s30, [#allocation6]
    $region9: #{vision_transformer.9} parent=1 // pred_fallthru
      _
    // Predicated region
    $region10: #{vision_transformer.9} parent=1 // pred_check
      _
    $region11: #{vision_transformer.9} parent=1 // pred_check_branch
      %34 = sbr.rel (0) target = $region13
    $region12: #{vision_transformer.9} parent=1 // pred_region
      %s36 = ssub.s32 16, 16
      %37 = vsyncadd [#allocation6], %s36
      %s39 = sshll.u32 [#allocation7], 4
      %s40 = int_to_ptr.vmem [resolvable:$true] %s39
      %42 = dma.hbm_to_vmem [thread:$0]  %s2, 16, %s40, [#allocation6]
    $region13: #{vision_transformer.9} parent=1 // pred_fallthru
      _
    // Predicated region
    $region14: #{vision_transformer.9} parent=1 // pred_check
      _
    $region15: #{vision_transformer.9} parent=1 // pred_check_branch
      %44 = sbr.rel (0) target = $region17
    $region16: #{vision_transformer.9} parent=1 // pred_region
      %s46 = ssub.s32 256, 256
      %47 = vsyncadd [#allocation9], %s46
      %s48 = sshll.u32 [#allocation8], 4
      %s49 = int_to_ptr.vmem [resolvable:$true] %s48
      %54 = dma.hbm_to_vmem [thread:$0]  %s3, 256, %s49, [#allocation9], 64, 64, 4
    $region17: #{vision_transformer.9} parent=1 // pred_fallthru
      _
    // Predicated region
    $region18: #{vision_transformer.9} parent=1 // pred_check
      _
    $region19: #{vision_transformer.9} parent=1 // pred_check_branch
      %56 = sbr.rel (0) target = $region21
    $region20: #{vision_transformer.9} parent=1 // pred_region
      %57 = dma.done [#allocation3], 32
    $region21: #{vision_transformer.9} parent=1 // pred_fallthru
      _
    // Predicated region
    $region22: #{vision_transformer.9} parent=1 // pred_check
      _
    $region23: #{vision_transformer.9} parent=1 // pred_check_branch
      %59 = sbr.rel (0) target = $region25
    $region24: #{vision_transformer.9} parent=1 // pred_region
      %60 = dma.done [#allocation6], 16
    $region25: #{vision_transformer.9} parent=1 // pred_fallthru
      _
    // Predicated region
    $region26: #{vision_transformer.9} parent=1 // pred_check
      _
    $region27: #{vision_transformer.9} parent=1 // pred_check_branch
      %62 = sbr.rel (0) target = $region29
    $region28: #{vision_transformer.9} parent=1 // pred_region
      %63 = dma.done [#allocation6], 16
    $region29: #{vision_transformer.9} parent=1 // pred_fallthru
      _
    // Predicated region
    $region30: #{vision_transformer.9} parent=1 // pred_check
      _
    $region31: #{vision_transformer.9} parent=1 // pred_check_branch
      %65 = sbr.rel (0) target = $region33
    $region32: #{vision_transformer.9} parent=1 // pred_region
      %66 = dma.done [#allocation9], 256
    $region33: #{vision_transformer.9} parent=1 // pred_fallthru
      _
    %v68 = vld [vmem:[#allocation2] sm:$0x3]
    %v69 = vld [vmem:[#allocation5] sm:$0x1]
    %v70 = vld [vmem:[#allocation7] sm:$0x1]
    %vm71 = vcmask 254976
    %v72 = vsel %vm71, %v68, 0.0
    %73 = vadd.xlane.f32.xlu0 %v72
    %v74 = vpop.xlane.xlu0 %73
    %v75 = vrcp.pop 32.0
    %v76 = vmul.f32 %v74, %v75
    %v77 = vsub.f32 %v68, %v76
    %v78 = vmul.f32 %v77, %v77
    %v79 = vsel %vm71, %v78, 0.0
    %80 = vadd.xlane.f32.xlu0 %v79
    %v81 = vpop.xlane.xlu0 %80
    %v82 = vmul.f32 %v81, %v75
    %v83 = vadd.f32 %v82, 1e-05
    %v84 = vrsqrt.pop %v83
    %v85 = vmul.f32 %v77, %v84
    %v87 = vlaneseq
    %v88 = vshrl.u32 %v87, 7
    %v89 = vsub.s32 0, %v88
    %v90 = vrot.slane %v69, %v89
    %v92 = vmul.f32 %v85, %v90
    %v94 = vlaneseq
    %v95 = vshrl.u32 %v94, 7
    %v96 = vsub.s32 0, %v95
    %v97 = vrot.slane %v70, %v96
    %v99 = vadd.f32 %v92, %v97
    %v100 = vpack.c.bf16 %v99, %v99
    %v101 = vld [vmem:[#allocation8] sm:$0xf]
    %v102 = vld [vmem:[#allocation8 + $0x4] sm:$0xf]
    %v103 = vld [vmem:[#allocation8 + $0x8] sm:$0xf]
    %v104 = vld [vmem:[#allocation8 + $0xc] sm:$0xf]
    %v109 = vunpack.c.l.b16 %v101
    %v110 = vunpack.c.l.b16 %v102
    %v111 = vunpack.c.l.b16 %v103
    %v112 = vunpack.c.l.b16 %v104
    %v113 = vpack.c.b16 %v110, %v109
    %v114 = vpack.c.b16 %v112, %v111
    %vm117 = vcmask 261120
    %v119 = vsel %vm117, %v100, 0
    %121 = vmatprep.subr.bf16.mxu0 0
    %122 = vmatpush1.bf16.msra.mxu0 %v113
    %123 = vmatprep.subr.bf16.mxu0 0
    %124 = vmatpush1.bf16.msra.mxu0 %v114
    %125 = vmatprep.subr.bf16.mxu0 0
    %126 = vmatpush1.bf16.msra.mxu0 0
    %127 = vmatprep.subr.bf16.mxu0 0
    %128 = vmatpush1.bf16.msra.mxu0 0
    %129 = vmatprep.subr.bf16.mxu0 0
    %130 = vmatpush1.bf16.msra.mxu0 0
    %131 = vmatprep.subr.bf16.mxu0 0
    %132 = vmatpush1.bf16.msra.mxu0 0
    %133 = vmatprep.subr.bf16.mxu0 0
    %134 = vmatpush1.bf16.msra.mxu0 0
    %135 = vmatprep.subr.bf16.mxu0 0
    %136 = vmatpush1.bf16.msra.mxu0 0
    %137 = vmatprep.subr.bf16.mxu0 0
    %138 = vmatpush1.bf16.msra.mxu0 0
    %139 = vmatprep.subr.bf16.mxu0 0
    %140 = vmatpush1.bf16.msra.mxu0 0
    %141 = vmatprep.subr.bf16.mxu0 0
    %142 = vmatpush1.bf16.msra.mxu0 0
    %143 = vmatprep.subr.bf16.mxu0 0
    %144 = vmatpush1.bf16.msra.mxu0 0
    %145 = vmatprep.subr.bf16.mxu0 0
    %146 = vmatpush1.bf16.msra.mxu0 0
    %147 = vmatprep.subr.bf16.mxu0 0
    %148 = vmatpush1.bf16.msra.mxu0 0
    %149 = vmatprep.subr.bf16.mxu0 0
    %150 = vmatpush1.bf16.msra.mxu0 0
    %151 = vmatprep.subr.bf16.mxu0 0
    %152 = vmatpush1.bf16.msra.mxu0 0
    %153 = vmatprep.mubr.bf16.mxu0 0
    %154 = vmatmul.mubr.bf16.gmra.mrb[0].mxu0 %v119
    %v155 = vpop.f32.mrb[0].mxu0
    %v156 = vadd.f32 0.0, %v155
    %v157 = vpop.f32.mrb[0].mxu0
    %v158 = vpop.f32.mrb[0].mxu0
    %v159 = vpop.f32.mrb[0].mxu0
    %160 = vdwg.mxu0
    %vm161 = vcmask 123904
    %162 = vst.msk [vmem:[#allocation10] sm:$0x3] %vm161, %v156
    // Predicated region
    $region34: #{vision_transformer.9} parent=1 // pred_check
      _
    $region35: #{vision_transformer.9} parent=1 // pred_check_branch
      %164 = sbr.rel (0) target = $region37
    $region36: #{vision_transformer.9} parent=1 // pred_region
      %s166 = ssub.s32 32, 32
      %167 = vsyncadd [#allocation4], %s166
      %s169 = sshll.u32 [#allocation10], 4
      %s170 = int_to_ptr.vmem [resolvable:$true] %s169
      %172 = dma.vmem_to_hbm [thread:$0]  %s170, 32, %s4, [#allocation4]
    $region37: #{vision_transformer.9} parent=1 // pred_fallthru
      _
    // Predicated region
    $region38: #{vision_transformer.9} parent=1 // pred_check
      _
    $region39: #{vision_transformer.9} parent=1 // pred_check_branch
      %174 = sbr.rel (0) target = $region41
    $region40: #{vision_transformer.9} parent=1 // pred_region
      %175 = dma.done [#allocation4], 32
    $region41: #{vision_transformer.9} parent=1 // pred_fallthru
      _
    %176 = vsyncpa [#allocation3], 1
    %177 = vsyncpa [#allocation6], 1
    %178 = vsyncpa [#allocation9], 1
    %179 = vsyncpa [#allocation4], 1

// kernel: vision_transformer.5
$region0: #{vision_transformer.5}
  #allocation0 [shape = 'u32[]', space=smem, size = 0x4, offset = 0x4, fixed_abs, tag = 'smem constant byte address 0x4 - core index']
  #allocation1 [shape = 'u32[144,128]{1,0:T(1,128)}', space=vmem, size = 0x12000, scoped, tag = 'internal scratch']
  %s0 = inlined_call_operand.hbm [shape: bf16[8,256], index: 0, kind: input, shape index: {}]
  %s1 = inlined_call_operand.hbm [shape: bf16[256,32], index: 1, kind: input, shape index: {}]
  %s2 = inlined_call_operand.hbm [shape: bf16[8,32], index: 2, kind: output, shape index: {}]
  %s3 = sld [smem:[#allocation0]]
  $region26: #{vision_transformer.5} parent=0
    _
  %s5 = ssub.s32 1, %s3
  %s6 = scalar_select 0, %s5, %s3
  $region1: #{vision_transformer.5} parent=0
    #allocation2 [shape = 'u8[4096]{0}', space=vmem, size = 0x1000, scoped, tag = 'input window, operand 0, single buffered']
    #allocation3 [shape = 's32[1]{0}', space=sflag, size = 0x4, scoped, tag = 'scoped memory for vision_transformer.5']
    #allocation4 [shape = 's32[1]{0}', space=sflag, size = 0x4, scoped, tag = 'scoped memory for vision_transformer.5']
    #allocation5 [shape = 'u8[65536]{0}', space=vmem, size = 0x10000, scoped, tag = 'input window, operand 1, single buffered']
    #allocation6 [shape = 's32[1]{0}', space=sflag, size = 0x4, scoped, tag = 'scoped memory for vision_transformer.5']
    #allocation7 [shape = 'u8[2048]{0}', space=vmem, size = 0x800, scoped, tag = 'output window, operand 0, single buffered']
    %7 = vsyncpa [#allocation3], 0
    %8 = vsyncpa [#allocation6], 0
    %9 = vsyncpa [#allocation4], 0
    // Predicated region
    $region2: #{vision_transformer.5} parent=1 // pred_check
      _
    $region3: #{vision_transformer.5} parent=1 // pred_check_branch
      %11 = sbr.rel (0) target = $region5
    $region4: #{vision_transformer.5} parent=1 // pred_region
      %s13 = ssub.s32 128, 128
      %14 = vsyncadd [#allocation3], %s13
      %s16 = sshll.u32 [#allocation2], 4
      %s17 = int_to_ptr.vmem [resolvable:$true] %s16
      %19 = dma.hbm_to_vmem [thread:$0]  %s0, 128, %s17, [#allocation3]
    $region5: #{vision_transformer.5} parent=1 // pred_fallthru
      _
    // Predicated region
    $region6: #{vision_transformer.5} parent=1 // pred_check
      _
    $region7: #{vision_transformer.5} parent=1 // pred_check_branch
      %21 = sbr.rel (0) target = $region9
    $region8: #{vision_transformer.5} parent=1 // pred_region
      %s23 = ssub.s32 2048, 2048
      %24 = vsyncadd [#allocation6], %s23
      %s25 = sshll.u32 [#allocation5], 4
      %s26 = int_to_ptr.vmem [resolvable:$true] %s25
      %31 = dma.hbm_to_vmem [thread:$0]  %s1, 2048, %s26, [#allocation6], 64, 64, 4
    $region9: #{vision_transformer.5} parent=1 // pred_fallthru
      _
    // Predicated region
    $region10: #{vision_transformer.5} parent=1 // pred_check
      _
    $region11: #{vision_transformer.5} parent=1 // pred_check_branch
      %33 = sbr.rel (0) target = $region13
    $region12: #{vision_transformer.5} parent=1 // pred_region
      %34 = dma.done [#allocation3], 128
    $region13: #{vision_transformer.5} parent=1 // pred_fallthru
      _
    // Predicated region
    $region14: #{vision_transformer.5} parent=1 // pred_check
      _
    $region15: #{vision_transformer.5} parent=1 // pred_check_branch
      %36 = sbr.rel (0) target = $region17
    $region16: #{vision_transformer.5} parent=1 // pred_region
      %37 = dma.done [#allocation6], 2048
    $region17: #{vision_transformer.5} parent=1 // pred_fallthru
      _
    %v39 = vld [vmem:[#allocation2] sm:$0xff]
    %v40 = vld [vmem:[#allocation5] sm:$0xf]
    %v41 = vld [vmem:[#allocation5 + $0x4] sm:$0xf]
    %v42 = vld [vmem:[#allocation5 + $0x8] sm:$0xf]
    %v43 = vld [vmem:[#allocation5 + $0xc] sm:$0xf]
    %v44 = vld [vmem:[#allocation5 + $0x10] sm:$0xf]
    %v45 = vld [vmem:[#allocation5 + $0x14] sm:$0xf]
    %v46 = vld [vmem:[#allocation5 + $0x18] sm:$0xf]
    %v47 = vld [vmem:[#allocation5 + $0x1c] sm:$0xf]
    %v48 = vld [vmem:[#allocation5 + $0x20] sm:$0xf]
    %v49 = vld [vmem:[#allocation5 + $0x24] sm:$0xf]
    %v50 = vld [vmem:[#allocation5 + $0x28] sm:$0xf]
    %v51 = vld [vmem:[#allocation5 + $0x2c] sm:$0xf]
    %v52 = vld [vmem:[#allocation5 + $0x30] sm:$0xf]
    %v53 = vld [vmem:[#allocation5 + $0x34] sm:$0xf]
    %v54 = vld [vmem:[#allocation5 + $0x38] sm:$0xf]
    %v55 = vld [vmem:[#allocation5 + $0x3c] sm:$0xf]
    %v56 = vld [vmem:[#allocation5 + $0x40] sm:$0xf]
    %v57 = vld [vmem:[#allocation5 + $0x44] sm:$0xf]
    %v58 = vld [vmem:[#allocation5 + $0x48] sm:$0xf]
    %v59 = vld [vmem:[#allocation5 + $0x4c] sm:$0xf]
    %v60 = vld [vmem:[#allocation5 + $0x50] sm:$0xf]
    %v61 = vld [vmem:[#allocation5 + $0x54] sm:$0xf]
    %v62 = vld [vmem:[#allocation5 + $0x58] sm:$0xf]
    %v63 = vld [vmem:[#allocation5 + $0x5c] sm:$0xf]
    %v64 = vld [vmem:[#allocation5 + $0x60] sm:$0xf]
    %v65 = vld [vmem:[#allocation5 + $0x64] sm:$0xf]
    %v66 = vld [vmem:[#allocation5 + $0x68] sm:$0xf]
    %v67 = vld [vmem:[#allocation5 + $0x6c] sm:$0xf]
    %v68 = vld [vmem:[#allocation5 + $0x70] sm:$0xf]
    %v69 = vld [vmem:[#allocation5 + $0x74] sm:$0xf]
    %v70 = vld [vmem:[#allocation5 + $0x78] sm:$0xf]
    %v71 = vld [vmem:[#allocation5 + $0x7c] sm:$0xf]
    %v73 = vunpack.c.l.b16 %v39
    %v74 = vunpack.c.h.b16 %v39
    %v75 = vpack.c.b16 %v73, %v73
    %v76 = vpack.c.b16 %v74, %v74
    %v111 = vunpack.c.l.b16 %v40
    %v112 = vunpack.c.l.b16 %v41
    %v113 = vunpack.c.l.b16 %v42
    %v114 = vunpack.c.l.b16 %v43
    %v115 = vunpack.c.l.b16 %v44
    %v116 = vunpack.c.l.b16 %v45
    %v117 = vunpack.c.l.b16 %v46
    %v118 = vunpack.c.l.b16 %v47
    %v119 = vunpack.c.l.b16 %v48
    %v120 = vunpack.c.l.b16 %v49
    %v121 = vunpack.c.l.b16 %v50
    %v122 = vunpack.c.l.b16 %v51
    %v123 = vunpack.c.l.b16 %v52
    %v124 = vunpack.c.l.b16 %v53
    %v125 = vunpack.c.l.b16 %v54
    %v126 = vunpack.c.l.b16 %v55
    %v127 = vunpack.c.l.b16 %v56
    %v128 = vunpack.c.l.b16 %v57
    %v129 = vunpack.c.l.b16 %v58
    %v130 = vunpack.c.l.b16 %v59
    %v131 = vunpack.c.l.b16 %v60
    %v132 = vunpack.c.l.b16 %v61
    %v133 = vunpack.c.l.b16 %v62
    %v134 = vunpack.c.l.b16 %v63
    %v135 = vunpack.c.l.b16 %v64
    %v136 = vunpack.c.l.b16 %v65
    %v137 = vunpack.c.l.b16 %v66
    %v138 = vunpack.c.l.b16 %v67
    %v139 = vunpack.c.l.b16 %v68
    %v140 = vunpack.c.l.b16 %v69
    %v141 = vunpack.c.l.b16 %v70
    %v142 = vunpack.c.l.b16 %v71
    %v143 = vpack.c.b16 %v112, %v111
    %v144 = vpack.c.b16 %v114, %v113
    %v145 = vpack.c.b16 %v116, %v115
    %v146 = vpack.c.b16 %v118, %v117
    %v147 = vpack.c.b16 %v120, %v119
    %v148 = vpack.c.b16 %v122, %v121
    %v149 = vpack.c.b16 %v124, %v123
    %v150 = vpack.c.b16 %v126, %v125
    %v151 = vpack.c.b16 %v128, %v127
    %v152 = vpack.c.b16 %v130, %v129
    %v153 = vpack.c.b16 %v132, %v131
    %v154 = vpack.c.b16 %v134, %v133
    %v155 = vpack.c.b16 %v136, %v135
    %v156 = vpack.c.b16 %v138, %v137
    %v157 = vpack.c.b16 %v140, %v139
    %v158 = vpack.c.b16 %v142, %v141
    %175 = vmatprep.subr.bf16.mxu0 0
    %176 = vmatpush1.bf16.msra.mxu0 %v143
    %177 = vmatprep.subr.bf16.mxu0 0
    %178 = vmatpush1.bf16.msra.mxu0 %v144
    %179 = vmatprep.subr.bf16.mxu0 0
    %180 = vmatpush1.bf16.msra.mxu0 %v145
    %181 = vmatprep.subr.bf16.mxu0 0
    %182 = vmatpush1.bf16.msra.mxu0 %v146
    %183 = vmatprep.subr.bf16.mxu0 0
    %184 = vmatpush1.bf16.msra.mxu0 %v147
    %185 = vmatprep.subr.bf16.mxu0 0
    %186 = vmatpush1.bf16.msra.mxu0 %v148
    %187 = vmatprep.subr.bf16.mxu0 0
    %188 = vmatpush1.bf16.msra.mxu0 %v149
    %189 = vmatprep.subr.bf16.mxu0 0
    %190 = vmatpush1.bf16.msra.mxu0 %v150
    %191 = vmatprep.subr.bf16.mxu0 0
    %192 = vmatpush1.bf16.msra.mxu0 %v151
    %193 = vmatprep.subr.bf16.mxu0 0
    %194 = vmatpush1.bf16.msra.mxu0 %v152
    %195 = vmatprep.subr.bf16.mxu0 0
    %196 = vmatpush1.bf16.msra.mxu0 %v153
    %197 = vmatprep.subr.bf16.mxu0 0
    %198 = vmatpush1.bf16.msra.mxu0 %v154
    %199 = vmatprep.subr.bf16.mxu0 0
    %200 = vmatpush1.bf16.msra.mxu0 %v155
    %201 = vmatprep.subr.bf16.mxu0 0
    %202 = vmatpush1.bf16.msra.mxu0 %v156
    %203 = vmatprep.subr.bf16.mxu0 0
    %204 = vmatpush1.bf16.msra.mxu0 %v157
    %205 = vmatprep.subr.bf16.mxu0 0
    %206 = vmatpush1.bf16.msra.mxu0 %v158
    %207 = vmatprep.mubr.bf16.mxu0 %v76
    %208 = vmatmul.mubr.bf16.gmra.mrb[0].mxu0 %v75
    %v209 = vpop.f32.mrb[0].mxu0
    %v210 = vadd.f32 0.0, %v209
    %v211 = vpop.f32.mrb[0].mxu0
    %v212 = vpop.f32.mrb[0].mxu0
    %v213 = vpop.f32.mrb[0].mxu0
    %214 = vdwg.mxu0
    %v215 = vpack.c.bf16 %v210, %v210
    %vm216 = vcmask 257024
    %217 = vst.msk [vmem:[#allocation7] sm:$0xf] %vm216, %v215
    // Predicated region
    $region18: #{vision_transformer.5} parent=1 // pred_check
      _
    $region19: #{vision_transformer.5} parent=1 // pred_check_branch
      %219 = sbr.rel (0) target = $region21
    $region20: #{vision_transformer.5} parent=1 // pred_region
      %s221 = ssub.s32 64, 64
      %222 = vsyncadd [#allocation4], %s221
      %s224 = sshll.u32 [#allocation7], 4
      %s225 = int_to_ptr.vmem [resolvable:$true] %s224
      %227 = dma.vmem_to_hbm [thread:$0]  %s225, 64, %s2, [#allocation4]
    $region21: #{vision_transformer.5} parent=1 // pred_fallthru
      _
    // Predicated region
    $region22: #{vision_transformer.5} parent=1 // pred_check
      _
    $region23: #{vision_transformer.5} parent=1 // pred_check_branch
      %229 = sbr.rel (0) target = $region25
    $region24: #{vision_transformer.5} parent=1 // pred_region
      %230 = dma.done [#allocation4], 64
    $region25: #{vision_transformer.5} parent=1 // pred_fallthru
      _
    %231 = vsyncpa [#allocation3], 1
    %232 = vsyncpa [#allocation6], 1
    %233 = vsyncpa [#allocation4], 1

// kernel: vision_transformer.7
$region0: #{vision_transformer.7}
  #allocation0 [shape = 'u32[]', space=smem, size = 0x4, offset = 0x4, fixed_abs, tag = 'smem constant byte address 0x4 - core index']
  #allocation1 [shape = 'u32[144,128]{1,0:T(1,128)}', space=vmem, size = 0x12000, scoped, tag = 'internal scratch']
  %s0 = inlined_call_operand.hbm [shape: f32[2,8,32], index: 0, kind: input, shape index: {}, may-alias: {0,13}]
  %s1 = inlined_call_operand.hbm [shape: f32[1,32], index: 1, kind: input, shape index: {}]
  %s2 = inlined_call_operand.hbm [shape: f32[1,32], index: 2, kind: input, shape index: {}]
  %s3 = inlined_call_operand.hbm [shape: bf16[96,32], index: 3, kind: input, shape index: {}]
  %s4 = inlined_call_operand.hbm [shape: f32[1,96], index: 4, kind: input, shape index: {}]
  %s5 = inlined_call_operand.hbm [shape: bf16[32,32], index: 5, kind: input, shape index: {}]
  %s6 = inlined_call_operand.hbm [shape: f32[1,32], index: 6, kind: input, shape index: {}]
  %s7 = inlined_call_operand.hbm [shape: f32[1,32], index: 7, kind: input, shape index: {}]
  %s8 = inlined_call_operand.hbm [shape: f32[1,32], index: 8, kind: input, shape index: {}]
  %s9 = inlined_call_operand.hbm [shape: bf16[128,32], index: 9, kind: input, shape index: {}]
  %s10 = inlined_call_operand.hbm [shape: f32[1,128], index: 10, kind: input, shape index: {}]
  %s11 = inlined_call_operand.hbm [shape: bf16[32,128], index: 11, kind: input, shape index: {}]
  %s12 = inlined_call_operand.hbm [shape: f32[1,32], index: 12, kind: input, shape index: {}]
  %s13 = inlined_call_operand.hbm [shape: f32[2,8,32], index: 13, kind: output, shape index: {}, may-alias: {0,13}]
  %s14 = sld [smem:[#allocation0]]
  $region137: #{vision_transformer.7} parent=0
    _
  %s16 = ssub.s32 1, %s14
  %s17 = scalar_select 0, %s16, %s14
  $region1: #{vision_transformer.7} parent=0
    #allocation2 [shape = 'u8[8192]{0}', space=vmem, size = 0x2000, scoped, tag = 'input window, operand 0']
    #allocation3 [shape = 's32[2]{0}', space=sflag, size = 0x8, scoped, tag = 'scoped memory for vision_transformer.7']
    #allocation4 [shape = 's32[2]{0}', space=sflag, size = 0x8, scoped, tag = 'scoped memory for vision_transformer.7']
    #allocation5 [shape = 'u8[512]{0}', space=vmem, size = 0x400, scoped, tag = 'input window, operand 1, single buffered']
    #allocation6 [shape = 's32[1]{0}', space=sflag, size = 0x4, scoped, tag = 'scoped memory for vision_transformer.7']
    #allocation7 [shape = 'u8[512]{0}', space=vmem, size = 0x400, scoped, tag = 'input window, operand 2, single buffered']
    #allocation8 [shape = 'u8[24576]{0}', space=vmem, size = 0x6000, scoped, tag = 'input window, operand 3, single buffered']
    #allocation9 [shape = 's32[1]{0}', space=sflag, size = 0x4, scoped, tag = 'scoped memory for vision_transformer.7']
    #allocation10 [shape = 'u8[512]{0}', space=vmem, size = 0x400, scoped, tag = 'input window, operand 4, single buffered']
    #allocation11 [shape = 'u8[8192]{0}', space=vmem, size = 0x2000, scoped, tag = 'input window, operand 5, single buffered']
    #allocation12 [shape = 's32[1]{0}', space=sflag, size = 0x4, scoped, tag = 'scoped memory for vision_transformer.7']
    #allocation13 [shape = 'u8[512]{0}', space=vmem, size = 0x400, scoped, tag = 'input window, operand 6, single buffered']
    #allocation14 [shape = 'u8[512]{0}', space=vmem, size = 0x400, scoped, tag = 'input window, operand 7, single buffered']
    #allocation15 [shape = 's32[1]{0}', space=sflag, size = 0x4, scoped, tag = 'scoped memory for vision_transformer.7']
    #allocation16 [shape = 'u8[512]{0}', space=vmem, size = 0x400, scoped, tag = 'input window, operand 8, single buffered']
    #allocation17 [shape = 'u8[32768]{0}', space=vmem, size = 0x8000, scoped, tag = 'input window, operand 9, single buffered']
    #allocation18 [shape = 's32[1]{0}', space=sflag, size = 0x4, scoped, tag = 'scoped memory for vision_transformer.7']
    #allocation19 [shape = 'u8[512]{0}', space=vmem, size = 0x400, scoped, tag = 'input window, operand 10, single buffered']
    #allocation20 [shape = 'u8[8192]{0}', space=vmem, size = 0x2000, scoped, tag = 'input window, operand 11, single buffered']
    #allocation21 [shape = 's32[1]{0}', space=sflag, size = 0x4, scoped, tag = 'scoped memory for vision_transformer.7']
    #allocation22 [shape = 'u8[512]{0}', space=vmem, size = 0x400, scoped, tag = 'input window, operand 12, single buffered']
    #allocation23 [shape = 'u8[8192]{0}', space=vmem, size = 0x2000, scoped, tag = 'output window, operand 0']
    %18 = vsyncpa [#allocation3], 0
    %s19 = scalar_lea.sflag [#allocation3], 1
    %20 = vsyncpa %s19, 0
    %21 = vsyncpa [#allocation6], 0
    %22 = vsyncpa [#allocation9], 0
    %23 = vsyncpa [#allocation12], 0
    %24 = vsyncpa [#allocation15], 0
    %25 = vsyncpa [#allocation18], 0
    %26 = vsyncpa [#allocation21], 0
    %27 = vsyncpa [#allocation4], 0
    %s28 = scalar_lea.sflag [#allocation4], 1
    %29 = vsyncpa %s28, 0
    loop: start=0, step=1, limit=4
    $region2: #{vision_transformer.7} parent=1 // loop_pre_header
      _
    $region3: #{vision_transformer.7} parent=1 // loop_header
      %s31 = sphi 0, %s35
      %p32 = scmp.ge.s32.totalorder %s31, 4
      %s41 = sphi 0, %s43
      %s44 = sphi 0, %s41
      %s45 = sphi 0, %s44
      %s61 = sphi 0, %s45
      %s65 = sphi 0, %s65
      %s67 = sphi 0, %s65
      %s68 = sphi 0, %s67
      %s82 = sphi 0, %s68
      %s86 = sphi 0, %s86
      %s88 = sphi 0, %s86
      %s89 = sphi 0, %s88
      %s103 = sphi 0, %s89
      %s107 = sphi 0, %s107
      %s109 = sphi 0, %s107
      %s110 = sphi 0, %s109
      %s124 = sphi 0, %s110
      %s128 = sphi 0, %s128
      %s130 = sphi 0, %s128
      %s131 = sphi 0, %s130
      %s145 = sphi 0, %s131
      %s149 = sphi 0, %s149
      %s151 = sphi 0, %s149
      %s152 = sphi 0, %s151
      %s166 = sphi 0, %s152
      %s170 = sphi 0, %s170
      %s172 = sphi 0, %s170
      %s173 = sphi 0, %s172
      %s187 = sphi 0, %s173
      %s191 = sphi 0, %s191
      %s193 = sphi 0, %s191
      %s194 = sphi 0, %s193
      %s208 = sphi 0, %s194
      %s212 = sphi 0, %s212
      %s214 = sphi 0, %s212
      %s215 = sphi 0, %s214
      %s229 = sphi 0, %s215
      %s233 = sphi 0, %s233
      %s235 = sphi 0, %s233
      %s236 = sphi 0, %s235
      %s250 = sphi 0, %s236
      %s254 = sphi 0, %s254
      %s256 = sphi 0, %s254
      %s257 = sphi 0, %s256
      %s271 = sphi 0, %s257
      %s275 = sphi 0, %s275
      %s277 = sphi 0, %s275
      %s278 = sphi 0, %s277
      %s292 = sphi 0, %s278
      %s296 = sphi 0, %s296
      %s298 = sphi 0, %s296
      %s299 = sphi 0, %s298
      %s313 = sphi 0, %s299
      %s319 = sphi 0, %s321
      %s322 = sphi 0, %s319
      %s323 = sphi 0, %s322
      %s339 = sphi 0, %s323
    $region4: #{vision_transformer.7} parent=1 // loop_header_branch
      %34 = sbr.rel (%p32) target = $region8
    $region5: #{vision_transformer.7} parent=1 // loop_body
      %s36 = ssub.s32 %s31, 1
      %s37 = ssub.s32 %s31, 2
      %s38 = sadd.s32 %s31, 1
      %s39 = ssub.s32 %s31, %s38
      %p40 = scmp.eq.s32.totalorder %s39, 0
      %s42 = sadd.s32 %s41, 1
      %s43 = scalar_select %p40, %s41, %s42
      %p46 = pneg %p40
      %p47 = scmp.eq.s32.totalorder %s31, 1
      %p48 = por %p46, %p47
      %p49 = scmp.ne.s32.totalorder %s41, %s44
      %p50 = scmp.eq.s32.totalorder %s31, 0
      %p51 = por %p49, %p50
      %p52 = scmp.ne.s32.totalorder %s41, %s44
      %p53 = scmp.eq.s32.totalorder %s36, 1
      %p54 = por %p52, %p53
      %p55 = scmp.ne.s32.totalorder %s44, %s45
      %p56 = scmp.eq.s32.totalorder %s36, 0
      %p57 = por %p55, %p56
      %p58 = scmp.ne.s32.totalorder %s44, %s45
      %p59 = scmp.eq.s32.totalorder %s37, 1
      %p60 = por %p58, %p59
      %p62 = scmp.ne.s32.totalorder %s45, %s61
      %p63 = scmp.eq.s32.totalorder %s37, 0
      %p64 = por %p62, %p63
      %s66 = sadd.s32 %s65, 1
      %p69 = scmp.eq.s32.totalorder %s31, 1
      %p70 = scmp.ne.s32.totalorder %s65, %s67
      %p71 = scmp.eq.s32.totalorder %s31, 0
      %p72 = por %p70, %p71
      %p73 = scmp.ne.s32.totalorder %s65, %s67
      %p74 = scmp.eq.s32.totalorder %s36, 1
      %p75 = por %p73, %p74
      %p76 = scmp.ne.s32.totalorder %s67, %s68
      %p77 = scmp.eq.s32.totalorder %s36, 0
      %p78 = por %p76, %p77
      %p79 = scmp.ne.s32.totalorder %s67, %s68
      %p80 = scmp.eq.s32.totalorder %s37, 1
      %p81 = por %p79, %p80
      %p83 = scmp.ne.s32.totalorder %s68, %s82
      %p84 = scmp.eq.s32.totalorder %s37, 0
      %p85 = por %p83, %p84
      %s87 = sadd.s32 %s86, 1
      %p90 = scmp.eq.s32.totalorder %s31, 1
      %p91 = scmp.ne.s32.totalorder %s86, %s88
      %p92 = scmp.eq.s32.totalorder %s31, 0
      %p93 = por %p91, %p92
      %p94 = scmp.ne.s32.totalorder %s86, %s88
      %p95 = scmp.eq.s32.totalorder %s36, 1
      %p96 = por %p94, %p95
      %p97 = scmp.ne.s32.totalorder %s88, %s89
      %p98 = scmp.eq.s32.totalorder %s36, 0
      %p99 = por %p97, %p98
      %p100 = scmp.ne.s32.totalorder %s88, %s89
      %p101 = scmp.eq.s32.totalorder %s37, 1
      %p102 = por %p100, %p101
      %p104 = scmp.ne.s32.totalorder %s89, %s103
      %p105 = scmp.eq.s32.totalorder %s37, 0
      %p106 = por %p104, %p105
      %s108 = sadd.s32 %s107, 1
      %p111 = scmp.eq.s32.totalorder %s31, 1
      %p112 = scmp.ne.s32.totalorder %s107, %s109
      %p113 = scmp.eq.s32.totalorder %s31, 0
      %p114 = por %p112, %p113
      %p115 = scmp.ne.s32.totalorder %s107, %s109
      %p116 = scmp.eq.s32.totalorder %s36, 1
      %p117 = por %p115, %p116
      %p118 = scmp.ne.s32.totalorder %s109, %s110
      %p119 = scmp.eq.s32.totalorder %s36, 0
      %p120 = por %p118, %p119
      %p121 = scmp.ne.s32.totalorder %s109, %s110
      %p122 = scmp.eq.s32.totalorder %s37, 1
      %p123 = por %p121, %p122
      %p125 = scmp.ne.s32.totalorder %s110, %s124
      %p126 = scmp.eq.s32.totalorder %s37, 0
      %p127 = por %p125, %p126
      %s129 = sadd.s32 %s128, 1
      %p132 = scmp.eq.s32.totalorder %s31, 1
      %p133 = scmp.ne.s32.totalorder %s128, %s130
      %p134 = scmp.eq.s32.totalorder %s31, 0
      %p135 = por %p133, %p134
      %p136 = scmp.ne.s32.totalorder %s128, %s130
      %p137 = scmp.eq.s32.totalorder %s36, 1
      %p138 = por %p136, %p137
      %p139 = scmp.ne.s32.totalorder %s130, %s131
      %p140 = scmp.eq.s32.totalorder %s36, 0
      %p141 = por %p139, %p140
      %p142 = scmp.ne.s32.totalorder %s130, %s131
      %p143 = scmp.eq.s32.totalorder %s37, 1
      %p144 = por %p142, %p143
      %p146 = scmp.ne.s32.totalorder %s131, %s145
      %p147 = scmp.eq.s32.totalorder %s37, 0
      %p148 = por %p146, %p147
      %s150 = sadd.s32 %s149, 1
      %p153 = scmp.eq.s32.totalorder %s31, 1
      %p154 = scmp.ne.s32.totalorder %s149, %s151
      %p155 = scmp.eq.s32.totalorder %s31, 0
      %p156 = por %p154, %p155
      %p157 = scmp.ne.s32.totalorder %s149, %s151
      %p158 = scmp.eq.s32.totalorder %s36, 1
      %p159 = por %p157, %p158
      %p160 = scmp.ne.s32.totalorder %s151, %s152
      %p161 = scmp.eq.s32.totalorder %s36, 0
      %p162 = por %p160, %p161
      %p163 = scmp.ne.s32.totalorder %s151, %s152
      %p164 = scmp.eq.s32.totalorder %s37, 1
      %p165 = por %p163, %p164
      %p167 = scmp.ne.s32.totalorder %s152, %s166
      %p168 = scmp.eq.s32.totalorder %s37, 0
      %p169 = por %p167, %p168
      %s171 = sadd.s32 %s170, 1
      %p174 = scmp.eq.s32.totalorder %s31, 1
      %p175 = scmp.ne.s32.totalorder %s170, %s172
      %p176 = scmp.eq.s32.totalorder %s31, 0
      %p177 = por %p175, %p176
      %p178 = scmp.ne.s32.totalorder %s170, %s172
      %p179 = scmp.eq.s32.totalorder %s36, 1
      %p180 = por %p178, %p179
      %p181 = scmp.ne.s32.totalorder %s172, %s173
      %p182 = scmp.eq.s32.totalorder %s36, 0
      %p183 = por %p181, %p182
      %p184 = scmp.ne.s32.totalorder %s172, %s173
      %p185 = scmp.eq.s32.totalorder %s37, 1
      %p186 = por %p184, %p185
      %p188 = scmp.ne.s32.totalorder %s173, %s187
      %p189 = scmp.eq.s32.totalorder %s37, 0
      %p190 = por %p188, %p189
      %s192 = sadd.s32 %s191, 1
      %p195 = scmp.eq.s32.totalorder %s31, 1
      %p196 = scmp.ne.s32.totalorder %s191, %s193
      %p197 = scmp.eq.s32.totalorder %s31, 0
      %p198 = por %p196, %p197
      %p199 = scmp.ne.s32.totalorder %s191, %s193
      %p200 = scmp.eq.s32.totalorder %s36, 1
      %p201 = por %p199, %p200
      %p202 = scmp.ne.s32.totalorder %s193, %s194
      %p203 = scmp.eq.s32.totalorder %s36, 0
      %p204 = por %p202, %p203
      %p205 = scmp.ne.s32.totalorder %s193, %s194
      %p206 = scmp.eq.s32.totalorder %s37, 1
      %p207 = por %p205, %p206
      %p209 = scmp.ne.s32.totalorder %s194, %s208
      %p210 = scmp.eq.s32.totalorder %s37, 0
      %p211 = por %p209, %p210
      %s213 = sadd.s32 %s212, 1
      %p216 = scmp.eq.s32.totalorder %s31, 1
      %p217 = scmp.ne.s32.totalorder %s212, %s214
      %p218 = scmp.eq.s32.totalorder %s31, 0
      %p219 = por %p217, %p218
      %p220 = scmp.ne.s32.totalorder %s212, %s214
      %p221 = scmp.eq.s32.totalorder %s36, 1
      %p222 = por %p220, %p221
      %p223 = scmp.ne.s32.totalorder %s214, %s215
      %p224 = scmp.eq.s32.totalorder %s36, 0
      %p225 = por %p223, %p224
      %p226 = scmp.ne.s32.totalorder %s214, %s215
      %p227 = scmp.eq.s32.totalorder %s37, 1
      %p228 = por %p226, %p227
      %p230 = scmp.ne.s32.totalorder %s215, %s229
      %p231 = scmp.eq.s32.totalorder %s37, 0
      %p232 = por %p230, %p231
      %s234 = sadd.s32 %s233, 1
      %p237 = scmp.eq.s32.totalorder %s31, 1
      %p238 = scmp.ne.s32.totalorder %s233, %s235
      %p239 = scmp.eq.s32.totalorder %s31, 0
      %p240 = por %p238, %p239
      %p241 = scmp.ne.s32.totalorder %s233, %s235
      %p242 = scmp.eq.s32.totalorder %s36, 1
      %p243 = por %p241, %p242
      %p244 = scmp.ne.s32.totalorder %s235, %s236
      %p245 = scmp.eq.s32.totalorder %s36, 0
      %p246 = por %p244, %p245
      %p247 = scmp.ne.s32.totalorder %s235, %s236
      %p248 = scmp.eq.s32.totalorder %s37, 1
      %p249 = por %p247, %p248
      %p251 = scmp.ne.s32.totalorder %s236, %s250
      %p252 = scmp.eq.s32.totalorder %s37, 0
      %p253 = por %p251, %p252
      %s255 = sadd.s32 %s254, 1
      %p258 = scmp.eq.s32.totalorder %s31, 1
      %p259 = scmp.ne.s32.totalorder %s254, %s256
      %p260 = scmp.eq.s32.totalorder %s31, 0
      %p261 = por %p259, %p260
      %p262 = scmp.ne.s32.totalorder %s254, %s256
      %p263 = scmp.eq.s32.totalorder %s36, 1
      %p264 = por %p262, %p263
      %p265 = scmp.ne.s32.totalorder %s256, %s257
      %p266 = scmp.eq.s32.totalorder %s36, 0
      %p267 = por %p265, %p266
      %p268 = scmp.ne.s32.totalorder %s256, %s257
      %p269 = scmp.eq.s32.totalorder %s37, 1
      %p270 = por %p268, %p269
      %p272 = scmp.ne.s32.totalorder %s257, %s271
      %p273 = scmp.eq.s32.totalorder %s37, 0
      %p274 = por %p272, %p273
      %s276 = sadd.s32 %s275, 1
      %p279 = scmp.eq.s32.totalorder %s31, 1
      %p280 = scmp.ne.s32.totalorder %s275, %s277
      %p281 = scmp.eq.s32.totalorder %s31, 0
      %p282 = por %p280, %p281
      %p283 = scmp.ne.s32.totalorder %s275, %s277
      %p284 = scmp.eq.s32.totalorder %s36, 1
      %p285 = por %p283, %p284
      %p286 = scmp.ne.s32.totalorder %s277, %s278
      %p287 = scmp.eq.s32.totalorder %s36, 0
      %p288 = por %p286, %p287
      %p289 = scmp.ne.s32.totalorder %s277, %s278
      %p290 = scmp.eq.s32.totalorder %s37, 1
      %p291 = por %p289, %p290
      %p293 = scmp.ne.s32.totalorder %s278, %s292
      %p294 = scmp.eq.s32.totalorder %s37, 0
      %p295 = por %p293, %p294
      %s297 = sadd.s32 %s296, 1
      %p300 = scmp.eq.s32.totalorder %s31, 1
      %p301 = scmp.ne.s32.totalorder %s296, %s298
      %p302 = scmp.eq.s32.totalorder %s31, 0
      %p303 = por %p301, %p302
      %p304 = scmp.ne.s32.totalorder %s296, %s298
      %p305 = scmp.eq.s32.totalorder %s36, 1
      %p306 = por %p304, %p305
      %p307 = scmp.ne.s32.totalorder %s298, %s299
      %p308 = scmp.eq.s32.totalorder %s36, 0
      %p309 = por %p307, %p308
      %p310 = scmp.ne.s32.totalorder %s298, %s299
      %p311 = scmp.eq.s32.totalorder %s37, 1
      %p312 = por %p310, %p311
      %p314 = scmp.ne.s32.totalorder %s299, %s313
      %p315 = scmp.eq.s32.totalorder %s37, 0
      %p316 = por %p314, %p315
      %s317 = ssub.s32 %s31, %s38
      %p318 = scmp.eq.s32.totalorder %s317, 0
      %s320 = sadd.s32 %s319, 1
      %s321 = scalar_select %p318, %s319, %s320
      %p324 = pneg %p318
      %p325 = scmp.eq.s32.totalorder %s31, 1
      %p326 = por %p324, %p325
      %p327 = scmp.ne.s32.totalorder %s319, %s322
      %p328 = scmp.eq.s32.totalorder %s31, 0
      %p329 = por %p327, %p328
      %p330 = scmp.ne.s32.totalorder %s319, %s322
      %p331 = scmp.eq.s32.totalorder %s36, 1
      %p332 = por %p330, %p331
      %p333 = scmp.ne.s32.totalorder %s322, %s323
      %p334 = scmp.eq.s32.totalorder %s36, 0
      %p335 = por %p333, %p334
      %p336 = scmp.ne.s32.totalorder %s322, %s323
      %p337 = scmp.eq.s32.totalorder %s37, 1
      %p338 = por %p336, %p337
      %p340 = scmp.ne.s32.totalorder %s323, %s339
      %p341 = scmp.eq.s32.totalorder %s37, 0
      %p342 = por %p340, %p341
      %p343 = scmp.le.s32.totalorder 1, %s31
      %p344 = scmp.lt.s32.totalorder %s31, 3
      %p345 = pnand %p343, %p344
      %p346 = pneg %p345
      // Predicated region
      $region9: #{vision_transformer.7} parent=5 // pred_check
        _
      $region10: #{vision_transformer.7} parent=5 // pred_check_branch
        %348 = sbr.rel (%p345) target = $region12
      $region11: #{vision_transformer.7} parent=5 // pred_region
        %s349 = ssub.s32 %s31, 1
        // Predicated region
        $region13: #{vision_transformer.7} parent=11 // pred_check
          %p350 = pneg %p78
        $region14: #{vision_transformer.7} parent=11 // pred_check_branch
          %352 = sbr.rel (%p350) target = $region16
        $region15: #{vision_transformer.7} parent=11 // pred_region
          %s354 = ssub.s32 16, 16
          %355 = vsyncadd [#allocation6], %s354
          %s357 = sshll.u32 [#allocation5], 4
          %s358 = int_to_ptr.vmem [resolvable:$true] %s357
          %360 = dma.hbm_to_vmem [thread:$0]  %s1, 16, %s358, [#allocation6]
        $region16: #{vision_transformer.7} parent=11 // pred_fallthru
          _
        // Predicated region
        $region17: #{vision_transformer.7} parent=11 // pred_check
          %p361 = pneg %p99
        $region18: #{vision_transformer.7} parent=11 // pred_check_branch
          %363 = sbr.rel (%p361) target = $region20
        $region19: #{vision_transformer.7} parent=11 // pred_region
          %s365 = ssub.s32 16, 16
          %366 = vsyncadd [#allocation6], %s365
          %s368 = sshll.u32 [#allocation7], 4
          %s369 = int_to_ptr.vmem [resolvable:$true] %s368
          %371 = dma.hbm_to_vmem [thread:$0]  %s2, 16, %s369, [#allocation6]
        $region20: #{vision_transformer.7} parent=11 // pred_fallthru
          _
        // Predicated region
        $region21: #{vision_transformer.7} parent=11 // pred_check
          %p372 = pneg %p120
        $region22: #{vision_transformer.7} parent=11 // pred_check_branch
          %374 = sbr.rel (%p372) target = $region24
        $region23: #{vision_transformer.7} parent=11 // pred_region
          %s376 = ssub.s32 768, 768
          %377 = vsyncadd [#allocation9], %s376
          %s378 = sshll.u32 [#allocation8], 4
          %s379 = int_to_ptr.vmem [resolvable:$true] %s378
          %384 = dma.hbm_to_vmem [thread:$0]  %s3, 768, %s379, [#allocation9], 64, 64, 4
        $region24: #{vision_transformer.7} parent=11 // pred_fallthru
          _
        // Predicated region
        $region25: #{vision_transformer.7} parent=11 // pred_check
          %p385 = pneg %p141
        $region26: #{vision_transformer.7} parent=11 // pred_check_branch
          %387 = sbr.rel (%p385) target = $region28
        $region27: #{vision_transformer.7} parent=11 // pred_region
          %s389 = ssub.s32 16, 16
          %390 = vsyncadd [#allocation9], %s389
          %s392 = sshll.u32 [#allocation10], 4
          %s393 = int_to_ptr.vmem [resolvable:$true] %s392
          %395 = dma.hbm_to_vmem [thread:$0]  %s4, 16, %s393, [#allocation9]
        $region28: #{vision_transformer.7} parent=11 // pred_fallthru
          _
        // Predicated region
        $region29: #{vision_transformer.7} parent=11 // pred_check
          %p396 = pneg %p162
        $region30: #{vision_transformer.7} parent=11 // pred_check_branch
          %398 = sbr.rel (%p396) target = $region32
        $region31: #{vision_transformer.7} parent=11 // pred_region
          %s400 = ssub.s32 256, 256
          %401 = vsyncadd [#allocation12], %s400
          %s402 = sshll.u32 [#allocation11], 4
          %s403 = int_to_ptr.vmem [resolvable:$true] %s402
          %408 = dma.hbm_to_vmem [thread:$0]  %s5, 256, %s403, [#allocation12], 64, 64, 4
        $region32: #{vision_transformer.7} parent=11 // pred_fallthru
          _
        // Predicated region
        $region33: #{vision_transformer.7} parent=11 // pred_check
          %p409 = pneg %p183
        $region34: #{vision_transformer.7} parent=11 // pred_check_branch
          %411 = sbr.rel (%p409) target = $region36
        $region35: #{vision_transformer.7} parent=11 // pred_region
          %s413 = ssub.s32 16, 16
          %414 = vsyncadd [#allocation12], %s413
          %s416 = sshll.u32 [#allocation13], 4
          %s417 = int_to_ptr.vmem [resolvable:$true] %s416
          %419 = dma.hbm_to_vmem [thread:$0]  %s6, 16, %s417, [#allocation12]
        $region36: #{vision_transformer.7} parent=11 // pred_fallthru
          _
        // Predicated region
        $region37: #{vision_transformer.7} parent=11 // pred_check
          %p420 = pneg %p204
        $region38: #{vision_transformer.7} parent=11 // pred_check_branch
          %422 = sbr.rel (%p420) target = $region40
        $region39: #{vision_transformer.7} parent=11 // pred_region
          %s424 = ssub.s32 16, 16
          %425 = vsyncadd [#allocation15], %s424
          %s427 = sshll.u32 [#allocation14], 4
          %s428 = int_to_ptr.vmem [resolvable:$true] %s427
          %430 = dma.hbm_to_vmem [thread:$0]  %s7, 16, %s428, [#allocation15]
        $region40: #{vision_transformer.7} parent=11 // pred_fallthru
          _
        // Predicated region
        $region41: #{vision_transformer.7} parent=11 // pred_check
          %p431 = pneg %p225
        $region42: #{vision_transformer.7} parent=11 // pred_check_branch
          %433 = sbr.rel (%p431) target = $region44
        $region43: #{vision_transformer.7} parent=11 // pred_region
          %s435 = ssub.s32 16, 16
          %436 = vsyncadd [#allocation15], %s435
          %s438 = sshll.u32 [#allocation16], 4
          %s439 = int_to_ptr.vmem [resolvable:$true] %s438
          %441 = dma.hbm_to_vmem [thread:$0]  %s8, 16, %s439, [#allocation15]
        $region44: #{vision_transformer.7} parent=11 // pred_fallthru
          _
        // Predicated region
        $region45: #{vision_transformer.7} parent=11 // pred_check
          %p442 = pneg %p246
        $region46: #{vision_transformer.7} parent=11 // pred_check_branch
          %444 = sbr.rel (%p442) target = $region48
        $region47: #{vision_transformer.7} parent=11 // pred_region
          %s446 = ssub.s32 1024, 1024
          %447 = vsyncadd [#allocation18], %s446
          %s448 = sshll.u32 [#allocation17], 4
          %s449 = int_to_ptr.vmem [resolvable:$true] %s448
          %454 = dma.hbm_to_vmem [thread:$0]  %s9, 1024, %s449, [#allocation18], 64, 64, 4
        $region48: #{vision_transformer.7} parent=11 // pred_fallthru
          _
        // Predicated region
        $region49: #{vision_transformer.7} parent=11 // pred_check
          %p455 = pneg %p267
        $region50: #{vision_transformer.7} parent=11 // pred_check_branch
          %457 = sbr.rel (%p455) target = $region52
        $region51: #{vision_transformer.7} parent=11 // pred_region
          %s459 = ssub.s32 16, 16
          %460 = vsyncadd [#allocation18], %s459
          %s462 = sshll.u32 [#allocation19], 4
          %s463 = int_to_ptr.vmem [resolvable:$true] %s462
          %465 = dma.hbm_to_vmem [thread:$0]  %s10, 16, %s463, [#allocation18]
        $region52: #{vision_transformer.7} parent=11 // pred_fallthru
          _
        // Predicated region
        $region53: #{vision_transformer.7} parent=11 // pred_check
          %p466 = pneg %p288
        $region54: #{vision_transformer.7} parent=11 // pred_check_branch
          %468 = sbr.rel (%p466) target = $region56
        $region55: #{vision_transformer.7} parent=11 // pred_region
          %s470 = ssub.s32 256, 256
          %471 = vsyncadd [#allocation21], %s470
          %s472 = sshll.u32 [#allocation20], 4
          %s473 = int_to_ptr.vmem [resolvable:$true] %s472
          %478 = dma.hbm_to_vmem [thread:$0]  %s11, 256, %s473, [#allocation21], 64, 64, 4
        $region56: #{vision_transformer.7} parent=11 // pred_fallthru
          _
        // Predicated region
        $region57: #{vision_transformer.7} parent=11 // pred_check
          %p479 = pneg %p309
        $region58: #{vision_transformer.7} parent=11 // pred_check_branch
          %481 = sbr.rel (%p479) target = $region60
        $region59: #{vision_transformer.7} parent=11 // pred_region
          %s483 = ssub.s32 16, 16
          %484 = vsyncadd [#allocation21], %s483
          %s486 = sshll.u32 [#allocation22], 4
          %s487 = int_to_ptr.vmem [resolvable:$true] %s486
          %489 = dma.hbm_to_vmem [thread:$0]  %s12, 16, %s487, [#allocation21]
        $region60: #{vision_transformer.7} parent=11 // pred_fallthru
          _
      $region12: #{vision_transformer.7} parent=5 // pred_fallthru
        _
      %p490 = scmp.lt.s32.totalorder %s31, 2
      // Predicated region
      $region61: #{vision_transformer.7} parent=5 // pred_check
        %p491 = pneg %p490
      $region62: #{vision_transformer.7} parent=5 // pred_check_branch
        %493 = sbr.rel (%p491) target = $region64
      $region63: #{vision_transformer.7} parent=5 // pred_region
        // Predicated region
        $region65: #{vision_transformer.7} parent=63 // pred_check
          %p494 = pneg %p51
        $region66: #{vision_transformer.7} parent=63 // pred_check_branch
          %496 = sbr.rel (%p494) target = $region68
        $region67: #{vision_transformer.7} parent=63 // pred_region
          %s497 = sand.u32 %s41, 1
          %s498 = scalar_lea.sflag [#allocation3], %s497
          %s499 = sand.u32 %s41, 1
          %s500 = smul.addr %s499, 8
          %s501 = scalar_lea.vmem [#allocation2], %s500
          %s503 = ssub.s32 128, 128
          %504 = vsyncadd %s498, %s503
          %s505 = smul.addr %s31, 128
          %s506 = scalar_lea.hbm %s0, %s505
          %s508 = sshll.u32 %s501, 4
          %s509 = int_to_ptr.vmem [resolvable:$true] %s508
          %511 = dma.hbm_to_vmem [thread:$0]  %s506, 128, %s509, %s498
        $region68: #{vision_transformer.7} parent=63 // pred_fallthru
          _
      $region64: #{vision_transformer.7} parent=5 // pred_fallthru
        _
      %p512 = scmp.le.s32.totalorder 1, %s31
      %p513 = scmp.lt.s32.totalorder %s31, 3
      %p514 = pnand %p512, %p513
      %p515 = pneg %p514
      // Predicated region
      $region69: #{vision_transformer.7} parent=5 // pred_check
        _
      $region70: #{vision_transformer.7} parent=5 // pred_check_branch
        %517 = sbr.rel (%p514) target = $region72
      $region71: #{vision_transformer.7} parent=5 // pred_region
        %s518 = ssub.s32 %s31, 1
        %s519 = sand.u32 %s44, 1
        %s520 = scalar_lea.sflag [#allocation3], %s519
        %s521 = sand.u32 %s44, 1
        %s522 = smul.addr %s521, 8
        %s523 = scalar_lea.vmem [#allocation2], %s522
        // Predicated region
        $region73: #{vision_transformer.7} parent=71 // pred_check
          %p524 = pneg %p57
        $region74: #{vision_transformer.7} parent=71 // pred_check_branch
          %526 = sbr.rel (%p524) target = $region76
        $region75: #{vision_transformer.7} parent=71 // pred_region
          %527 = dma.done %s520, 128
        $region76: #{vision_transformer.7} parent=71 // pred_fallthru
          _
        // Predicated region
        $region77: #{vision_transformer.7} parent=71 // pred_check
          %p528 = pneg %p78
        $region78: #{vision_transformer.7} parent=71 // pred_check_branch
          %530 = sbr.rel (%p528) target = $region80
        $region79: #{vision_transformer.7} parent=71 // pred_region
          %531 = dma.done [#allocation6], 16
        $region80: #{vision_transformer.7} parent=71 // pred_fallthru
          _
        // Predicated region
        $region81: #{vision_transformer.7} parent=71 // pred_check
          %p532 = pneg %p99
        $region82: #{vision_transformer.7} parent=71 // pred_check_branch
          %534 = sbr.rel (%p532) target = $region84
        $region83: #{vision_transformer.7} parent=71 // pred_region
          %535 = dma.done [#allocation6], 16
        $region84: #{vision_transformer.7} parent=71 // pred_fallthru
          _
        // Predicated region
        $region85: #{vision_transformer.7} parent=71 // pred_check
          %p536 = pneg %p120
        $region86: #{vision_transformer.7} parent=71 // pred_check_branch
          %538 = sbr.rel (%p536) target = $region88
        $region87: #{vision_transformer.7} parent=71 // pred_region
          %539 = dma.done [#allocation9], 768
        $region88: #{vision_transformer.7} parent=71 // pred_fallthru
          _
        // Predicated region
        $region89: #{vision_transformer.7} parent=71 // pred_check
          %p540 = pneg %p141
        $region90: #{vision_transformer.7} parent=71 // pred_check_branch
          %542 = sbr.rel (%p540) target = $region92
        $region91: #{vision_transformer.7} parent=71 // pred_region
          %543 = dma.done [#allocation9], 16
        $region92: #{vision_transformer.7} parent=71 // pred_fallthru
          _
        // Predicated region
        $region93: #{vision_transformer.7} parent=71 // pred_check
          %p544 = pneg %p162
        $region94: #{vision_transformer.7} parent=71 // pred_check_branch
          %546 = sbr.rel (%p544) target = $region96
        $region95: #{vision_transformer.7} parent=71 // pred_region
          %547 = dma.done [#allocation12], 256
        $region96: #{vision_transformer.7} parent=71 // pred_fallthru
          _
        // Predicated region
        $region97: #{vision_transformer.7} parent=71 // pred_check
          %p548 = pneg %p183
        $region98: #{vision_transformer.7} parent=71 // pred_check_branch
          %550 = sbr.rel (%p548) target = $region100
        $region99: #{vision_transformer.7} parent=71 // pred_region
          %551 = dma.done [#allocation12], 16
        $region100: #{vision_transformer.7} parent=71 // pred_fallthru
          _
        // Predicated region
        $region101: #{vision_transformer.7} parent=71 // pred_check
          %p552 = pneg %p204
        $region102: #{vision_transformer.7} parent=71 // pred_check_branch
          %554 = sbr.rel (%p552) target = $region104
        $region103: #{vision_transformer.7} parent=71 // pred_region
          %555 = dma.done [#allocation15], 16
        $region104: #{vision_transformer.7} parent=71 // pred_fallthru
          _
        // Predicated region
        $region105: #{vision_transformer.7} parent=71 // pred_check
          %p556 = pneg %p225
        $region106: #{vision_transformer.7} parent=71 // pred_check_branch
          %558 = sbr.rel (%p556) target = $region108
        $region107: #{vision_transformer.7} parent=71 // pred_region
          %559 = dma.done [#allocation15], 16
        $region108: #{vision_transformer.7} parent=71 // pred_fallthru
          _
        // Predicated region
        $region109: #{vision_transformer.7} parent=71 // pred_check
          %p560 = pneg %p246
        $region110: #{vision_transformer.7} parent=71 // pred_check_branch
          %562 = sbr.rel (%p560) target = $region112
        $region111: #{vision_transformer.7} parent=71 // pred_region
          %563 = dma.done [#allocation18], 1024
        $region112: #{vision_transformer.7} parent=71 // pred_fallthru
          _
        // Predicated region
        $region113: #{vision_transformer.7} parent=71 // pred_check
          %p564 = pneg %p267
        $region114: #{vision_transformer.7} parent=71 // pred_check_branch
          %566 = sbr.rel (%p564) target = $region116
        $region115: #{vision_transformer.7} parent=71 // pred_region
          %567 = dma.done [#allocation18], 16
        $region116: #{vision_transformer.7} parent=71 // pred_fallthru
          _
        // Predicated region
        $region117: #{vision_transformer.7} parent=71 // pred_check
          %p568 = pneg %p288
        $region118: #{vision_transformer.7} parent=71 // pred_check_branch
          %570 = sbr.rel (%p568) target = $region120
        $region119: #{vision_transformer.7} parent=71 // pred_region
          %571 = dma.done [#allocation21], 256
        $region120: #{vision_transformer.7} parent=71 // pred_fallthru
          _
        // Predicated region
        $region121: #{vision_transformer.7} parent=71 // pred_check
          %p572 = pneg %p309
        $region122: #{vision_transformer.7} parent=71 // pred_check_branch
          %574 = sbr.rel (%p572) target = $region124
        $region123: #{vision_transformer.7} parent=71 // pred_region
          %575 = dma.done [#allocation21], 16
        $region124: #{vision_transformer.7} parent=71 // pred_fallthru
          _
        %s576 = sand.u32 %s44, 1
        %s577 = scalar_lea.sflag [#allocation3], %s576
        %s578 = sand.u32 %s44, 1
        %s579 = smul.addr %s578, 8
        %s580 = scalar_lea.vmem [#allocation2], %s579
        %p581 = pneg %p57
        %p582 = pneg %p54
        %p583 = pneg %p78
        %p584 = pneg %p75
        %p585 = pneg %p99
        %p586 = pneg %p96
        %p587 = pneg %p120
        %p588 = pneg %p117
        %p589 = pneg %p141
        %p590 = pneg %p138
        %p591 = pneg %p162
        %p592 = pneg %p159
        %p593 = pneg %p183
        %p594 = pneg %p180
        %p595 = pneg %p204
        %p596 = pneg %p201
        %p597 = pneg %p225
        %p598 = pneg %p222
        %p599 = pneg %p246
        %p600 = pneg %p243
        %p601 = pneg %p267
        %p602 = pneg %p264
        %p603 = pneg %p288
        %p604 = pneg %p285
        %p605 = pneg %p309
        %p606 = pneg %p306
        %p607 = pneg %p335
        %p608 = pneg %p332
        %s609 = sand.u32 %s322, 1
        %s610 = scalar_lea.sflag [#allocation4], %s609
        %s611 = sand.u32 %s322, 1
        %s612 = smul.addr %s611, 8
        %s613 = scalar_lea.vmem [#allocation23], %s612
        %v617 = vld [vmem:[%s523] sm:$0xff]
        %v618 = vld [vmem:[#allocation5] sm:$0x1]
        %v619 = vld [vmem:[#allocation7] sm:$0x1]
        %vm620 = vcmask 261120
        %v621 = vsel %vm620, %v617, 0.0
        %622 = vadd.xlane.f32.xlu0 %v621
        %v623 = vpop.xlane.xlu0 %622
        %v624 = vrcp.pop 32.0
        %v625 = vmul.f32 %v623, %v624
        %v626 = vsub.f32 %v617, %v625
        %v627 = vmul.f32 %v626, %v626
        %v628 = vsel %vm620, %v627, 0.0
        %629 = vadd.xlane.f32.xlu0 %v628
        %v630 = vpop.xlane.xlu0 %629
        %v631 = vmul.f32 %v630, %v624
        %v632 = vadd.f32 %v631, 1e-05
        %v633 = vrsqrt.pop %v632
        %v634 = vmul.f32 %v626, %v633
        %v636 = vlaneseq
        %v637 = vshrl.u32 %v636, 7
        %v638 = vsub.s32 0, %v637
        %v639 = vrot.slane %v618, %v638
        %v641 = vmul.f32 %v634, %v639
        %v643 = vlaneseq
        %v644 = vshrl.u32 %v643, 7
        %v645 = vsub.s32 0, %v644
        %v646 = vrot.slane %v619, %v645
        %v648 = vadd.f32 %v641, %v646
        %v649 = vld [vmem:[#allocation8] sm:$0xf]
        %v650 = vld [vmem:[#allocation8 + $0x4] sm:$0xf]
        %v651 = vld [vmem:[#allocation8 + $0x8] sm:$0xf]
        %v652 = vld [vmem:[#allocation8 + $0xc] sm:$0xf]
        %v653 = vld [vmem:[#allocation8 + $0x10] sm:$0xf]
        %v654 = vld [vmem:[#allocation8 + $0x14] sm:$0xf]
        %v655 = vld [vmem:[#allocation8 + $0x18] sm:$0xf]
        %v656 = vld [vmem:[#allocation8 + $0x1c] sm:$0xf]
        %v657 = vld [vmem:[#allocation8 + $0x20] sm:$0xf]
        %v658 = vld [vmem:[#allocation8 + $0x24] sm:$0xf]
        %v659 = vld [vmem:[#allocation8 + $0x28] sm:$0xf]
        %v660 = vld [vmem:[#allocation8 + $0x2c] sm:$0xf]
        %v661 = vld [vmem:[#allocation10] sm:$0x1]
        %v662 = vpack.c.bf16 %v648, %v648
        %v664 = vlaneseq
        %v665 = vshrl.u32 %v664, 7
        %v666 = vsub.s32 0, %v665
        %v667 = vrot.slane %v661, %v666
        %v681 = vunpack.c.l.b16 %v649
        %v682 = vunpack.c.l.b16 %v650
        %v683 = vunpack.c.l.b16 %v651
        %v684 = vunpack.c.l.b16 %v652
        %v685 = vunpack.c.l.b16 %v653
        %v686 = vunpack.c.l.b16 %v654
        %v687 = vunpack.c.l.b16 %v655
        %v688 = vunpack.c.l.b16 %v656
        %v689 = vunpack.c.l.b16 %v657
        %v690 = vunpack.c.l.b16 %v658
        %v691 = vunpack.c.l.b16 %v659
        %v692 = vunpack.c.l.b16 %v660
        %v693 = vpack.c.b16 %v682, %v681
        %v694 = vpack.c.b16 %v684, %v683
        %v695 = vpack.c.b16 %v686, %v685
        %v696 = vpack.c.b16 %v688, %v687
        %v697 = vpack.c.b16 %v690, %v689
        %v698 = vpack.c.b16 %v692, %v691
        %v700 = vsel %vm620, %v662, 0
        %v703 = vsel %vm620, %v693, 0
        %v706 = vsel %vm620, %v694, 0
        %v709 = vsel %vm620, %v695, 0
        %v712 = vsel %vm620, %v696, 0
        %v715 = vsel %vm620, %v697, 0
        %v718 = vsel %vm620, %v698, 0
        %720 = vmatprep.subr.bf16.mxu0 0
        %721 = vmatpush1.bf16.xpose.msra.mxu0 %v703
        %722 = vmatprep.subr.bf16.mxu0 0
        %723 = vmatpush1.bf16.xpose.msra.mxu0 %v706
        %724 = vmatprep.subr.bf16.mxu0 0
        %725 = vmatpush1.bf16.xpose.msra.mxu0 %v709
        %726 = vmatprep.subr.bf16.mxu0 0
        %727 = vmatpush1.bf16.xpose.msra.mxu0 %v712
        %728 = vmatprep.subr.bf16.mxu0 0
        %729 = vmatpush1.bf16.xpose.msra.mxu0 %v715
        %730 = vmatprep.subr.bf16.mxu0 0
        %731 = vmatpush1.bf16.xpose.msra.mxu0 %v718
        %732 = vmatprep.subr.bf16.mxu0 0
        %733 = vmatpush1.bf16.xpose.msra.mxu0 0
        %734 = vmatprep.subr.bf16.mxu0 0
        %735 = vmatpush1.bf16.xpose.msra.mxu0 0
        %736 = vmatprep.subr.bf16.mxu0 0
        %737 = vmatpush1.bf16.xpose.msra.mxu0 0
        %738 = vmatprep.subr.bf16.mxu0 0
        %739 = vmatpush1.bf16.xpose.msra.mxu0 0
        %740 = vmatprep.subr.bf16.mxu0 0
        %741 = vmatpush1.bf16.xpose.msra.mxu0 0
        %742 = vmatprep.subr.bf16.mxu0 0
        %743 = vmatpush1.bf16.xpose.msra.mxu0 0
        %744 = vmatprep.subr.bf16.mxu0 0
        %745 = vmatpush1.bf16.xpose.msra.mxu0 0
        %746 = vmatprep.subr.bf16.mxu0 0
        %747 = vmatpush1.bf16.xpose.msra.mxu0 0
        %748 = vmatprep.subr.bf16.mxu0 0
        %749 = vmatpush1.bf16.xpose.msra.mxu0 0
        %750 = vmatprep.subr.bf16.mxu0 0
        %751 = vmatpush1.bf16.xpose.msra.mxu0 0
        %752 = vmatprep.mubr.bf16.mxu0 0
        %753 = vmatmul.mubr.bf16.gmra.mrb[0].mxu0 %v700
        %v754 = vpop.f32.mrb[0].mxu0
        %v755 = vadd.f32 %v667, %v754
        %v756 = vpop.f32.mrb[0].mxu0
        %v757 = vpop.f32.mrb[0].mxu0
        %v758 = vpop.f32.mrb[0].mxu0
        %759 = vdwg.mxu0
        %761 = vrot.lane.b32.xlu0 %v755, 120
        %v762 = vpop.permute.xlu0 %761
        %764 = vrot.lane.b32.xlu0 %v755, 112
        %v765 = vpop.permute.xlu0 %764
        %767 = vrot.lane.b32.xlu0 %v755, 104
        %v768 = vpop.permute.xlu0 %767
        %v770 = vcombine.low %v755, %v765
        %v771 = vcombine.high %v755, %v765
        %v773 = vunpack.c.l.s4 1983009808
        %v774 = vunpack.c.0.s8 %v773
        %v775 = vlaneseq
        %v776 = vshrl.u32 %v775, 7
        %v777 = vsub.s32 %v774, %v776
        %v778 = vrot.slane %v770, %v777
        %v780 = vunpack.c.l.s4 1983009808
        %v781 = vunpack.c.0.s8 %v780
        %v782 = vlaneseq
        %v783 = vshrl.u32 %v782, 7
        %v784 = vsub.s32 %v781, %v783
        %v785 = vrot.slane %v771, %v784
        %v786 = vcombine.low %v762, %v768
        %v787 = vcombine.high %v762, %v768
        %v789 = vunpack.c.l.s4 1983009808
        %v790 = vunpack.c.0.s8 %v789
        %v791 = vlaneseq
        %v792 = vshrl.u32 %v791, 7
        %v793 = vsub.s32 %v790, %v792
        %v794 = vrot.slane %v786, %v793
        %v796 = vunpack.c.l.s4 1983009808
        %v797 = vunpack.c.0.s8 %v796
        %v798 = vlaneseq
        %v799 = vshrl.u32 %v798, 7
        %v800 = vsub.s32 %v797, %v799
        %v801 = vrot.slane %v787, %v800
        %v802 = vcombine.low %v778, %v794
        %v803 = vcombine.high %v778, %v794
        %v805 = vunpack.c.l.s4 1934713408
        %v806 = vunpack.c.0.s8 %v805
        %v807 = vlaneseq
        %v808 = vshrl.u32 %v807, 7
        %v809 = vsub.s32 %v806, %v808
        %v810 = vrot.slane %v802, %v809
        %v812 = vunpack.c.l.s4 1934713408
        %v813 = vunpack.c.0.s8 %v812
        %v814 = vlaneseq
        %v815 = vshrl.u32 %v814, 7
        %v816 = vsub.s32 %v813, %v815
        %v817 = vrot.slane %v803, %v816
        %v818 = vcombine.low %v785, %v801
        %v819 = vcombine.high %v785, %v801
        %v821 = vunpack.c.l.s4 1934713408
        %v822 = vunpack.c.0.s8 %v821
        %v823 = vlaneseq
        %v824 = vshrl.u32 %v823, 7
        %v825 = vsub.s32 %v822, %v824
        %v826 = vrot.slane %v818, %v825
        %v828 = vunpack.c.l.s4 1934713408
        %v829 = vunpack.c.0.s8 %v828
        %v830 = vlaneseq
        %v831 = vshrl.u32 %v830, 7
        %v832 = vsub.s32 %v829, %v831
        %v833 = vrot.slane %v819, %v832
        %v834 = vcombine.high %v810, 0.0
        %v835 = vcombine.high %v817, 0.0
        %v836 = vcombine.high %v826, 0.0
        %v837 = vcombine.high %v833, 0.0
        %v838 = vcombine.low %v810, %v817
        %v840 = vunpack.c.l.s4 1983009808
        %v841 = vunpack.c.0.s8 %v840
        %v842 = vlaneseq
        %v843 = vshrl.u32 %v842, 7
        %v844 = vsub.s32 %v841, %v843
        %v845 = vrot.slane %v838, %v844
        %v846 = vcombine.low %v834, %v835
        %v848 = vunpack.c.l.s4 1983009808
        %v849 = vunpack.c.0.s8 %v848
        %v850 = vlaneseq
        %v851 = vshrl.u32 %v850, 7
        %v852 = vsub.s32 %v849, %v851
        %v853 = vrot.slane %v846, %v852
        %v854 = vcombine.low %v826, %v833
        %v856 = vunpack.c.l.s4 1983009808
        %v857 = vunpack.c.0.s8 %v856
        %v858 = vlaneseq
        %v859 = vshrl.u32 %v858, 7
        %v860 = vsub.s32 %v857, %v859
        %v861 = vrot.slane %v854, %v860
        %v862 = vcombine.low %v836, %v837
        %v864 = vunpack.c.l.s4 1983009808
        %v865 = vunpack.c.0.s8 %v864
        %v866 = vlaneseq
        %v867 = vshrl.u32 %v866, 7
        %v868 = vsub.s32 %v865, %v867
        %v869 = vrot.slane %v862, %v868
        %v870 = vcombine.low %v845, %v853
        %v871 = vcombine.high %v845, %v853
        %v873 = vunpack.c.l.s4 1934713408
        %v874 = vunpack.c.0.s8 %v873
        %v875 = vlaneseq
        %v876 = vshrl.u32 %v875, 7
        %v877 = vsub.s32 %v874, %v876
        %v878 = vrot.slane %v870, %v877
        %v880 = vunpack.c.l.s4 1934713408
        %v881 = vunpack.c.0.s8 %v880
        %v882 = vlaneseq
        %v883 = vshrl.u32 %v882, 7
        %v884 = vsub.s32 %v881, %v883
        %v885 = vrot.slane %v871, %v884
        %v886 = vcombine.low %v861, %v869
        %v887 = vcombine.high %v861, %v869
        %v889 = vunpack.c.l.s4 1934713408
        %v890 = vunpack.c.0.s8 %v889
        %v891 = vlaneseq
        %v892 = vshrl.u32 %v891, 7
        %v893 = vsub.s32 %v890, %v892
        %v894 = vrot.slane %v886, %v893
        %v896 = vunpack.c.l.s4 1934713408
        %v897 = vunpack.c.0.s8 %v896
        %v898 = vlaneseq
        %v899 = vshrl.u32 %v898, 7
        %v900 = vsub.s32 %v897, %v899
        %v901 = vrot.slane %v887, %v900
        %v902 = vcombine.low %v878, %v894
        %v903 = vcombine.high %v878, %v894
        %v904 = vcombine.low %v885, %v901
        %v905 = vcombine.high %v885, %v901
        %v906 = vpack.c.bf16 %v902, %v902
        %v907 = vpack.c.bf16 %v903, %v903
        %v908 = vpack.c.bf16 %v904, %v904
        %v909 = vpack.c.bf16 %v905, %v905
        %910 = vrot.lane.b32.xlu0 %v755, 96
        %v911 = vpop.permute.xlu0 %910
        %912 = vrot.lane.b32.xlu0 %v762, 96
        %v913 = vpop.permute.xlu0 %912
        %914 = vrot.lane.b32.xlu0 %v765, 96
        %v915 = vpop.permute.xlu0 %914
        %916 = vrot.lane.b32.xlu0 %v768, 96
        %v917 = vpop.permute.xlu0 %916
        %v922 = vcombine.low %v911, %v915
        %v923 = vcombine.high %v911, %v915
        %v925 = vunpack.c.l.s4 1983009808
        %v926 = vunpack.c.0.s8 %v925
        %v927 = vlaneseq
        %v928 = vshrl.u32 %v927, 7
        %v929 = vsub.s32 %v926, %v928
        %v930 = vrot.slane %v922, %v929
        %v932 = vunpack.c.l.s4 1983009808
        %v933 = vunpack.c.0.s8 %v932
        %v934 = vlaneseq
        %v935 = vshrl.u32 %v934, 7
        %v936 = vsub.s32 %v933, %v935
        %v937 = vrot.slane %v923, %v936
        %v938 = vcombine.low %v913, %v917
        %v939 = vcombine.high %v913, %v917
        %v941 = vunpack.c.l.s4 1983009808
        %v942 = vunpack.c.0.s8 %v941
        %v943 = vlaneseq
        %v944 = vshrl.u32 %v943, 7
        %v945 = vsub.s32 %v942, %v944
        %v946 = vrot.slane %v938, %v945
        %v948 = vunpack.c.l.s4 1983009808
        %v949 = vunpack.c.0.s8 %v948
        %v950 = vlaneseq
        %v951 = vshrl.u32 %v950, 7
        %v952 = vsub.s32 %v949, %v951
        %v953 = vrot.slane %v939, %v952
        %v954 = vcombine.low %v930, %v946
        %v955 = vcombine.high %v930, %v946
        %v957 = vunpack.c.l.s4 1934713408
        %v958 = vunpack.c.0.s8 %v957
        %v959 = vlaneseq
        %v960 = vshrl.u32 %v959, 7
        %v961 = vsub.s32 %v958, %v960
        %v962 = vrot.slane %v954, %v961
        %v964 = vunpack.c.l.s4 1934713408
        %v965 = vunpack.c.0.s8 %v964
        %v966 = vlaneseq
        %v967 = vshrl.u32 %v966, 7
        %v968 = vsub.s32 %v965, %v967
        %v969 = vrot.slane %v955, %v968
        %v970 = vcombine.low %v937, %v953
        %v971 = vcombine.high %v937, %v953
        %v973 = vunpack.c.l.s4 1934713408
        %v974 = vunpack.c.0.s8 %v973
        %v975 = vlaneseq
        %v976 = vshrl.u32 %v975, 7
        %v977 = vsub.s32 %v974, %v976
        %v978 = vrot.slane %v970, %v977
        %v980 = vunpack.c.l.s4 1934713408
        %v981 = vunpack.c.0.s8 %v980
        %v982 = vlaneseq
        %v983 = vshrl.u32 %v982, 7
        %v984 = vsub.s32 %v981, %v983
        %v985 = vrot.slane %v971, %v984
        %v986 = vcombine.high %v962, 0.0
        %v987 = vcombine.high %v969, 0.0
        %v988 = vcombine.high %v978, 0.0
        %v989 = vcombine.high %v985, 0.0
        %v990 = vcombine.low %v962, %v969
        %v992 = vunpack.c.l.s4 1983009808
        %v993 = vunpack.c.0.s8 %v992
        %v994 = vlaneseq
        %v995 = vshrl.u32 %v994, 7
        %v996 = vsub.s32 %v993, %v995
        %v997 = vrot.slane %v990, %v996
        %v998 = vcombine.low %v986, %v987
        %v1000 = vunpack.c.l.s4 1983009808
        %v1001 = vunpack.c.0.s8 %v1000
        %v1002 = vlaneseq
        %v1003 = vshrl.u32 %v1002, 7
        %v1004 = vsub.s32 %v1001, %v1003
        %v1005 = vrot.slane %v998, %v1004
        %v1006 = vcombine.low %v978, %v985
        %v1008 = vunpack.c.l.s4 1983009808
        %v1009 = vunpack.c.0.s8 %v1008
        %v1010 = vlaneseq
        %v1011 = vshrl.u32 %v1010, 7
        %v1012 = vsub.s32 %v1009, %v1011
        %v1013 = vrot.slane %v1006, %v1012
        %v1014 = vcombine.low %v988, %v989
        %v1016 = vunpack.c.l.s4 1983009808
        %v1017 = vunpack.c.0.s8 %v1016
        %v1018 = vlaneseq
        %v1019 = vshrl.u32 %v1018, 7
        %v1020 = vsub.s32 %v1017, %v1019
        %v1021 = vrot.slane %v1014, %v1020
        %v1022 = vcombine.low %v997, %v1005
        %v1023 = vcombine.high %v997, %v1005
        %v1025 = vunpack.c.l.s4 1934713408
        %v1026 = vunpack.c.0.s8 %v1025
        %v1027 = vlaneseq
        %v1028 = vshrl.u32 %v1027, 7
        %v1029 = vsub.s32 %v1026, %v1028
        %v1030 = vrot.slane %v1022, %v1029
        %v1032 = vunpack.c.l.s4 1934713408
        %v1033 = vunpack.c.0.s8 %v1032
        %v1034 = vlaneseq
        %v1035 = vshrl.u32 %v1034, 7
        %v1036 = vsub.s32 %v1033, %v1035
        %v1037 = vrot.slane %v1023, %v1036
        %v1038 = vcombine.low %v1013, %v1021
        %v1039 = vcombine.high %v1013, %v1021
        %v1041 = vunpack.c.l.s4 1934713408
        %v1042 = vunpack.c.0.s8 %v1041
        %v1043 = vlaneseq
        %v1044 = vshrl.u32 %v1043, 7
        %v1045 = vsub.s32 %v1042, %v1044
        %v1046 = vrot.slane %v1038, %v1045
        %v1048 = vunpack.c.l.s4 1934713408
        %v1049 = vunpack.c.0.s8 %v1048
        %v1050 = vlaneseq
        %v1051 = vshrl.u32 %v1050, 7
        %v1052 = vsub.s32 %v1049, %v1051
        %v1053 = vrot.slane %v1039, %v1052
        %v1054 = vcombine.low %v1030, %v1046
        %v1055 = vcombine.high %v1030, %v1046
        %v1056 = vcombine.low %v1037, %v1053
        %v1057 = vcombine.high %v1037, %v1053
        %v1058 = vpack.c.bf16 %v1054, %v1054
        %v1059 = vpack.c.bf16 %v1055, %v1055
        %v1060 = vpack.c.bf16 %v1056, %v1056
        %v1061 = vpack.c.bf16 %v1057, %v1057
        %1062 = vrot.lane.b32.xlu0 %v755, 64
        %v1063 = vpop.permute.xlu0 %1062
        %1064 = vrot.lane.b32.xlu0 %v762, 64
        %v1065 = vpop.permute.xlu0 %1064
        %1066 = vrot.lane.b32.xlu0 %v765, 64
        %v1067 = vpop.permute.xlu0 %1066
        %1068 = vrot.lane.b32.xlu0 %v768, 64
        %v1069 = vpop.permute.xlu0 %1068
        %v1074 = vcombine.low %v1063, %v1067
        %v1075 = vcombine.high %v1063, %v1067
        %v1077 = vunpack.c.l.s4 1983009808
        %v1078 = vunpack.c.0.s8 %v1077
        %v1079 = vlaneseq
        %v1080 = vshrl.u32 %v1079, 7
        %v1081 = vsub.s32 %v1078, %v1080
        %v1082 = vrot.slane %v1074, %v1081
        %v1084 = vunpack.c.l.s4 1983009808
        %v1085 = vunpack.c.0.s8 %v1084
        %v1086 = vlaneseq
        %v1087 = vshrl.u32 %v1086, 7
        %v1088 = vsub.s32 %v1085, %v1087
        %v1089 = vrot.slane %v1075, %v1088
        %v1090 = vcombine.low %v1065, %v1069
        %v1091 = vcombine.high %v1065, %v1069
        %v1093 = vunpack.c.l.s4 1983009808
        %v1094 = vunpack.c.0.s8 %v1093
        %v1095 = vlaneseq
        %v1096 = vshrl.u32 %v1095, 7
        %v1097 = vsub.s32 %v1094, %v1096
        %v1098 = vrot.slane %v1090, %v1097
        %v1100 = vunpack.c.l.s4 1983009808
        %v1101 = vunpack.c.0.s8 %v1100
        %v1102 = vlaneseq
        %v1103 = vshrl.u32 %v1102, 7
        %v1104 = vsub.s32 %v1101, %v1103
        %v1105 = vrot.slane %v1091, %v1104
        %v1106 = vcombine.low %v1082, %v1098
        %v1107 = vcombine.high %v1082, %v1098
        %v1109 = vunpack.c.l.s4 1934713408
        %v1110 = vunpack.c.0.s8 %v1109
        %v1111 = vlaneseq
        %v1112 = vshrl.u32 %v1111, 7
        %v1113 = vsub.s32 %v1110, %v1112
        %v1114 = vrot.slane %v1106, %v1113
        %v1116 = vunpack.c.l.s4 1934713408
        %v1117 = vunpack.c.0.s8 %v1116
        %v1118 = vlaneseq
        %v1119 = vshrl.u32 %v1118, 7
        %v1120 = vsub.s32 %v1117, %v1119
        %v1121 = vrot.slane %v1107, %v1120
        %v1122 = vcombine.low %v1089, %v1105
        %v1123 = vcombine.high %v1089, %v1105
        %v1125 = vunpack.c.l.s4 1934713408
        %v1126 = vunpack.c.0.s8 %v1125
        %v1127 = vlaneseq
        %v1128 = vshrl.u32 %v1127, 7
        %v1129 = vsub.s32 %v1126, %v1128
        %v1130 = vrot.slane %v1122, %v1129
        %v1132 = vunpack.c.l.s4 1934713408
        %v1133 = vunpack.c.0.s8 %v1132
        %v1134 = vlaneseq
        %v1135 = vshrl.u32 %v1134, 7
        %v1136 = vsub.s32 %v1133, %v1135
        %v1137 = vrot.slane %v1123, %v1136
        %v1138 = vcombine.high %v1114, 0.0
        %v1139 = vcombine.high %v1121, 0.0
        %v1140 = vcombine.high %v1130, 0.0
        %v1141 = vcombine.high %v1137, 0.0
        %v1142 = vcombine.low %v1114, %v1121
        %v1144 = vunpack.c.l.s4 1983009808
        %v1145 = vunpack.c.0.s8 %v1144
        %v1146 = vlaneseq
        %v1147 = vshrl.u32 %v1146, 7
        %v1148 = vsub.s32 %v1145, %v1147
        %v1149 = vrot.slane %v1142, %v1148
        %v1150 = vcombine.low %v1138, %v1139
        %v1152 = vunpack.c.l.s4 1983009808
        %v1153 = vunpack.c.0.s8 %v1152
        %v1154 = vlaneseq
        %v1155 = vshrl.u32 %v1154, 7
        %v1156 = vsub.s32 %v1153, %v1155
        %v1157 = vrot.slane %v1150, %v1156
        %v1158 = vcombine.low %v1130, %v1137
        %v1160 = vunpack.c.l.s4 1983009808
        %v1161 = vunpack.c.0.s8 %v1160
        %v1162 = vlaneseq
        %v1163 = vshrl.u32 %v1162, 7
        %v1164 = vsub.s32 %v1161, %v1163
        %v1165 = vrot.slane %v1158, %v1164
        %v1166 = vcombine.low %v1140, %v1141
        %v1168 = vunpack.c.l.s4 1983009808
        %v1169 = vunpack.c.0.s8 %v1168
        %v1170 = vlaneseq
        %v1171 = vshrl.u32 %v1170, 7
        %v1172 = vsub.s32 %v1169, %v1171
        %v1173 = vrot.slane %v1166, %v1172
        %v1174 = vcombine.low %v1149, %v1157
        %v1175 = vcombine.high %v1149, %v1157
        %v1177 = vunpack.c.l.s4 1934713408
        %v1178 = vunpack.c.0.s8 %v1177
        %v1179 = vlaneseq
        %v1180 = vshrl.u32 %v1179, 7
        %v1181 = vsub.s32 %v1178, %v1180
        %v1182 = vrot.slane %v1174, %v1181
        %v1184 = vunpack.c.l.s4 1934713408
        %v1185 = vunpack.c.0.s8 %v1184
        %v1186 = vlaneseq
        %v1187 = vshrl.u32 %v1186, 7
        %v1188 = vsub.s32 %v1185, %v1187
        %v1189 = vrot.slane %v1175, %v1188
        %v1190 = vcombine.low %v1165, %v1173
        %v1191 = vcombine.high %v1165, %v1173
        %v1193 = vunpack.c.l.s4 1934713408
        %v1194 = vunpack.c.0.s8 %v1193
        %v1195 = vlaneseq
        %v1196 = vshrl.u32 %v1195, 7
        %v1197 = vsub.s32 %v1194, %v1196
        %v1198 = vrot.slane %v1190, %v1197
        %v1200 = vunpack.c.l.s4 1934713408
        %v1201 = vunpack.c.0.s8 %v1200
        %v1202 = vlaneseq
        %v1203 = vshrl.u32 %v1202, 7
        %v1204 = vsub.s32 %v1201, %v1203
        %v1205 = vrot.slane %v1191, %v1204
        %v1206 = vcombine.low %v1182, %v1198
        %v1207 = vcombine.high %v1182, %v1198
        %v1208 = vcombine.low %v1189, %v1205
        %v1209 = vcombine.high %v1189, %v1205
        %v1210 = vpack.c.bf16 %v1206, %v1206
        %v1211 = vpack.c.bf16 %v1207, %v1207
        %v1212 = vpack.c.bf16 %v1208, %v1208
        %v1213 = vpack.c.bf16 %v1209, %v1209
        %v1214 = vlaneseq
        %v1215 = vand.u32 %v1214, 127
        %vm1216 = vcmp.lt.s32.totalorder %v1215, 5
        %v1217 = vsel %vm1216, 0.0, -1e+30
        %vm1218 = vcmask 64512
        %v1220 = vsel %vm1218, %v906, 0
        %v1223 = vsel %vm1218, %v1058, 0
        %1225 = vmatprep.subr.bf16.mxu0 0
        %1226 = vmatpush1.bf16.xpose.msra.mxu0 %v1223
        %1227 = vmatprep.subr.bf16.mxu0 0
        %1228 = vmatpush1.bf16.xpose.msra.mxu0 0
        %1229 = vmatprep.subr.bf16.mxu0 0
        %1230 = vmatpush1.bf16.xpose.msra.mxu0 0
        %1231 = vmatprep.subr.bf16.mxu0 0
        %1232 = vmatpush1.bf16.xpose.msra.mxu0 0
        %1233 = vmatprep.subr.bf16.mxu0 0
        %1234 = vmatpush1.bf16.xpose.msra.mxu0 0
        %1235 = vmatprep.subr.bf16.mxu0 0
        %1236 = vmatpush1.bf16.xpose.msra.mxu0 0
        %1237 = vmatprep.subr.bf16.mxu0 0
        %1238 = vmatpush1.bf16.xpose.msra.mxu0 0
        %1239 = vmatprep.subr.bf16.mxu0 0
        %1240 = vmatpush1.bf16.xpose.msra.mxu0 0
        %1241 = vmatprep.subr.bf16.mxu0 0
        %1242 = vmatpush1.bf16.xpose.msra.mxu0 0
        %1243 = vmatprep.subr.bf16.mxu0 0
        %1244 = vmatpush1.bf16.xpose.msra.mxu0 0
        %1245 = vmatprep.subr.bf16.mxu0 0
        %1246 = vmatpush1.bf16.xpose.msra.mxu0 0
        %1247 = vmatprep.subr.bf16.mxu0 0
        %1248 = vmatpush1.bf16.xpose.msra.mxu0 0
        %1249 = vmatprep.subr.bf16.mxu0 0
        %1250 = vmatpush1.bf16.xpose.msra.mxu0 0
        %1251 = vmatprep.subr.bf16.mxu0 0
        %1252 = vmatpush1.bf16.xpose.msra.mxu0 0
        %1253 = vmatprep.subr.bf16.mxu0 0
        %1254 = vmatpush1.bf16.xpose.msra.mxu0 0
        %1255 = vmatprep.subr.bf16.mxu0 0
        %1256 = vmatpush1.bf16.xpose.msra.mxu0 0
        %1257 = vmatprep.mubr.bf16.mxu0 0
        %1258 = vmatmul.mubr.bf16.gmra.mrb[0].mxu0 %v1220
        %v1259 = vpop.f32.mrb[0].mxu0
        %v1260 = vadd.f32 %v1217, %v1259
        %v1261 = vpop.f32.mrb[0].mxu0
        %v1262 = vpop.f32.mrb[0].mxu0
        %v1263 = vpop.f32.mrb[0].mxu0
        %1264 = vdwg.mxu0
        %v1266 = vsel %vm1218, %v907, 0
        %v1269 = vsel %vm1218, %v1059, 0
        %1271 = vmatprep.subr.bf16.mxu0 0
        %1272 = vmatpush1.bf16.xpose.msra.mxu0 %v1269
        %1273 = vmatprep.subr.bf16.mxu0 0
        %1274 = vmatpush1.bf16.xpose.msra.mxu0 0
        %1275 = vmatprep.subr.bf16.mxu0 0
        %1276 = vmatpush1.bf16.xpose.msra.mxu0 0
        %1277 = vmatprep.subr.bf16.mxu0 0
        %1278 = vmatpush1.bf16.xpose.msra.mxu0 0
        %1279 = vmatprep.subr.bf16.mxu0 0
        %1280 = vmatpush1.bf16.xpose.msra.mxu0 0
        %1281 = vmatprep.subr.bf16.mxu0 0
        %1282 = vmatpush1.bf16.xpose.msra.mxu0 0
        %1283 = vmatprep.subr.bf16.mxu0 0
        %1284 = vmatpush1.bf16.xpose.msra.mxu0 0
        %1285 = vmatprep.subr.bf16.mxu0 0
        %1286 = vmatpush1.bf16.xpose.msra.mxu0 0
        %1287 = vmatprep.subr.bf16.mxu0 0
        %1288 = vmatpush1.bf16.xpose.msra.mxu0 0
        %1289 = vmatprep.subr.bf16.mxu0 0
        %1290 = vmatpush1.bf16.xpose.msra.mxu0 0
        %1291 = vmatprep.subr.bf16.mxu0 0
        %1292 = vmatpush1.bf16.xpose.msra.mxu0 0
        %1293 = vmatprep.subr.bf16.mxu0 0
        %1294 = vmatpush1.bf16.xpose.msra.mxu0 0
        %1295 = vmatprep.subr.bf16.mxu0 0
        %1296 = vmatpush1.bf16.xpose.msra.mxu0 0
        %1297 = vmatprep.subr.bf16.mxu0 0
        %1298 = vmatpush1.bf16.xpose.msra.mxu0 0
        %1299 = vmatprep.subr.bf16.mxu0 0
        %1300 = vmatpush1.bf16.xpose.msra.mxu0 0
        %1301 = vmatprep.subr.bf16.mxu0 0
        %1302 = vmatpush1.bf16.xpose.msra.mxu0 0
        %1303 = vmatprep.mubr.bf16.mxu0 0
        %1304 = vmatmul.mubr.bf16.gmra.mrb[0].mxu0 %v1266
        %v1305 = vpop.f32.mrb[0].mxu0
        %v1306 = vadd.f32 %v1217, %v1305
        %v1307 = vpop.f32.mrb[0].mxu0
        %v1308 = vpop.f32.mrb[0].mxu0
        %v1309 = vpop.f32.mrb[0].mxu0
        %1310 = vdwg.mxu0
        %v1312 = vsel %vm1218, %v908, 0
        %v1315 = vsel %vm1218, %v1060, 0
        %1317 = vmatprep.subr.bf16.mxu0 0
        %1318 = vmatpush1.bf16.xpose.msra.mxu0 %v1315
        %1319 = vmatprep.subr.bf16.mxu0 0
        %1320 = vmatpush1.bf16.xpose.msra.mxu0 0
        %1321 = vmatprep.subr.bf16.mxu0 0
        %1322 = vmatpush1.bf16.xpose.msra.mxu0 0
        %1323 = vmatprep.subr.bf16.mxu0 0
        %1324 = vmatpush1.bf16.xpose.msra.mxu0 0
        %1325 = vmatprep.subr.bf16.mxu0 0
        %1326 = vmatpush1.bf16.xpose.msra.mxu0 0
        %1327 = vmatprep.subr.bf16.mxu0 0
        %1328 = vmatpush1.bf16.xpose.msra.mxu0 0
        %1329 = vmatprep.subr.bf16.mxu0 0
        %1330 = vmatpush1.bf16.xpose.msra.mxu0 0
        %1331 = vmatprep.subr.bf16.mxu0 0
        %1332 = vmatpush1.bf16.xpose.msra.mxu0 0
        %1333 = vmatprep.subr.bf16.mxu0 0
        %1334 = vmatpush1.bf16.xpose.msra.mxu0 0
        %1335 = vmatprep.subr.bf16.mxu0 0
        %1336 = vmatpush1.bf16.xpose.msra.mxu0 0
        %1337 = vmatprep.subr.bf16.mxu0 0
        %1338 = vmatpush1.bf16.xpose.msra.mxu0 0
        %1339 = vmatprep.subr.bf16.mxu0 0
        %1340 = vmatpush1.bf16.xpose.msra.mxu0 0
        %1341 = vmatprep.subr.bf16.mxu0 0
        %1342 = vmatpush1.bf16.xpose.msra.mxu0 0
        %1343 = vmatprep.subr.bf16.mxu0 0
        %1344 = vmatpush1.bf16.xpose.msra.mxu0 0
        %1345 = vmatprep.subr.bf16.mxu0 0
        %1346 = vmatpush1.bf16.xpose.msra.mxu0 0
        %1347 = vmatprep.subr.bf16.mxu0 0
        %1348 = vmatpush1.bf16.xpose.msra.mxu0 0
        %1349 = vmatprep.mubr.bf16.mxu0 0
        %1350 = vmatmul.mubr.bf16.gmra.mrb[0].mxu0 %v1312
        %v1351 = vpop.f32.mrb[0].mxu0
        %v1352 = vadd.f32 %v1217, %v1351
        %v1353 = vpop.f32.mrb[0].mxu0
        %v1354 = vpop.f32.mrb[0].mxu0
        %v1355 = vpop.f32.mrb[0].mxu0
        %1356 = vdwg.mxu0
        %v1358 = vsel %vm1218, %v909, 0
        %v1361 = vsel %vm1218, %v1061, 0
        %1363 = vmatprep.subr.bf16.mxu0 0
        %1364 = vmatpush1.bf16.xpose.msra.mxu0 %v1361
        %1365 = vmatprep.subr.bf16.mxu0 0
        %1366 = vmatpush1.bf16.xpose.msra.mxu0 0
        %1367 = vmatprep.subr.bf16.mxu0 0
        %1368 = vmatpush1.bf16.xpose.msra.mxu0 0
        %1369 = vmatprep.subr.bf16.mxu0 0
        %1370 = vmatpush1.bf16.xpose.msra.mxu0 0
        %1371 = vmatprep.subr.bf16.mxu0 0
        %1372 = vmatpush1.bf16.xpose.msra.mxu0 0
        %1373 = vmatprep.subr.bf16.mxu0 0
        %1374 = vmatpush1.bf16.xpose.msra.mxu0 0
        %1375 = vmatprep.subr.bf16.mxu0 0
        %1376 = vmatpush1.bf16.xpose.msra.mxu0 0
        %1377 = vmatprep.subr.bf16.mxu0 0
        %1378 = vmatpush1.bf16.xpose.msra.mxu0 0
        %1379 = vmatprep.subr.bf16.mxu0 0
        %1380 = vmatpush1.bf16.xpose.msra.mxu0 0
        %1381 = vmatprep.subr.bf16.mxu0 0
        %1382 = vmatpush1.bf16.xpose.msra.mxu0 0
        %1383 = vmatprep.subr.bf16.mxu0 0
        %1384 = vmatpush1.bf16.xpose.msra.mxu0 0
        %1385 = vmatprep.subr.bf16.mxu0 0
        %1386 = vmatpush1.bf16.xpose.msra.mxu0 0
        %1387 = vmatprep.subr.bf16.mxu0 0
        %1388 = vmatpush1.bf16.xpose.msra.mxu0 0
        %1389 = vmatprep.subr.bf16.mxu0 0
        %1390 = vmatpush1.bf16.xpose.msra.mxu0 0
        %1391 = vmatprep.subr.bf16.mxu0 0
        %1392 = vmatpush1.bf16.xpose.msra.mxu0 0
        %1393 = vmatprep.subr.bf16.mxu0 0
        %1394 = vmatpush1.bf16.xpose.msra.mxu0 0
        %1395 = vmatprep.mubr.bf16.mxu0 0
        %1396 = vmatmul.mubr.bf16.gmra.mrb[0].mxu0 %v1358
        %v1397 = vpop.f32.mrb[0].mxu0
        %v1398 = vadd.f32 %v1217, %v1397
        %v1399 = vpop.f32.mrb[0].mxu0
        %v1400 = vpop.f32.mrb[0].mxu0
        %v1401 = vpop.f32.mrb[0].mxu0
        %1402 = vdwg.mxu0
        %v1403 = vsel %vm1218, %v1260, -inf
        %1404 = vmax.xlane.f32.xlu0 %v1403
        %v1405 = vpop.xlane.xlu0 %1404
        %v1406 = vsel %vm1218, %v1306, -inf
        %1407 = vmax.xlane.f32.xlu0 %v1406
        %v1408 = vpop.xlane.xlu0 %1407
        %v1409 = vsel %vm1218, %v1352, -inf
        %1410 = vmax.xlane.f32.xlu0 %v1409
        %v1411 = vpop.xlane.xlu0 %1410
        %v1412 = vsel %vm1218, %v1398, -inf
        %1413 = vmax.xlane.f32.xlu0 %v1412
        %v1414 = vpop.xlane.xlu0 %1413
        %v1415 = vsub.f32 %v1260, %v1405
        %v1416 = vsub.f32 %v1306, %v1408
        %v1417 = vsub.f32 %v1352, %v1411
        %v1418 = vsub.f32 %v1398, %v1414
        %v1419 = vmul.f32 %v1415, 1.442695
        %v1420 = vpow.pop %v1419
        %v1421 = vmul.f32 %v1416, 1.442695
        %v1422 = vpow.pop %v1421
        %v1423 = vmul.f32 %v1417, 1.442695
        %v1424 = vpow.pop %v1423
        %v1425 = vmul.f32 %v1418, 1.442695
        %v1426 = vpow.pop %v1425
        %v1427 = vsel %vm1218, %v1420, 0.0
        %1428 = vadd.xlane.f32.xlu0 %v1427
        %v1429 = vpop.xlane.xlu0 %1428
        %v1430 = vsel %vm1218, %v1422, 0.0
        %1431 = vadd.xlane.f32.xlu0 %v1430
        %v1432 = vpop.xlane.xlu0 %1431
        %v1433 = vsel %vm1218, %v1424, 0.0
        %1434 = vadd.xlane.f32.xlu0 %v1433
        %v1435 = vpop.xlane.xlu0 %1434
        %v1436 = vsel %vm1218, %v1426, 0.0
        %1437 = vadd.xlane.f32.xlu0 %v1436
        %v1438 = vpop.xlane.xlu0 %1437
        %v1439 = vrcp.pop %v1429
        %v1440 = vrcp.pop %v1432
        %v1441 = vrcp.pop %v1435
        %v1442 = vrcp.pop %v1438
        %v1443 = vmul.f32 %v1420, %v1439
        %v1444 = vmul.f32 %v1422, %v1440
        %v1445 = vmul.f32 %v1424, %v1441
        %v1446 = vmul.f32 %v1426, %v1442
        %v1447 = vpack.c.bf16 %v1443, %v1443
        %v1448 = vpack.c.bf16 %v1444, %v1444
        %v1449 = vpack.c.bf16 %v1445, %v1445
        %v1450 = vpack.c.bf16 %v1446, %v1446
        %v1452 = vsel %vm1218, %v1447, 0
        %vm1454 = vcmask 1043456
        %v1456 = vsel %vm1454, %v1210, 0
        %1458 = vmatprep.subr.bf16.mxu0 0
        %1459 = vmatpush1.bf16.msra.mxu0 %v1456
        %1460 = vmatprep.subr.bf16.mxu0 0
        %1461 = vmatpush1.bf16.msra.mxu0 0
        %1462 = vmatprep.subr.bf16.mxu0 0
        %1463 = vmatpush1.bf16.msra.mxu0 0
        %1464 = vmatprep.subr.bf16.mxu0 0
        %1465 = vmatpush1.bf16.msra.mxu0 0
        %1466 = vmatprep.subr.bf16.mxu0 0
        %1467 = vmatpush1.bf16.msra.mxu0 0
        %1468 = vmatprep.subr.bf16.mxu0 0
        %1469 = vmatpush1.bf16.msra.mxu0 0
        %1470 = vmatprep.subr.bf16.mxu0 0
        %1471 = vmatpush1.bf16.msra.mxu0 0
        %1472 = vmatprep.subr.bf16.mxu0 0
        %1473 = vmatpush1.bf16.msra.mxu0 0
        %1474 = vmatprep.subr.bf16.mxu0 0
        %1475 = vmatpush1.bf16.msra.mxu0 0
        %1476 = vmatprep.subr.bf16.mxu0 0
        %1477 = vmatpush1.bf16.msra.mxu0 0
        %1478 = vmatprep.subr.bf16.mxu0 0
        %1479 = vmatpush1.bf16.msra.mxu0 0
        %1480 = vmatprep.subr.bf16.mxu0 0
        %1481 = vmatpush1.bf16.msra.mxu0 0
        %1482 = vmatprep.subr.bf16.mxu0 0
        %1483 = vmatpush1.bf16.msra.mxu0 0
        %1484 = vmatprep.subr.bf16.mxu0 0
        %1485 = vmatpush1.bf16.msra.mxu0 0
        %1486 = vmatprep.subr.bf16.mxu0 0
        %1487 = vmatpush1.bf16.msra.mxu0 0
        %1488 = vmatprep.subr.bf16.mxu0 0
        %1489 = vmatpush1.bf16.msra.mxu0 0
        %1490 = vmatprep.mubr.bf16.mxu0 0
        %1491 = vmatmul.mubr.bf16.gmra.mrb[0].mxu0 %v1452
        %v1492 = vpop.f32.mrb[0].mxu0
        %v1493 = vadd.f32 0.0, %v1492
        %v1494 = vpop.f32.mrb[0].mxu0
        %v1495 = vpop.f32.mrb[0].mxu0
        %v1496 = vpop.f32.mrb[0].mxu0
        %1497 = vdwg.mxu0
        %v1499 = vsel %vm1218, %v1448, 0
        %v1502 = vsel %vm1454, %v1211, 0
        %1504 = vmatprep.subr.bf16.mxu0 0
        %1505 = vmatpush1.bf16.msra.mxu0 %v1502
        %1506 = vmatprep.subr.bf16.mxu0 0
        %1507 = vmatpush1.bf16.msra.mxu0 0
        %1508 = vmatprep.subr.bf16.mxu0 0
        %1509 = vmatpush1.bf16.msra.mxu0 0
        %1510 = vmatprep.subr.bf16.mxu0 0
        %1511 = vmatpush1.bf16.msra.mxu0 0
        %1512 = vmatprep.subr.bf16.mxu0 0
        %1513 = vmatpush1.bf16.msra.mxu0 0
        %1514 = vmatprep.subr.bf16.mxu0 0
        %1515 = vmatpush1.bf16.msra.mxu0 0
        %1516 = vmatprep.subr.bf16.mxu0 0
        %1517 = vmatpush1.bf16.msra.mxu0 0
        %1518 = vmatprep.subr.bf16.mxu0 0
        %1519 = vmatpush1.bf16.msra.mxu0 0
        %1520 = vmatprep.subr.bf16.mxu0 0
        %1521 = vmatpush1.bf16.msra.mxu0 0
        %1522 = vmatprep.subr.bf16.mxu0 0
        %1523 = vmatpush1.bf16.msra.mxu0 0
        %1524 = vmatprep.subr.bf16.mxu0 0
        %1525 = vmatpush1.bf16.msra.mxu0 0
        %1526 = vmatprep.subr.bf16.mxu0 0
        %1527 = vmatpush1.bf16.msra.mxu0 0
        %1528 = vmatprep.subr.bf16.mxu0 0
        %1529 = vmatpush1.bf16.msra.mxu0 0
        %1530 = vmatprep.subr.bf16.mxu0 0
        %1531 = vmatpush1.bf16.msra.mxu0 0
        %1532 = vmatprep.subr.bf16.mxu0 0
        %1533 = vmatpush1.bf16.msra.mxu0 0
        %1534 = vmatprep.subr.bf16.mxu0 0
        %1535 = vmatpush1.bf16.msra.mxu0 0
        %1536 = vmatprep.mubr.bf16.mxu0 0
        %1537 = vmatmul.mubr.bf16.gmra.mrb[0].mxu0 %v1499
        %v1538 = vpop.f32.mrb[0].mxu0
        %v1539 = vadd.f32 0.0, %v1538
        %v1540 = vpop.f32.mrb[0].mxu0
        %v1541 = vpop.f32.mrb[0].mxu0
        %v1542 = vpop.f32.mrb[0].mxu0
        %1543 = vdwg.mxu0
        %v1545 = vsel %vm1218, %v1449, 0
        %v1548 = vsel %vm1454, %v1212, 0
        %1550 = vmatprep.subr.bf16.mxu0 0
        %1551 = vmatpush1.bf16.msra.mxu0 %v1548
        %1552 = vmatprep.subr.bf16.mxu0 0
        %1553 = vmatpush1.bf16.msra.mxu0 0
        %1554 = vmatprep.subr.bf16.mxu0 0
        %1555 = vmatpush1.bf16.msra.mxu0 0
        %1556 = vmatprep.subr.bf16.mxu0 0
        %1557 = vmatpush1.bf16.msra.mxu0 0
        %1558 = vmatprep.subr.bf16.mxu0 0
        %1559 = vmatpush1.bf16.msra.mxu0 0
        %1560 = vmatprep.subr.bf16.mxu0 0
        %1561 = vmatpush1.bf16.msra.mxu0 0
        %1562 = vmatprep.subr.bf16.mxu0 0
        %1563 = vmatpush1.bf16.msra.mxu0 0
        %1564 = vmatprep.subr.bf16.mxu0 0
        %1565 = vmatpush1.bf16.msra.mxu0 0
        %1566 = vmatprep.subr.bf16.mxu0 0
        %1567 = vmatpush1.bf16.msra.mxu0 0
        %1568 = vmatprep.subr.bf16.mxu0 0
        %1569 = vmatpush1.bf16.msra.mxu0 0
        %1570 = vmatprep.subr.bf16.mxu0 0
        %1571 = vmatpush1.bf16.msra.mxu0 0
        %1572 = vmatprep.subr.bf16.mxu0 0
        %1573 = vmatpush1.bf16.msra.mxu0 0
        %1574 = vmatprep.subr.bf16.mxu0 0
        %1575 = vmatpush1.bf16.msra.mxu0 0
        %1576 = vmatprep.subr.bf16.mxu0 0
        %1577 = vmatpush1.bf16.msra.mxu0 0
        %1578 = vmatprep.subr.bf16.mxu0 0
        %1579 = vmatpush1.bf16.msra.mxu0 0
        %1580 = vmatprep.subr.bf16.mxu0 0
        %1581 = vmatpush1.bf16.msra.mxu0 0
        %1582 = vmatprep.mubr.bf16.mxu0 0
        %1583 = vmatmul.mubr.bf16.gmra.mrb[0].mxu0 %v1545
        %v1584 = vpop.f32.mrb[0].mxu0
        %v1585 = vadd.f32 0.0, %v1584
        %v1586 = vpop.f32.mrb[0].mxu0
        %v1587 = vpop.f32.mrb[0].mxu0
        %v1588 = vpop.f32.mrb[0].mxu0
        %1589 = vdwg.mxu0
        %v1591 = vsel %vm1218, %v1450, 0
        %v1594 = vsel %vm1454, %v1213, 0
        %1596 = vmatprep.subr.bf16.mxu0 0
        %1597 = vmatpush1.bf16.msra.mxu0 %v1594
        %1598 = vmatprep.subr.bf16.mxu0 0
        %1599 = vmatpush1.bf16.msra.mxu0 0
        %1600 = vmatprep.subr.bf16.mxu0 0
        %1601 = vmatpush1.bf16.msra.mxu0 0
        %1602 = vmatprep.subr.bf16.mxu0 0
        %1603 = vmatpush1.bf16.msra.mxu0 0
        %1604 = vmatprep.subr.bf16.mxu0 0
        %1605 = vmatpush1.bf16.msra.mxu0 0
        %1606 = vmatprep.subr.bf16.mxu0 0
        %1607 = vmatpush1.bf16.msra.mxu0 0
        %1608 = vmatprep.subr.bf16.mxu0 0
        %1609 = vmatpush1.bf16.msra.mxu0 0
        %1610 = vmatprep.subr.bf16.mxu0 0
        %1611 = vmatpush1.bf16.msra.mxu0 0
        %1612 = vmatprep.subr.bf16.mxu0 0
        %1613 = vmatpush1.bf16.msra.mxu0 0
        %1614 = vmatprep.subr.bf16.mxu0 0
        %1615 = vmatpush1.bf16.msra.mxu0 0
        %1616 = vmatprep.subr.bf16.mxu0 0
        %1617 = vmatpush1.bf16.msra.mxu0 0
        %1618 = vmatprep.subr.bf16.mxu0 0
        %1619 = vmatpush1.bf16.msra.mxu0 0
        %1620 = vmatprep.subr.bf16.mxu0 0
        %1621 = vmatpush1.bf16.msra.mxu0 0
        %1622 = vmatprep.subr.bf16.mxu0 0
        %1623 = vmatpush1.bf16.msra.mxu0 0
        %1624 = vmatprep.subr.bf16.mxu0 0
        %1625 = vmatpush1.bf16.msra.mxu0 0
        %1626 = vmatprep.subr.bf16.mxu0 0
        %1627 = vmatpush1.bf16.msra.mxu0 0
        %1628 = vmatprep.mubr.bf16.mxu0 0
        %1629 = vmatmul.mubr.bf16.gmra.mrb[0].mxu0 %v1591
        %v1630 = vpop.f32.mrb[0].mxu0
        %v1631 = vadd.f32 0.0, %v1630
        %v1632 = vpop.f32.mrb[0].mxu0
        %v1633 = vpop.f32.mrb[0].mxu0
        %v1634 = vpop.f32.mrb[0].mxu0
        %1635 = vdwg.mxu0
        %v1636 = vcombine.low %v1493, %v1585
        %v1637 = vcombine.high %v1493, %v1585
        %v1639 = vunpack.c.l.s4 1983009808
        %v1640 = vunpack.c.0.s8 %v1639
        %v1641 = vlaneseq
        %v1642 = vshrl.u32 %v1641, 7
        %v1643 = vsub.s32 %v1640, %v1642
        %v1644 = vrot.slane %v1636, %v1643
        %v1646 = vunpack.c.l.s4 1983009808
        %v1647 = vunpack.c.0.s8 %v1646
        %v1648 = vlaneseq
        %v1649 = vshrl.u32 %v1648, 7
        %v1650 = vsub.s32 %v1647, %v1649
        %v1651 = vrot.slane %v1637, %v1650
        %v1652 = vcombine.low %v1539, %v1631
        %v1653 = vcombine.high %v1539, %v1631
        %v1655 = vunpack.c.l.s4 1983009808
        %v1656 = vunpack.c.0.s8 %v1655
        %v1657 = vlaneseq
        %v1658 = vshrl.u32 %v1657, 7
        %v1659 = vsub.s32 %v1656, %v1658
        %v1660 = vrot.slane %v1652, %v1659
        %v1662 = vunpack.c.l.s4 1983009808
        %v1663 = vunpack.c.0.s8 %v1662
        %v1664 = vlaneseq
        %v1665 = vshrl.u32 %v1664, 7
        %v1666 = vsub.s32 %v1663, %v1665
        %v1667 = vrot.slane %v1653, %v1666
        %v1668 = vcombine.low %v1644, %v1660
        %v1669 = vcombine.high %v1644, %v1660
        %v1671 = vunpack.c.l.s4 1934713408
        %v1672 = vunpack.c.0.s8 %v1671
        %v1673 = vlaneseq
        %v1674 = vshrl.u32 %v1673, 7
        %v1675 = vsub.s32 %v1672, %v1674
        %v1676 = vrot.slane %v1668, %v1675
        %v1678 = vunpack.c.l.s4 1934713408
        %v1679 = vunpack.c.0.s8 %v1678
        %v1680 = vlaneseq
        %v1681 = vshrl.u32 %v1680, 7
        %v1682 = vsub.s32 %v1679, %v1681
        %v1683 = vrot.slane %v1669, %v1682
        %v1684 = vcombine.low %v1651, %v1667
        %v1685 = vcombine.high %v1651, %v1667
        %v1687 = vunpack.c.l.s4 1934713408
        %v1688 = vunpack.c.0.s8 %v1687
        %v1689 = vlaneseq
        %v1690 = vshrl.u32 %v1689, 7
        %v1691 = vsub.s32 %v1688, %v1690
        %v1692 = vrot.slane %v1684, %v1691
        %v1694 = vunpack.c.l.s4 1934713408
        %v1695 = vunpack.c.0.s8 %v1694
        %v1696 = vlaneseq
        %v1697 = vshrl.u32 %v1696, 7
        %v1698 = vsub.s32 %v1695, %v1697
        %v1699 = vrot.slane %v1685, %v1698
        %v1700 = vcombine.high %v1676, 0.0
        %v1701 = vcombine.high %v1683, 0.0
        %v1702 = vcombine.high %v1692, 0.0
        %v1703 = vcombine.high %v1699, 0.0
        %v1704 = vcombine.low %v1676, %v1683
        %v1706 = vunpack.c.l.s4 1983009808
        %v1707 = vunpack.c.0.s8 %v1706
        %v1708 = vlaneseq
        %v1709 = vshrl.u32 %v1708, 7
        %v1710 = vsub.s32 %v1707, %v1709
        %v1711 = vrot.slane %v1704, %v1710
        %v1712 = vcombine.low %v1700, %v1701
        %v1714 = vunpack.c.l.s4 1983009808
        %v1715 = vunpack.c.0.s8 %v1714
        %v1716 = vlaneseq
        %v1717 = vshrl.u32 %v1716, 7
        %v1718 = vsub.s32 %v1715, %v1717
        %v1719 = vrot.slane %v1712, %v1718
        %v1720 = vcombine.low %v1692, %v1699
        %v1722 = vunpack.c.l.s4 1983009808
        %v1723 = vunpack.c.0.s8 %v1722
        %v1724 = vlaneseq
        %v1725 = vshrl.u32 %v1724, 7
        %v1726 = vsub.s32 %v1723, %v1725
        %v1727 = vrot.slane %v1720, %v1726
        %v1728 = vcombine.low %v1702, %v1703
        %v1730 = vunpack.c.l.s4 1983009808
        %v1731 = vunpack.c.0.s8 %v1730
        %v1732 = vlaneseq
        %v1733 = vshrl.u32 %v1732, 7
        %v1734 = vsub.s32 %v1731, %v1733
        %v1735 = vrot.slane %v1728, %v1734
        %v1736 = vcombine.low %v1711, %v1719
        %v1737 = vcombine.high %v1711, %v1719
        %v1739 = vunpack.c.l.s4 1934713408
        %v1740 = vunpack.c.0.s8 %v1739
        %v1741 = vlaneseq
        %v1742 = vshrl.u32 %v1741, 7
        %v1743 = vsub.s32 %v1740, %v1742
        %v1744 = vrot.slane %v1736, %v1743
        %v1746 = vunpack.c.l.s4 1934713408
        %v1747 = vunpack.c.0.s8 %v1746
        %v1748 = vlaneseq
        %v1749 = vshrl.u32 %v1748, 7
        %v1750 = vsub.s32 %v1747, %v1749
        %v1751 = vrot.slane %v1737, %v1750
        %v1752 = vcombine.low %v1727, %v1735
        %v1753 = vcombine.high %v1727, %v1735
        %v1755 = vunpack.c.l.s4 1934713408
        %v1756 = vunpack.c.0.s8 %v1755
        %v1757 = vlaneseq
        %v1758 = vshrl.u32 %v1757, 7
        %v1759 = vsub.s32 %v1756, %v1758
        %v1760 = vrot.slane %v1752, %v1759
        %v1762 = vunpack.c.l.s4 1934713408
        %v1763 = vunpack.c.0.s8 %v1762
        %v1764 = vlaneseq
        %v1765 = vshrl.u32 %v1764, 7
        %v1766 = vsub.s32 %v1763, %v1765
        %v1767 = vrot.slane %v1753, %v1766
        %v1768 = vcombine.low %v1744, %v1760
        %v1769 = vcombine.high %v1744, %v1760
        %v1770 = vcombine.low %v1751, %v1767
        %v1771 = vcombine.high %v1751, %v1767
        %1773 = vrot.lane.b32.xlu0 %v1769, 8
        %v1774 = vpop.permute.xlu0 %1773
        %1777 = vrot.lane.b32.xlu0 %v1770, 16
        %v1778 = vpop.permute.xlu0 %1777
        %1781 = vrot.lane.b32.xlu0 %v1771, 24
        %v1782 = vpop.permute.xlu0 %1781
        %v1784 = vsel %vm1218, %v1768, %v1774
        %vm1785 = vcmask 130048
        %v1786 = vsel %vm1785, %v1784, %v1778
        %vm1787 = vcmask 195584
        %v1788 = vsel %vm1787, %v1786, %v1782
        %v1789 = vld [vmem:[#allocation11] sm:$0xf]
        %v1790 = vld [vmem:[#allocation11 + $0x4] sm:$0xf]
        %v1791 = vld [vmem:[#allocation11 + $0x8] sm:$0xf]
        %v1792 = vld [vmem:[#allocation11 + $0xc] sm:$0xf]
        %v1793 = vld [vmem:[#allocation13] sm:$0x1]
        %v1794 = vpack.c.bf16 %v1788, %v1788
        %v1796 = vlaneseq
        %v1797 = vshrl.u32 %v1796, 7
        %v1798 = vsub.s32 0, %v1797
        %v1799 = vrot.slane %v1793, %v1798
        %v1805 = vunpack.c.l.b16 %v1789
        %v1806 = vunpack.c.l.b16 %v1790
        %v1807 = vunpack.c.l.b16 %v1791
        %v1808 = vunpack.c.l.b16 %v1792
        %v1809 = vpack.c.b16 %v1806, %v1805
        %v1810 = vpack.c.b16 %v1808, %v1807
        %v1812 = vsel %vm620, %v1794, 0
        %v1815 = vsel %vm620, %v1809, 0
        %v1818 = vsel %vm620, %v1810, 0
        %1820 = vmatprep.subr.bf16.mxu0 0
        %1821 = vmatpush1.bf16.xpose.msra.mxu0 %v1815
        %1822 = vmatprep.subr.bf16.mxu0 0
        %1823 = vmatpush1.bf16.xpose.msra.mxu0 %v1818
        %1824 = vmatprep.subr.bf16.mxu0 0
        %1825 = vmatpush1.bf16.xpose.msra.mxu0 0
        %1826 = vmatprep.subr.bf16.mxu0 0
        %1827 = vmatpush1.bf16.xpose.msra.mxu0 0
        %1828 = vmatprep.subr.bf16.mxu0 0
        %1829 = vmatpush1.bf16.xpose.msra.mxu0 0
        %1830 = vmatprep.subr.bf16.mxu0 0
        %1831 = vmatpush1.bf16.xpose.msra.mxu0 0
        %1832 = vmatprep.subr.bf16.mxu0 0
        %1833 = vmatpush1.bf16.xpose.msra.mxu0 0
        %1834 = vmatprep.subr.bf16.mxu0 0
        %1835 = vmatpush1.bf16.xpose.msra.mxu0 0
        %1836 = vmatprep.subr.bf16.mxu0 0
        %1837 = vmatpush1.bf16.xpose.msra.mxu0 0
        %1838 = vmatprep.subr.bf16.mxu0 0
        %1839 = vmatpush1.bf16.xpose.msra.mxu0 0
        %1840 = vmatprep.subr.bf16.mxu0 0
        %1841 = vmatpush1.bf16.xpose.msra.mxu0 0
        %1842 = vmatprep.subr.bf16.mxu0 0
        %1843 = vmatpush1.bf16.xpose.msra.mxu0 0
        %1844 = vmatprep.subr.bf16.mxu0 0
        %1845 = vmatpush1.bf16.xpose.msra.mxu0 0
        %1846 = vmatprep.subr.bf16.mxu0 0
        %1847 = vmatpush1.bf16.xpose.msra.mxu0 0
        %1848 = vmatprep.subr.bf16.mxu0 0
        %1849 = vmatpush1.bf16.xpose.msra.mxu0 0
        %1850 = vmatprep.subr.bf16.mxu0 0
        %1851 = vmatpush1.bf16.xpose.msra.mxu0 0
        %1852 = vmatprep.mubr.bf16.mxu0 0
        %1853 = vmatmul.mubr.bf16.gmra.mrb[0].mxu0 %v1812
        %v1854 = vpop.f32.mrb[0].mxu0
        %v1855 = vadd.f32 %v1799, %v1854
        %v1856 = vpop.f32.mrb[0].mxu0
        %v1857 = vpop.f32.mrb[0].mxu0
        %v1858 = vpop.f32.mrb[0].mxu0
        %1859 = vdwg.mxu0
        %v1860 = vadd.f32 %v617, %v1855
        %v1861 = vld [vmem:[#allocation14] sm:$0x1]
        %v1862 = vld [vmem:[#allocation16] sm:$0x1]
        %v1863 = vsel %vm620, %v1860, 0.0
        %1864 = vadd.xlane.f32.xlu0 %v1863
        %v1865 = vpop.xlane.xlu0 %1864
        %v1866 = vmul.f32 %v1865, %v624
        %v1867 = vsub.f32 %v1860, %v1866
        %v1868 = vmul.f32 %v1867, %v1867
        %v1869 = vsel %vm620, %v1868, 0.0
        %1870 = vadd.xlane.f32.xlu0 %v1869
        %v1871 = vpop.xlane.xlu0 %1870
        %v1872 = vmul.f32 %v1871, %v624
        %v1873 = vadd.f32 %v1872, 1e-05
        %v1874 = vrsqrt.pop %v1873
        %v1875 = vmul.f32 %v1867, %v1874
        %v1877 = vlaneseq
        %v1878 = vshrl.u32 %v1877, 7
        %v1879 = vsub.s32 0, %v1878
        %v1880 = vrot.slane %v1861, %v1879
        %v1882 = vmul.f32 %v1875, %v1880
        %v1884 = vlaneseq
        %v1885 = vshrl.u32 %v1884, 7
        %v1886 = vsub.s32 0, %v1885
        %v1887 = vrot.slane %v1862, %v1886
        %v1889 = vadd.f32 %v1882, %v1887
        %v1890 = vld [vmem:[#allocation17] sm:$0xf]
        %v1891 = vld [vmem:[#allocation17 + $0x4] sm:$0xf]
        %v1892 = vld [vmem:[#allocation17 + $0x8] sm:$0xf]
        %v1893 = vld [vmem:[#allocation17 + $0xc] sm:$0xf]
        %v1894 = vld [vmem:[#allocation17 + $0x10] sm:$0xf]
        %v1895 = vld [vmem:[#allocation17 + $0x14] sm:$0xf]
        %v1896 = vld [vmem:[#allocation17 + $0x18] sm:$0xf]
        %v1897 = vld [vmem:[#allocation17 + $0x1c] sm:$0xf]
        %v1898 = vld [vmem:[#allocation17 + $0x20] sm:$0xf]
        %v1899 = vld [vmem:[#allocation17 + $0x24] sm:$0xf]
        %v1900 = vld [vmem:[#allocation17 + $0x28] sm:$0xf]
        %v1901 = vld [vmem:[#allocation17 + $0x2c] sm:$0xf]
        %v1902 = vld [vmem:[#allocation17 + $0x30] sm:$0xf]
        %v1903 = vld [vmem:[#allocation17 + $0x34] sm:$0xf]
        %v1904 = vld [vmem:[#allocation17 + $0x38] sm:$0xf]
        %v1905 = vld [vmem:[#allocation17 + $0x3c] sm:$0xf]
        %v1906 = vld [vmem:[#allocation19] sm:$0x1]
        %v1907 = vpack.c.bf16 %v1889, %v1889
        %v1909 = vlaneseq
        %v1910 = vshrl.u32 %v1909, 7
        %v1911 = vsub.s32 0, %v1910
        %v1912 = vrot.slane %v1906, %v1911
        %v1930 = vunpack.c.l.b16 %v1890
        %v1931 = vunpack.c.l.b16 %v1891
        %v1932 = vunpack.c.l.b16 %v1892
        %v1933 = vunpack.c.l.b16 %v1893
        %v1934 = vunpack.c.l.b16 %v1894
        %v1935 = vunpack.c.l.b16 %v1895
        %v1936 = vunpack.c.l.b16 %v1896
        %v1937 = vunpack.c.l.b16 %v1897
        %v1938 = vunpack.c.l.b16 %v1898
        %v1939 = vunpack.c.l.b16 %v1899
        %v1940 = vunpack.c.l.b16 %v1900
        %v1941 = vunpack.c.l.b16 %v1901
        %v1942 = vunpack.c.l.b16 %v1902
        %v1943 = vunpack.c.l.b16 %v1903
        %v1944 = vunpack.c.l.b16 %v1904
        %v1945 = vunpack.c.l.b16 %v1905
        %v1946 = vpack.c.b16 %v1931, %v1930
        %v1947 = vpack.c.b16 %v1933, %v1932
        %v1948 = vpack.c.b16 %v1935, %v1934
        %v1949 = vpack.c.b16 %v1937, %v1936
        %v1950 = vpack.c.b16 %v1939, %v1938
        %v1951 = vpack.c.b16 %v1941, %v1940
        %v1952 = vpack.c.b16 %v1943, %v1942
        %v1953 = vpack.c.b16 %v1945, %v1944
        %v1955 = vsel %vm620, %v1907, 0
        %v1958 = vsel %vm620, %v1946, 0
        %v1961 = vsel %vm620, %v1947, 0
        %v1964 = vsel %vm620, %v1948, 0
        %v1967 = vsel %vm620, %v1949, 0
        %v1970 = vsel %vm620, %v1950, 0
        %v1973 = vsel %vm620, %v1951, 0
        %v1976 = vsel %vm620, %v1952, 0
        %v1979 = vsel %vm620, %v1953, 0
        %1981 = vmatprep.subr.bf16.mxu0 0
        %1982 = vmatpush1.bf16.xpose.msra.mxu0 %v1958
        %1983 = vmatprep.subr.bf16.mxu0 0
        %1984 = vmatpush1.bf16.xpose.msra.mxu0 %v1961
        %1985 = vmatprep.subr.bf16.mxu0 0
        %1986 = vmatpush1.bf16.xpose.msra.mxu0 %v1964
        %1987 = vmatprep.subr.bf16.mxu0 0
        %1988 = vmatpush1.bf16.xpose.msra.mxu0 %v1967
        %1989 = vmatprep.subr.bf16.mxu0 0
        %1990 = vmatpush1.bf16.xpose.msra.mxu0 %v1970
        %1991 = vmatprep.subr.bf16.mxu0 0
        %1992 = vmatpush1.bf16.xpose.msra.mxu0 %v1973
        %1993 = vmatprep.subr.bf16.mxu0 0
        %1994 = vmatpush1.bf16.xpose.msra.mxu0 %v1976
        %1995 = vmatprep.subr.bf16.mxu0 0
        %1996 = vmatpush1.bf16.xpose.msra.mxu0 %v1979
        %1997 = vmatprep.subr.bf16.mxu0 0
        %1998 = vmatpush1.bf16.xpose.msra.mxu0 0
        %1999 = vmatprep.subr.bf16.mxu0 0
        %2000 = vmatpush1.bf16.xpose.msra.mxu0 0
        %2001 = vmatprep.subr.bf16.mxu0 0
        %2002 = vmatpush1.bf16.xpose.msra.mxu0 0
        %2003 = vmatprep.subr.bf16.mxu0 0
        %2004 = vmatpush1.bf16.xpose.msra.mxu0 0
        %2005 = vmatprep.subr.bf16.mxu0 0
        %2006 = vmatpush1.bf16.xpose.msra.mxu0 0
        %2007 = vmatprep.subr.bf16.mxu0 0
        %2008 = vmatpush1.bf16.xpose.msra.mxu0 0
        %2009 = vmatprep.subr.bf16.mxu0 0
        %2010 = vmatpush1.bf16.xpose.msra.mxu0 0
        %2011 = vmatprep.subr.bf16.mxu0 0
        %2012 = vmatpush1.bf16.xpose.msra.mxu0 0
        %2013 = vmatprep.mubr.bf16.mxu0 0
        %2014 = vmatmul.mubr.bf16.gmra.mrb[0].mxu0 %v1955
        %v2015 = vpop.f32.mrb[0].mxu0
        %v2016 = vadd.f32 %v1912, %v2015
        %v2017 = vpop.f32.mrb[0].mxu0
        %v2018 = vpop.f32.mrb[0].mxu0
        %v2019 = vpop.f32.mrb[0].mxu0
        %2020 = vdwg.mxu0
        %v2021 = vpack.c.bf16 %v2016, %v2016
        %v2022 = vmul.bf16 %v2021, 1071267802
        %v2023 = vxor.u32 %v2022, 2147516416
        %v2025 = vmul.bf16 %v2023, 1069105081
        %v2026 = vpow.bf16.pop %v2025
        %v2027 = vadd.bf16 %v2026, 1065369472
        %v2028 = vrcp.bf16.pop %v2027
        %v2029 = vmul.bf16 1065369472, %v2028
        %v2030 = vmul.bf16 %v2021, %v2029
        %v2031 = vld [vmem:[#allocation20] sm:$0xf]
        %v2032 = vld [vmem:[#allocation20 + $0x4] sm:$0xf]
        %v2033 = vld [vmem:[#allocation20 + $0x8] sm:$0xf]
        %v2034 = vld [vmem:[#allocation20 + $0xc] sm:$0xf]
        %v2035 = vld [vmem:[#allocation22] sm:$0x1]
        %v2037 = vlaneseq
        %v2038 = vshrl.u32 %v2037, 7
        %v2039 = vsub.s32 0, %v2038
        %v2040 = vrot.slane %v2035, %v2039
        %v2046 = vunpack.c.l.b16 %v2031
        %v2047 = vunpack.c.l.b16 %v2032
        %v2048 = vunpack.c.l.b16 %v2033
        %v2049 = vunpack.c.l.b16 %v2034
        %v2050 = vpack.c.b16 %v2047, %v2046
        %v2051 = vpack.c.b16 %v2049, %v2048
        %2054 = vmatprep.subr.bf16.mxu0 0
        %2055 = vmatpush1.bf16.xpose.msra.mxu0 %v2050
        %2056 = vmatprep.subr.bf16.mxu0 0
        %2057 = vmatpush1.bf16.xpose.msra.mxu0 %v2051
        %2058 = vmatprep.subr.bf16.mxu0 0
        %2059 = vmatpush1.bf16.xpose.msra.mxu0 0
        %2060 = vmatprep.subr.bf16.mxu0 0
        %2061 = vmatpush1.bf16.xpose.msra.mxu0 0
        %2062 = vmatprep.subr.bf16.mxu0 0
        %2063 = vmatpush1.bf16.xpose.msra.mxu0 0
        %2064 = vmatprep.subr.bf16.mxu0 0
        %2065 = vmatpush1.bf16.xpose.msra.mxu0 0
        %2066 = vmatprep.subr.bf16.mxu0 0
        %2067 = vmatpush1.bf16.xpose.msra.mxu0 0
        %2068 = vmatprep.subr.bf16.mxu0 0
        %2069 = vmatpush1.bf16.xpose.msra.mxu0 0
        %2070 = vmatprep.subr.bf16.mxu0 0
        %2071 = vmatpush1.bf16.xpose.msra.mxu0 0
        %2072 = vmatprep.subr.bf16.mxu0 0
        %2073 = vmatpush1.bf16.xpose.msra.mxu0 0
        %2074 = vmatprep.subr.bf16.mxu0 0
        %2075 = vmatpush1.bf16.xpose.msra.mxu0 0
        %2076 = vmatprep.subr.bf16.mxu0 0
        %2077 = vmatpush1.bf16.xpose.msra.mxu0 0
        %2078 = vmatprep.subr.bf16.mxu0 0
        %2079 = vmatpush1.bf16.xpose.msra.mxu0 0
        %2080 = vmatprep.subr.bf16.mxu0 0
        %2081 = vmatpush1.bf16.xpose.msra.mxu0 0
        %2082 = vmatprep.subr.bf16.mxu0 0
        %2083 = vmatpush1.bf16.xpose.msra.mxu0 0
        %2084 = vmatprep.subr.bf16.mxu0 0
        %2085 = vmatpush1.bf16.xpose.msra.mxu0 0
        %2086 = vmatprep.mubr.bf16.mxu0 0
        %2087 = vmatmul.mubr.bf16.gmra.mrb[0].mxu0 %v2030
        %v2088 = vpop.f32.mrb[0].mxu0
        %v2089 = vadd.f32 %v2040, %v2088
        %v2090 = vpop.f32.mrb[0].mxu0
        %v2091 = vpop.f32.mrb[0].mxu0
        %v2092 = vpop.f32.mrb[0].mxu0
        %2093 = vdwg.mxu0
        %v2094 = vadd.f32 %v1860, %v2089
        %2095 = vst.msk [vmem:[%s613] sm:$0xff] %vm620, %v2094
        %s2096 = sand.u32 %s322, 1
        %s2097 = scalar_lea.sflag [#allocation4], %s2096
        %s2098 = sand.u32 %s322, 1
        %s2099 = smul.addr %s2098, 8
        %s2100 = scalar_lea.vmem [#allocation23], %s2099
        // Predicated region
        $region125: #{vision_transformer.7} parent=71 // pred_check
          %p2101 = pneg %p332
        $region126: #{vision_transformer.7} parent=71 // pred_check_branch
          %2103 = sbr.rel (%p2101) target = $region128
        $region127: #{vision_transformer.7} parent=71 // pred_region
          %s2105 = ssub.s32 128, 128
          %2106 = vsyncadd %s2097, %s2105
          %s2107 = smul.addr %s36, 128
          %s2108 = scalar_lea.hbm %s13, %s2107
          %s2110 = sshll.u32 %s2100, 4
          %s2111 = int_to_ptr.vmem [resolvable:$true] %s2110
          %2113 = dma.vmem_to_hbm [thread:$0]  %s2111, 128, %s2108, %s2097
        $region128: #{vision_transformer.7} parent=71 // pred_fallthru
          _
      $region72: #{vision_transformer.7} parent=5 // pred_fallthru
        _
      %p2114 = scmp.le.s32.totalorder 2, %s31
      // Predicated region
      $region129: #{vision_transformer.7} parent=5 // pred_check
        %p2115 = pneg %p2114
      $region130: #{vision_transformer.7} parent=5 // pred_check_branch
        %2117 = sbr.rel (%p2115) target = $region132
      $region131: #{vision_transformer.7} parent=5 // pred_region
        %s2118 = ssub.s32 %s31, 2
        // Predicated region
        $region133: #{vision_transformer.7} parent=131 // pred_check
          %p2119 = pneg %p338
        $region134: #{vision_transformer.7} parent=131 // pred_check_branch
          %2121 = sbr.rel (%p2119) target = $region136
        $region135: #{vision_transformer.7} parent=131 // pred_region
          %s2122 = sand.u32 %s323, 1
          %s2123 = scalar_lea.sflag [#allocation4], %s2122
          %s2124 = sand.u32 %s323, 1
          %s2125 = smul.addr %s2124, 8
          %s2126 = scalar_lea.vmem [#allocation23], %s2125
          %2127 = dma.done %s2123, 128
        $region136: #{vision_transformer.7} parent=131 // pred_fallthru
          _
      $region132: #{vision_transformer.7} parent=5 // pred_fallthru
        _
    $region6: #{vision_transformer.7} parent=1 // loop_footer
      %s35 = sadd.s32 1, %s31
    $region7: #{vision_transformer.7} parent=1 // loop_footer_branch
      %30 = sbr.rel target = $region3
    $region8: #{vision_transformer.7} parent=1 // loop_exit
      _
    %2128 = vsyncpa [#allocation3], 1
    %s2129 = scalar_lea.sflag [#allocation3], 1
    %2130 = vsyncpa %s2129, 1
    %2131 = vsyncpa [#allocation6], 1
    %2132 = vsyncpa [#allocation9], 1
    %2133 = vsyncpa [#allocation12], 1
    %2134 = vsyncpa [#allocation15], 1
    %2135 = vsyncpa [#allocation18], 1
    %2136 = vsyncpa [#allocation21], 1
    %2137 = vsyncpa [#allocation4], 1
    %s2138 = scalar_lea.sflag [#allocation4], 1
    %2139 = vsyncpa %s2138, 1

</llo_original>
